<compile_context>
chip_gen: v7x
topology: tpu7x:2x2x1
jax: 0.10.0
libtpu: 0.0.40
codegen_flags: <defaults>
</compile_context>

<pallas_src>
import functools

import jax
import jax.numpy as jnp
from jax.experimental import pallas as pl
from jax.experimental.pallas import tpu as pltpu

EPS = 1e-5
_LANES = 128
_LPAD = 8   # left halo pad in W so the interior store into the scratch is sublane-aligned


def _round_up(x, m):
    return (x + m - 1) // m * m


# ---------------------------------------------------------------------------
# Fused kernel: one grid step == one batch image; hidden activation stays in VMEM.
# ---------------------------------------------------------------------------
def _mv2_fused_kernel(x_ref, w1_ref, t1_ref, wdw_ref, t2_ref, w2_ref, t3_ref,
                      *rest, H, W, apply_stage1, use_res):
    if use_res:
        wres_ref, o_ref, hpad_ref = rest
    else:
        o_ref, hpad_ref = rest

    Cin = x_ref.shape[-1]
    Ch = w1_ref.shape[-1]      # padded hidden width (multiple of 128)
    Cout = w2_ref.shape[-1]    # padded output width (multiple of 128)
    cdt = w1_ref.dtype         # bf16 compute dtype for the MXU dots

    # ---- stage 1: 1x1 expand conv (+ BN shift + SiLU).  BN1 scale folded into w1.
    x2d = x_ref[0].reshape(H * W, Cin)                               # f32 (HW, Cin)
    h = jnp.dot(x2d.astype(cdt), w1_ref[...],
                preferred_element_type=jnp.float32)                  # (HW, Ch) f32
    if apply_stage1:                                                 # static (expansion != 1)
        h = h + t1_ref[...]
        h = h * jax.nn.sigmoid(h)                                    # SiLU

    # ---- stage 2: depthwise 3x3, stride 1, pad 1.  Halo built in VMEM (no HBM pad);
    # interior stored at sublane offset _LPAD -> aligned, unmasked store.
    hpad_ref[...] = jnp.zeros_like(hpad_ref)
    hpad_ref[1:H + 1, _LPAD:_LPAD + W, :] = h.reshape(H, W, Ch)
    xp = hpad_ref[...]                                               # (H+2, _LPAD+W+1, Ch)
    w = wdw_ref[...]                                                 # (3, 3, Ch), BN2 scale folded
    acc = jnp.zeros((H, W, Ch), jnp.float32)
    for kw in range(3):
        xw = xp[:, _LPAD - 1 + kw:_LPAD - 1 + kw + W, :]             # 3 column-shifted views
        for kh in range(3):
            acc = acc + xw[kh:kh + H] * w[kh, kw].reshape(1, 1, Ch)
    g = acc + t2_ref[...].reshape(1, 1, Ch)
    g = g * jax.nn.sigmoid(g)                                        # SiLU (f32 VPU path)

    # ---- stage 3: 1x1 project conv (+ BN shift) (+ residual).  BN3 scale folded into w2.
    y = jnp.dot(g.reshape(H * W, Ch).astype(cdt), w2_ref[...],
                preferred_element_type=jnp.float32)                  # (HW, Cout) f32
    y = y + t3_ref[...]
    if use_res:                                                      # static
        # Residual as an f32 matmul against a (Cin, Cout) identity embedding:
        # exact dominant term + lane-dense epilogue.
        y = y + jnp.dot(x2d, wres_ref[...], preferred_element_type=jnp.float32)
    o_ref[0] = y.reshape(H, W, Cout).astype(o_ref.dtype)


# ---------------------------------------------------------------------------
# Wrapper
# ---------------------------------------------------------------------------
def _fold_bn(gamma, beta, mean, var):
    s = gamma * jax.lax.rsqrt(var + EPS)
    return s, beta - mean * s


def mv2block_forward(x_nchw, params, stride=1, expansion=4):
    """MV2Block forward (inference-mode BatchNorm).  NCHW in / NCHW out."""
    # TODO(synk): stride in {2,3,4} needs a strided depthwise tap loop; only the
    # stride=1 path (the residual path) is implemented here.
    assert stride == 1
    N, Cin, H, W = x_nchw.shape
    oup = params["w2"].shape[1]
    use_res = (stride == 1) and (Cin == oup)

    hidden = Cin if expansion == 1 else int(Cin * expansion)
    ch_pad = _round_up(hidden, _LANES)    # hidden lives only in VMEM -> HBM-free padding
    cout_pad = _round_up(oup, _LANES)     # lane-dense output store; sliced away at the end

    # Fold BN into conv weights; zero-pad channels (padded channels contribute exactly 0).
    if expansion == 1:
        # Module has no expand conv for expansion==1: stage 1 degenerates to an identity
        # embedding with no BN/SiLU.
        w1f = jnp.eye(Cin, ch_pad, dtype=jnp.bfloat16)
        t1p = jnp.zeros((1, ch_pad), jnp.float32)
        apply_stage1 = False
    else:
        s1, t1 = _fold_bn(*params["bn1"])
        w1f = jnp.pad(params["w1"] * s1[None, :],
                      ((0, 0), (0, ch_pad - hidden))).astype(jnp.bfloat16)
        t1p = jnp.pad(t1, (0, ch_pad - hidden)).reshape(1, ch_pad)
        apply_stage1 = True

    s2, t2 = _fold_bn(*params["bn2"])
    wdwf = jnp.pad(params["wdw"] * s2[None, None, :],
                   ((0, 0), (0, 0), (0, ch_pad - hidden))).astype(jnp.float32)
    t2p = jnp.pad(t2, (0, ch_pad - hidden)).reshape(1, ch_pad)

    s3, t3 = _fold_bn(*params["bn3"])
    w2f = jnp.pad(params["w2"] * s3[None, :],
                  ((0, ch_pad - hidden), (0, cout_pad - oup))).astype(jnp.bfloat16)
    t3p = jnp.pad(t3, (0, cout_pad - oup)).reshape(1, cout_pad)

    # NCHW -> NHWC (an NHWC-native pipeline would skip this transpose entirely).
    x_nhwc = jnp.transpose(x_nchw, (0, 2, 3, 1))

    kernel = functools.partial(_mv2_fused_kernel, H=H, W=W,
                               apply_stage1=apply_stage1, use_res=use_res)

    in_specs = [
        pl.BlockSpec((1, H, W, Cin), lambda b: (b, 0, 0, 0)),
        pl.BlockSpec((Cin, ch_pad), lambda b: (0, 0)),
        pl.BlockSpec((1, ch_pad), lambda b: (0, 0)),
        pl.BlockSpec((3, 3, ch_pad), lambda b: (0, 0, 0)),
        pl.BlockSpec((1, ch_pad), lambda b: (0, 0)),
        pl.BlockSpec((ch_pad, cout_pad), lambda b: (0, 0)),
        pl.BlockSpec((1, cout_pad), lambda b: (0, 0)),
    ]
    args = [x_nhwc, w1f, t1p, wdwf, t2p, w2f, t3p]
    if use_res:
        in_specs.append(pl.BlockSpec((Cin, cout_pad), lambda b: (0, 0)))
        args.append(jnp.eye(Cin, cout_pad, dtype=jnp.float32))

    # TODO(synk): for real MobileNet sizes (large H*W*hidden, v7x's 32 MiB scoped VMEM),
    # tile over H row-strips with a 1-row halo and add that axis as a second "parallel"
    # grid dimension so both v7x TensorCores stay fed.
    y_pad = pl.pallas_call(
        kernel,
        out_shape=jax.ShapeDtypeStruct((N, H, W, cout_pad), jnp.float32),
        grid_spec=pltpu.PrefetchScalarGridSpec(
            num_scalar_prefetch=0,
            grid=(N,),
            in_specs=in_specs,
            out_specs=pl.BlockSpec((1, H, W, cout_pad), lambda b: (b, 0, 0, 0)),
            scratch_shapes=[
                pltpu.VMEM((H + 2, _LPAD + W + 1, ch_pad), jnp.float32),
            ],
        ),
        compiler_params=pltpu.CompilerParams(
            dimension_semantics=("parallel",),
        ),
    )(*args)

    # Drop channel padding; XLA fuses the slice with the NHWC -> NCHW transpose.
    return jnp.transpose(y_pad[..., :oup], (0, 3, 1, 2))


# ---------------------------------------------------------------------------
# Deterministic params + pure-JAX reference (for verification)
# ---------------------------------------------------------------------------
def init_params(key, inp, oup, expansion):
    hidden = int(inp * expansion)
    ks = jax.random.split(key, 6)

    def bn(k, c):
        kg, kb, km, kv = jax.random.split(k, 4)
        g = 1.0 + 0.1 * jax.random.normal(kg, (c,), jnp.float32)
        b = 0.05 * jax.random.normal(kb, (c,), jnp.float32)
        m = 0.02 * jax.random.normal(km, (c,), jnp.float32)
        v = jax.random.uniform(kv, (c,), jnp.float32, 0.5, 1.5)
        return (g, b, m, v)

    return {
        "w1": 0.1 * jax.random.normal(ks[0], (inp, hidden), jnp.float32),
        "bn1": bn(ks[1], hidden),
        "wdw": 0.1 * jax.random.normal(ks[2], (3, 3, hidden), jnp.float32),
        "bn2": bn(ks[3], hidden),
        "w2": 0.1 * jax.random.normal(ks[4], (hidden, oup), jnp.float32),
        "bn3": bn(ks[5], oup),
    }


def ref_forward(x, params, stride, expansion):
    # Pure-JAX reference in NCHW (mirrors the PyTorch module, eval-mode BN), f32 throughout.
    inp = x.shape[1]

    def bn(y, g, b, m, v):
        s = (g / jnp.sqrt(v + EPS))[None, :, None, None]
        return (y - m[None, :, None, None]) * s + b[None, :, None, None]

    silu = lambda z: z * jax.nn.sigmoid(z)

    if expansion == 1:
        h = x
    else:
        h = jnp.einsum("nchw,cd->ndhw", x, params["w1"])
        h = silu(bn(h, *params["bn1"]))

    wdw = params["wdw"]
    hd = wdw.shape[-1]
    kern = jnp.transpose(wdw, (2, 0, 1))[:, None, :, :]  # (hidden,1,3,3) OIHW
    h = jax.lax.conv_general_dilated(
        h, kern, (stride, stride), ((1, 1), (1, 1)),
        dimension_numbers=("NCHW", "OIHW", "NCHW"), feature_group_count=hd)
    h = silu(bn(h, *params["bn2"]))

    y = jnp.einsum("nchw,cd->ndhw", h, params["w2"])
    y = bn(y, *params["bn3"])

    oup = params["w2"].shape[1]
    if stride == 1 and inp == oup:
        y = x + y
    return y


if __name__ == "__main__":
    N, inp, H, W = 2, 8, 16, 16
    oup, stride, expansion = 8, 1, 4  # use_res_connect == True

    key = jax.random.PRNGKey(0)
    kx, kp = jax.random.split(key)
    x = jax.random.normal(kx, (N, inp, H, W), jnp.float32)  # NCHW, like PyTorch
    params = init_params(kp, inp, oup, expansion)

    y = mv2block_forward(x, params, stride=stride, expansion=expansion)
    y = jax.block_until_ready(y)

    y_ref = ref_forward(x, params, stride, expansion)
    assert y.shape == (N, oup, H, W)
    # bf16 MXU operands (f32 accumulation, f32 residual/BN/dw path) vs. the f32
    # reference -> tolerance loosened accordingly.
    assert bool(jnp.allclose(y, y_ref, atol=5e-2, rtol=5e-2)), "mismatch vs reference"

    print("KERNEL_OK")
</pallas_src>

<mosaic_0001>
module attributes {stable_mosaic.version = 11 : i64} {
  func.func @_mv2_fused_kernel(%arg0: i32, %arg1: memref<1x16x16x8xf32, #tpu.memory_space<vmem>>, %arg2: memref<8x128xbf16, #tpu.memory_space<vmem>>, %arg3: memref<1x128xf32, #tpu.memory_space<vmem>>, %arg4: memref<3x3x128xf32, #tpu.memory_space<vmem>>, %arg5: memref<1x128xf32, #tpu.memory_space<vmem>>, %arg6: memref<128x128xbf16, #tpu.memory_space<vmem>>, %arg7: memref<1x128xf32, #tpu.memory_space<vmem>>, %arg8: memref<8x128xf32, #tpu.memory_space<vmem>>, %arg9: memref<1x16x16x128xf32, #tpu.memory_space<vmem>>, %arg10: memref<18x25x128xf32, #tpu.memory_space<vmem>>) attributes {dimension_semantics = [#tpu.dimension_semantics<parallel>], iteration_bounds = array<i64: 2>, scalar_prefetch = 0 : i64, scratch_operands = 1 : i64, tpu.core_type = #tpu.core_type<tc>, window_params = [{transform_indices = @transform_0, window_bounds = array<i64: 1, 16, 16, 8>}, {pipeline_mode = #tpu.pipeline_mode<synchronous>, transform_indices = @transform_1, window_bounds = array<i64: 8, 128>}, {pipeline_mode = #tpu.pipeline_mode<synchronous>, transform_indices = @transform_2, window_bounds = array<i64: 1, 128>}, {pipeline_mode = #tpu.pipeline_mode<synchronous>, transform_indices = @transform_3, window_bounds = array<i64: 3, 3, 128>}, {pipeline_mode = #tpu.pipeline_mode<synchronous>, transform_indices = @transform_4, window_bounds = array<i64: 1, 128>}, {pipeline_mode = #tpu.pipeline_mode<synchronous>, transform_indices = @transform_5, window_bounds = array<i64: 128, 128>}, {pipeline_mode = #tpu.pipeline_mode<synchronous>, transform_indices = @transform_6, window_bounds = array<i64: 1, 128>}, {pipeline_mode = #tpu.pipeline_mode<synchronous>, transform_indices = @transform_7, window_bounds = array<i64: 8, 128>}, {transform_indices = @transform_8, window_bounds = array<i64: 1, 16, 16, 128>}]} {
    %c0 = arith.constant 0 : index
    %c0_0 = arith.constant 0 : index
    %c0_1 = arith.constant 0 : index
    %c0_2 = arith.constant 0 : index
    %0 = vector.load %arg1[%c0, %c0_0, %c0_1, %c0_2] : memref<1x16x16x8xf32, #tpu.memory_space<vmem>>, vector<1x16x16x8xf32>
    %1 = vector.shape_cast %0 : vector<1x16x16x8xf32> to vector<16x16x8xf32>
    %2 = vector.shape_cast %1 : vector<16x16x8xf32> to vector<256x8xf32>
    %3 = arith.truncf %2 : vector<256x8xf32> to vector<256x8xbf16>
    %c0_3 = arith.constant 0 : index
    %c0_4 = arith.constant 0 : index
    %4 = vector.load %arg2[%c0_3, %c0_4] : memref<8x128xbf16, #tpu.memory_space<vmem>>, vector<8x128xbf16>
    %cst = arith.constant dense<0.000000e+00> : vector<256x128xf32>
    %5 = tpu.matmul %3, %4, %cst {dimension_numbers = #tpu.dot_dimension_numbers<[1], [0], [0], [1], [0, 0, 1, 1], [], []>} : vector<256x8xbf16>, vector<8x128xbf16>, vector<256x128xf32> -> vector<256x128xf32>
    %c0_5 = arith.constant 0 : index
    %c0_6 = arith.constant 0 : index
    %6 = vector.load %arg3[%c0_5, %c0_6] : memref<1x128xf32, #tpu.memory_space<vmem>>, vector<1x128xf32>
    %7 = vector.broadcast %6 : vector<1x128xf32> to vector<256x128xf32>
    %8 = arith.addf %5, %7 : vector<256x128xf32>
    %9 = arith.negf %8 : vector<256x128xf32>
    %10 = math.exp %9 : vector<256x128xf32>
    %cst_7 = arith.constant 1.000000e+00 : f32
    %11 = vector.broadcast %cst_7 : f32 to vector<256x128xf32>
    %12 = arith.addf %11, %10 : vector<256x128xf32>
    %13 = arith.divf %11, %12 : vector<256x128xf32>
    %14 = arith.mulf %8, %13 : vector<256x128xf32>
    %cst_8 = arith.constant 0.000000e+00 : f32
    %15 = vector.broadcast %cst_8 : f32 to vector<18x25x128xf32>
    %c0_9 = arith.constant 0 : index
    %c0_10 = arith.constant 0 : index
    %c0_11 = arith.constant 0 : index
    %16 = vector.load %arg10[%c0_9, %c0_10, %c0_11] : memref<18x25x128xf32, #tpu.memory_space<vmem>>, vector<18x25x128xf32>
    tpu.vector_store %arg10[%c0_9, %c0_10, %c0_11], %15 {strides = array<i32>} : memref<18x25x128xf32, #tpu.memory_space<vmem>>, vector<18x25x128xf32>,
    %17 = vector.shape_cast %14 : vector<256x128xf32> to vector<16x16x128xf32>
    %c1 = arith.constant 1 : index
    %c8 = arith.constant 8 : index
    %c0_12 = arith.constant 0 : index
    %18 = vector.load %arg10[%c1, %c8, %c0_12] : memref<18x25x128xf32, #tpu.memory_space<vmem>>, vector<16x16x128xf32>
    tpu.vector_store %arg10[%c1, %c8, %c0_12], %17 {strides = array<i32>} : memref<18x25x128xf32, #tpu.memory_space<vmem>>, vector<16x16x128xf32>,
    %c0_13 = arith.constant 0 : index
    %c0_14 = arith.constant 0 : index
    %c0_15 = arith.constant 0 : index
    %19 = vector.load %arg10[%c0_13, %c0_14, %c0_15] : memref<18x25x128xf32, #tpu.memory_space<vmem>>, vector<18x25x128xf32>
    %c0_16 = arith.constant 0 : index
    %c0_17 = arith.constant 0 : index
    %c0_18 = arith.constant 0 : index
    %20 = vector.load %arg4[%c0_16, %c0_17, %c0_18] : memref<3x3x128xf32, #tpu.memory_space<vmem>>, vector<3x3x128xf32>
    %cst_19 = arith.constant 0.000000e+00 : f32
    %21 = vector.broadcast %cst_19 : f32 to vector<16x16x128xf32>
    %22 = vector.extract_strided_slice %19 {offsets = [0, 7, 0], sizes = [18, 16, 128], strides = [1, 1, 1]} : vector<18x25x128xf32> to vector<18x16x128xf32>
    %23 = vector.extract_strided_slice %22 {offsets = [0, 0, 0], sizes = [16, 16, 128], strides = [1, 1, 1]} : vector<18x16x128xf32> to vector<16x16x128xf32>
    %24 = vector.extract_strided_slice %20 {offsets = [0, 0, 0], sizes = [1, 1, 128], strides = [1, 1, 1]} : vector<3x3x128xf32> to vector<1x1x128xf32>
    %25 = vector.shape_cast %24 : vector<1x1x128xf32> to vector<128xf32>
    %26 = vector.shape_cast %25 : vector<128xf32> to vector<1x1x128xf32>
    %27 = vector.broadcast %26 : vector<1x1x128xf32> to vector<16x16x128xf32>
    %28 = arith.mulf %23, %27 : vector<16x16x128xf32>
    %29 = arith.addf %21, %28 : vector<16x16x128xf32>
    %30 = vector.extract_strided_slice %22 {offsets = [1, 0, 0], sizes = [16, 16, 128], strides = [1, 1, 1]} : vector<18x16x128xf32> to vector<16x16x128xf32>
    %31 = vector.extract_strided_slice %20 {offsets = [1, 0, 0], sizes = [1, 1, 128], strides = [1, 1, 1]} : vector<3x3x128xf32> to vector<1x1x128xf32>
    %32 = vector.shape_cast %31 : vector<1x1x128xf32> to vector<128xf32>
    %33 = vector.shape_cast %32 : vector<128xf32> to vector<1x1x128xf32>
    %34 = vector.broadcast %33 : vector<1x1x128xf32> to vector<16x16x128xf32>
    %35 = arith.mulf %30, %34 : vector<16x16x128xf32>
    %36 = arith.addf %29, %35 : vector<16x16x128xf32>
    %37 = vector.extract_strided_slice %22 {offsets = [2, 0, 0], sizes = [16, 16, 128], strides = [1, 1, 1]} : vector<18x16x128xf32> to vector<16x16x128xf32>
    %38 = vector.extract_strided_slice %20 {offsets = [2, 0, 0], sizes = [1, 1, 128], strides = [1, 1, 1]} : vector<3x3x128xf32> to vector<1x1x128xf32>
    %39 = vector.shape_cast %38 : vector<1x1x128xf32> to vector<128xf32>
    %40 = vector.shape_cast %39 : vector<128xf32> to vector<1x1x128xf32>
    %41 = vector.broadcast %40 : vector<1x1x128xf32> to vector<16x16x128xf32>
    %42 = arith.mulf %37, %41 : vector<16x16x128xf32>
    %43 = arith.addf %36, %42 : vector<16x16x128xf32>
    %44 = vector.extract_strided_slice %19 {offsets = [0, 8, 0], sizes = [18, 16, 128], strides = [1, 1, 1]} : vector<18x25x128xf32> to vector<18x16x128xf32>
    %45 = vector.extract_strided_slice %44 {offsets = [0, 0, 0], sizes = [16, 16, 128], strides = [1, 1, 1]} : vector<18x16x128xf32> to vector<16x16x128xf32>
    %46 = vector.extract_strided_slice %20 {offsets = [0, 1, 0], sizes = [1, 1, 128], strides = [1, 1, 1]} : vector<3x3x128xf32> to vector<1x1x128xf32>
    %47 = vector.shape_cast %46 : vector<1x1x128xf32> to vector<128xf32>
    %48 = vector.shape_cast %47 : vector<128xf32> to vector<1x1x128xf32>
    %49 = vector.broadcast %48 : vector<1x1x128xf32> to vector<16x16x128xf32>
    %50 = arith.mulf %45, %49 : vector<16x16x128xf32>
    %51 = arith.addf %43, %50 : vector<16x16x128xf32>
    %52 = vector.extract_strided_slice %44 {offsets = [1, 0, 0], sizes = [16, 16, 128], strides = [1, 1, 1]} : vector<18x16x128xf32> to vector<16x16x128xf32>
    %53 = vector.extract_strided_slice %20 {offsets = [1, 1, 0], sizes = [1, 1, 128], strides = [1, 1, 1]} : vector<3x3x128xf32> to vector<1x1x128xf32>
    %54 = vector.shape_cast %53 : vector<1x1x128xf32> to vector<128xf32>
    %55 = vector.shape_cast %54 : vector<128xf32> to vector<1x1x128xf32>
    %56 = vector.broadcast %55 : vector<1x1x128xf32> to vector<16x16x128xf32>
    %57 = arith.mulf %52, %56 : vector<16x16x128xf32>
    %58 = arith.addf %51, %57 : vector<16x16x128xf32>
    %59 = vector.extract_strided_slice %44 {offsets = [2, 0, 0], sizes = [16, 16, 128], strides = [1, 1, 1]} : vector<18x16x128xf32> to vector<16x16x128xf32>
    %60 = vector.extract_strided_slice %20 {offsets = [2, 1, 0], sizes = [1, 1, 128], strides = [1, 1, 1]} : vector<3x3x128xf32> to vector<1x1x128xf32>
    %61 = vector.shape_cast %60 : vector<1x1x128xf32> to vector<128xf32>
    %62 = vector.shape_cast %61 : vector<128xf32> to vector<1x1x128xf32>
    %63 = vector.broadcast %62 : vector<1x1x128xf32> to vector<16x16x128xf32>
    %64 = arith.mulf %59, %63 : vector<16x16x128xf32>
    %65 = arith.addf %58, %64 : vector<16x16x128xf32>
    %66 = vector.extract_strided_slice %19 {offsets = [0, 9, 0], sizes = [18, 16, 128], strides = [1, 1, 1]} : vector<18x25x128xf32> to vector<18x16x128xf32>
    %67 = vector.extract_strided_slice %66 {offsets = [0, 0, 0], sizes = [16, 16, 128], strides = [1, 1, 1]} : vector<18x16x128xf32> to vector<16x16x128xf32>
    %68 = vector.extract_strided_slice %20 {offsets = [0, 2, 0], sizes = [1, 1, 128], strides = [1, 1, 1]} : vector<3x3x128xf32> to vector<1x1x128xf32>
    %69 = vector.shape_cast %68 : vector<1x1x128xf32> to vector<128xf32>
    %70 = vector.shape_cast %69 : vector<128xf32> to vector<1x1x128xf32>
    %71 = vector.broadcast %70 : vector<1x1x128xf32> to vector<16x16x128xf32>
    %72 = arith.mulf %67, %71 : vector<16x16x128xf32>
    %73 = arith.addf %65, %72 : vector<16x16x128xf32>
    %74 = vector.extract_strided_slice %66 {offsets = [1, 0, 0], sizes = [16, 16, 128], strides = [1, 1, 1]} : vector<18x16x128xf32> to vector<16x16x128xf32>
    %75 = vector.extract_strided_slice %20 {offsets = [1, 2, 0], sizes = [1, 1, 128], strides = [1, 1, 1]} : vector<3x3x128xf32> to vector<1x1x128xf32>
    %76 = vector.shape_cast %75 : vector<1x1x128xf32> to vector<128xf32>
    %77 = vector.shape_cast %76 : vector<128xf32> to vector<1x1x128xf32>
    %78 = vector.broadcast %77 : vector<1x1x128xf32> to vector<16x16x128xf32>
    %79 = arith.mulf %74, %78 : vector<16x16x128xf32>
    %80 = arith.addf %73, %79 : vector<16x16x128xf32>
    %81 = vector.extract_strided_slice %66 {offsets = [2, 0, 0], sizes = [16, 16, 128], strides = [1, 1, 1]} : vector<18x16x128xf32> to vector<16x16x128xf32>
    %82 = vector.extract_strided_slice %20 {offsets = [2, 2, 0], sizes = [1, 1, 128], strides = [1, 1, 1]} : vector<3x3x128xf32> to vector<1x1x128xf32>
    %83 = vector.shape_cast %82 : vector<1x1x128xf32> to vector<128xf32>
    %84 = vector.shape_cast %83 : vector<128xf32> to vector<1x1x128xf32>
    %85 = vector.broadcast %84 : vector<1x1x128xf32> to vector<16x16x128xf32>
    %86 = arith.mulf %81, %85 : vector<16x16x128xf32>
    %87 = arith.addf %80, %86 : vector<16x16x128xf32>
    %c0_20 = arith.constant 0 : index
    %c0_21 = arith.constant 0 : index
    %88 = vector.load %arg5[%c0_20, %c0_21] : memref<1x128xf32, #tpu.memory_space<vmem>>, vector<1x128xf32>
    %89 = vector.shape_cast %88 : vector<1x128xf32> to vector<1x1x128xf32>
    %90 = vector.broadcast %89 : vector<1x1x128xf32> to vector<16x16x128xf32>
    %91 = arith.addf %87, %90 : vector<16x16x128xf32>
    %92 = arith.negf %91 : vector<16x16x128xf32>
    %93 = math.exp %92 : vector<16x16x128xf32>
    %cst_22 = arith.constant 1.000000e+00 : f32
    %94 = vector.broadcast %cst_22 : f32 to vector<16x16x128xf32>
    %95 = arith.addf %94, %93 : vector<16x16x128xf32>
    %96 = arith.divf %94, %95 : vector<16x16x128xf32>
    %97 = arith.mulf %91, %96 : vector<16x16x128xf32>
    %98 = vector.shape_cast %97 : vector<16x16x128xf32> to vector<256x128xf32>
    %99 = arith.truncf %98 : vector<256x128xf32> to vector<256x128xbf16>
    %c0_23 = arith.constant 0 : index
    %c0_24 = arith.constant 0 : index
    %100 = vector.load %arg6[%c0_23, %c0_24] : memref<128x128xbf16, #tpu.memory_space<vmem>>, vector<128x128xbf16>
    %cst_25 = arith.constant dense<0.000000e+00> : vector<256x128xf32>
    %101 = tpu.matmul %99, %100, %cst_25 {dimension_numbers = #tpu.dot_dimension_numbers<[1], [0], [0], [1], [0, 0, 1, 1], [], []>} : vector<256x128xbf16>, vector<128x128xbf16>, vector<256x128xf32> -> vector<256x128xf32>
    %c0_26 = arith.constant 0 : index
    %c0_27 = arith.constant 0 : index
    %102 = vector.load %arg7[%c0_26, %c0_27] : memref<1x128xf32, #tpu.memory_space<vmem>>, vector<1x128xf32>
    %103 = vector.broadcast %102 : vector<1x128xf32> to vector<256x128xf32>
    %104 = arith.addf %101, %103 : vector<256x128xf32>
    %c0_28 = arith.constant 0 : index
    %c0_29 = arith.constant 0 : index
    %105 = vector.load %arg8[%c0_28, %c0_29] : memref<8x128xf32, #tpu.memory_space<vmem>>, vector<8x128xf32>
    %cst_30 = arith.constant dense<0.000000e+00> : vector<256x128xf32>
    %106 = tpu.matmul %2, %105, %cst_30 {dimension_numbers = #tpu.dot_dimension_numbers<[1], [0], [0], [1], [0, 0, 1, 1], [], []>} : vector<256x8xf32>, vector<8x128xf32>, vector<256x128xf32> -> vector<256x128xf32>
    %107 = arith.addf %104, %106 : vector<256x128xf32>
    %108 = vector.shape_cast %107 : vector<256x128xf32> to vector<16x16x128xf32>
    %c0_31 = arith.constant 0 : index
    %c0_32 = arith.constant 0 : index
    %c0_33 = arith.constant 0 : index
    %c0_34 = arith.constant 0 : index
    %109 = vector.load %arg9[%c0_31, %c0_32, %c0_33, %c0_34] : memref<1x16x16x128xf32, #tpu.memory_space<vmem>>, vector<1x16x16x128xf32>
    %110 = vector.shape_cast %109 : vector<1x16x16x128xf32> to vector<16x16x128xf32>
    %111 = vector.shape_cast %108 : vector<16x16x128xf32> to vector<1x16x16x128xf32>
    tpu.vector_store %arg9[%c0_31, %c0_32, %c0_33, %c0_34], %111 {strides = array<i32>} : memref<1x16x16x128xf32, #tpu.memory_space<vmem>>, vector<1x16x16x128xf32>,
    return
  }
  func.func @transform_0(%arg0: i32) -> (i32, i32, i32, i32) {
    %c0_i32 = arith.constant 0 : i32
    %c0_i32_0 = arith.constant 0 : i32
    %c0_i32_1 = arith.constant 0 : i32
    %c0_i32_2 = arith.constant 0 : i32
    return %arg0, %c0_i32, %c0_i32_0, %c0_i32_1 : i32, i32, i32, i32
  }
  func.func @transform_1(%arg0: i32) -> (i32, i32) {
    %c0_i32 = arith.constant 0 : i32
    %c0_i32_0 = arith.constant 0 : i32
    %c0_i32_1 = arith.constant 0 : i32
    return %c0_i32, %c0_i32_0 : i32, i32
  }
  func.func @transform_2(%arg0: i32) -> (i32, i32) {
    %c0_i32 = arith.constant 0 : i32
    %c0_i32_0 = arith.constant 0 : i32
    %c0_i32_1 = arith.constant 0 : i32
    return %c0_i32, %c0_i32_0 : i32, i32
  }
  func.func @transform_3(%arg0: i32) -> (i32, i32, i32) {
    %c0_i32 = arith.constant 0 : i32
    %c0_i32_0 = arith.constant 0 : i32
    %c0_i32_1 = arith.constant 0 : i32
    %c0_i32_2 = arith.constant 0 : i32
    return %c0_i32, %c0_i32_0, %c0_i32_1 : i32, i32, i32
  }
  func.func @transform_4(%arg0: i32) -> (i32, i32) {
    %c0_i32 = arith.constant 0 : i32
    %c0_i32_0 = arith.constant 0 : i32
    %c0_i32_1 = arith.constant 0 : i32
    return %c0_i32, %c0_i32_0 : i32, i32
  }
  func.func @transform_5(%arg0: i32) -> (i32, i32) {
    %c0_i32 = arith.constant 0 : i32
    %c0_i32_0 = arith.constant 0 : i32
    %c0_i32_1 = arith.constant 0 : i32
    return %c0_i32, %c0_i32_0 : i32, i32
  }
  func.func @transform_6(%arg0: i32) -> (i32, i32) {
    %c0_i32 = arith.constant 0 : i32
    %c0_i32_0 = arith.constant 0 : i32
    %c0_i32_1 = arith.constant 0 : i32
    return %c0_i32, %c0_i32_0 : i32, i32
  }
  func.func @transform_7(%arg0: i32) -> (i32, i32) {
    %c0_i32 = arith.constant 0 : i32
    %c0_i32_0 = arith.constant 0 : i32
    %c0_i32_1 = arith.constant 0 : i32
    return %c0_i32, %c0_i32_0 : i32, i32
  }
  func.func @transform_8(%arg0: i32) -> (i32, i32, i32, i32) {
    %c0_i32 = arith.constant 0 : i32
    %c0_i32_0 = arith.constant 0 : i32
    %c0_i32_1 = arith.constant 0 : i32
    %c0_i32_2 = arith.constant 0 : i32
    return %arg0, %c0_i32, %c0_i32_0, %c0_i32_1 : i32, i32, i32, i32
  }
}

</mosaic_0001>

<llo_original>
// kernel: tpu_custom_call.1
$region0: #{tpu_custom_call.1}
  #allocation0 [shape = 'u32[]', space=smem, size = 0x4, offset = 0x4, fixed_abs, tag = 'smem constant byte address 0x4 - core index']
  #allocation1 [shape = 'u32[144,128]{1,0:T(1,128)}', space=vmem, size = 0x12000, scoped, tag = 'internal scratch']
  #allocation2 [shape = 'f32[18,25,128]{2,1,0:T(8,128)}', space=vmem, size = 0x48000, scoped, tag = 'scratch operand']
  %s0 = inlined_call_operand.vmem [shape: f32[2,16,16,8], index: 0, kind: input, shape index: {}]
  %s1 = inlined_call_operand.vmem [shape: bf16[8,128], index: 1, kind: input, shape index: {}]
  %s2 = inlined_call_operand.vmem [shape: f32[1,128], index: 2, kind: input, shape index: {}]
  %s3 = inlined_call_operand.vmem [shape: f32[3,3,128], index: 3, kind: input, shape index: {}]
  %s4 = inlined_call_operand.vmem [shape: f32[1,128], index: 4, kind: input, shape index: {}]
  %s5 = inlined_call_operand.vmem [shape: bf16[128,128], index: 5, kind: input, shape index: {}]
  %s6 = inlined_call_operand.vmem [shape: f32[1,128], index: 6, kind: input, shape index: {}]
  %s7 = inlined_call_operand.vmem [shape: f32[8,128], index: 7, kind: input, shape index: {}]
  %s8 = inlined_call_operand.hbm [shape: f32[2,16,16,128], index: 8, kind: output, shape index: {}]
  %s9 = sld [smem:[#allocation0]]
  $region65: #{tpu_custom_call.1} parent=0
    _
  %s11 = ssub.s32 1, %s9
  %s12 = scalar_select 0, %s11, %s9
  $region1: #{tpu_custom_call.1} parent=0
    #allocation3 [shape = 'u8[262144]{0}', space=vmem, size = 0x40000, scoped, tag = 'output window, operand 0']
    #allocation4 [shape = 's32[2]{0}', space=sflag, size = 0x8, scoped, tag = 'scoped memory for tpu_custom_call.1']
    %13 = vsyncpa [#allocation4], 0
    %s14 = scalar_lea.sflag [#allocation4], 1
    %15 = vsyncpa %s14, 0
    loop: start=0, step=1, limit=4
    $region2: #{tpu_custom_call.1} parent=1 // loop_pre_header
      _
    $region3: #{tpu_custom_call.1} parent=1 // loop_header
      %s17 = sphi 0, %s21
      %p18 = scmp.ge.s32.totalorder %s17, 4
      %s27 = sphi 0, %s29
      %s30 = sphi 0, %s27
      %s31 = sphi 0, %s30
      %s47 = sphi 0, %s31
      %s51 = sphi 0, %s51
      %s53 = sphi 0, %s51
      %s54 = sphi 0, %s53
      %s68 = sphi 0, %s54
      %s72 = sphi 0, %s72
      %s74 = sphi 0, %s72
      %s75 = sphi 0, %s74
      %s89 = sphi 0, %s75
      %s93 = sphi 0, %s93
      %s95 = sphi 0, %s93
      %s96 = sphi 0, %s95
      %s110 = sphi 0, %s96
      %s114 = sphi 0, %s114
      %s116 = sphi 0, %s114
      %s117 = sphi 0, %s116
      %s131 = sphi 0, %s117
      %s135 = sphi 0, %s135
      %s137 = sphi 0, %s135
      %s138 = sphi 0, %s137
      %s152 = sphi 0, %s138
      %s156 = sphi 0, %s156
      %s158 = sphi 0, %s156
      %s159 = sphi 0, %s158
      %s173 = sphi 0, %s159
      %s177 = sphi 0, %s177
      %s179 = sphi 0, %s177
      %s180 = sphi 0, %s179
      %s194 = sphi 0, %s180
      %s200 = sphi 0, %s202
      %s203 = sphi 0, %s200
      %s204 = sphi 0, %s203
      %s220 = sphi 0, %s204
    $region4: #{tpu_custom_call.1} parent=1 // loop_header_branch
      %20 = sbr.rel (%p18) target = $region8
    $region5: #{tpu_custom_call.1} parent=1 // loop_body
      %s22 = ssub.s32 %s17, 1
      %s23 = ssub.s32 %s17, 2
      %s24 = sadd.s32 %s17, 1
      %s25 = ssub.s32 %s17, %s24
      %p26 = scmp.eq.s32.totalorder %s25, 0
      %s28 = sadd.s32 %s27, 1
      %s29 = scalar_select %p26, %s27, %s28
      %p32 = pneg %p26
      %p33 = scmp.eq.s32.totalorder %s17, 1
      %p34 = por %p32, %p33
      %p35 = scmp.ne.s32.totalorder %s27, %s30
      %p36 = scmp.eq.s32.totalorder %s17, 0
      %p37 = por %p35, %p36
      %p38 = scmp.ne.s32.totalorder %s27, %s30
      %p39 = scmp.eq.s32.totalorder %s22, 1
      %p40 = por %p38, %p39
      %p41 = scmp.ne.s32.totalorder %s30, %s31
      %p42 = scmp.eq.s32.totalorder %s22, 0
      %p43 = por %p41, %p42
      %p44 = scmp.ne.s32.totalorder %s30, %s31
      %p45 = scmp.eq.s32.totalorder %s23, 1
      %p46 = por %p44, %p45
      %p48 = scmp.ne.s32.totalorder %s31, %s47
      %p49 = scmp.eq.s32.totalorder %s23, 0
      %p50 = por %p48, %p49
      %s52 = sadd.s32 %s51, 1
      %p55 = scmp.eq.s32.totalorder %s17, 1
      %p56 = scmp.ne.s32.totalorder %s51, %s53
      %p57 = scmp.eq.s32.totalorder %s17, 0
      %p58 = por %p56, %p57
      %p59 = scmp.ne.s32.totalorder %s51, %s53
      %p60 = scmp.eq.s32.totalorder %s22, 1
      %p61 = por %p59, %p60
      %p62 = scmp.ne.s32.totalorder %s53, %s54
      %p63 = scmp.eq.s32.totalorder %s22, 0
      %p64 = por %p62, %p63
      %p65 = scmp.ne.s32.totalorder %s53, %s54
      %p66 = scmp.eq.s32.totalorder %s23, 1
      %p67 = por %p65, %p66
      %p69 = scmp.ne.s32.totalorder %s54, %s68
      %p70 = scmp.eq.s32.totalorder %s23, 0
      %p71 = por %p69, %p70
      %s73 = sadd.s32 %s72, 1
      %p76 = scmp.eq.s32.totalorder %s17, 1
      %p77 = scmp.ne.s32.totalorder %s72, %s74
      %p78 = scmp.eq.s32.totalorder %s17, 0
      %p79 = por %p77, %p78
      %p80 = scmp.ne.s32.totalorder %s72, %s74
      %p81 = scmp.eq.s32.totalorder %s22, 1
      %p82 = por %p80, %p81
      %p83 = scmp.ne.s32.totalorder %s74, %s75
      %p84 = scmp.eq.s32.totalorder %s22, 0
      %p85 = por %p83, %p84
      %p86 = scmp.ne.s32.totalorder %s74, %s75
      %p87 = scmp.eq.s32.totalorder %s23, 1
      %p88 = por %p86, %p87
      %p90 = scmp.ne.s32.totalorder %s75, %s89
      %p91 = scmp.eq.s32.totalorder %s23, 0
      %p92 = por %p90, %p91
      %s94 = sadd.s32 %s93, 1
      %p97 = scmp.eq.s32.totalorder %s17, 1
      %p98 = scmp.ne.s32.totalorder %s93, %s95
      %p99 = scmp.eq.s32.totalorder %s17, 0
      %p100 = por %p98, %p99
      %p101 = scmp.ne.s32.totalorder %s93, %s95
      %p102 = scmp.eq.s32.totalorder %s22, 1
      %p103 = por %p101, %p102
      %p104 = scmp.ne.s32.totalorder %s95, %s96
      %p105 = scmp.eq.s32.totalorder %s22, 0
      %p106 = por %p104, %p105
      %p107 = scmp.ne.s32.totalorder %s95, %s96
      %p108 = scmp.eq.s32.totalorder %s23, 1
      %p109 = por %p107, %p108
      %p111 = scmp.ne.s32.totalorder %s96, %s110
      %p112 = scmp.eq.s32.totalorder %s23, 0
      %p113 = por %p111, %p112
      %s115 = sadd.s32 %s114, 1
      %p118 = scmp.eq.s32.totalorder %s17, 1
      %p119 = scmp.ne.s32.totalorder %s114, %s116
      %p120 = scmp.eq.s32.totalorder %s17, 0
      %p121 = por %p119, %p120
      %p122 = scmp.ne.s32.totalorder %s114, %s116
      %p123 = scmp.eq.s32.totalorder %s22, 1
      %p124 = por %p122, %p123
      %p125 = scmp.ne.s32.totalorder %s116, %s117
      %p126 = scmp.eq.s32.totalorder %s22, 0
      %p127 = por %p125, %p126
      %p128 = scmp.ne.s32.totalorder %s116, %s117
      %p129 = scmp.eq.s32.totalorder %s23, 1
      %p130 = por %p128, %p129
      %p132 = scmp.ne.s32.totalorder %s117, %s131
      %p133 = scmp.eq.s32.totalorder %s23, 0
      %p134 = por %p132, %p133
      %s136 = sadd.s32 %s135, 1
      %p139 = scmp.eq.s32.totalorder %s17, 1
      %p140 = scmp.ne.s32.totalorder %s135, %s137
      %p141 = scmp.eq.s32.totalorder %s17, 0
      %p142 = por %p140, %p141
      %p143 = scmp.ne.s32.totalorder %s135, %s137
      %p144 = scmp.eq.s32.totalorder %s22, 1
      %p145 = por %p143, %p144
      %p146 = scmp.ne.s32.totalorder %s137, %s138
      %p147 = scmp.eq.s32.totalorder %s22, 0
      %p148 = por %p146, %p147
      %p149 = scmp.ne.s32.totalorder %s137, %s138
      %p150 = scmp.eq.s32.totalorder %s23, 1
      %p151 = por %p149, %p150
      %p153 = scmp.ne.s32.totalorder %s138, %s152
      %p154 = scmp.eq.s32.totalorder %s23, 0
      %p155 = por %p153, %p154
      %s157 = sadd.s32 %s156, 1
      %p160 = scmp.eq.s32.totalorder %s17, 1
      %p161 = scmp.ne.s32.totalorder %s156, %s158
      %p162 = scmp.eq.s32.totalorder %s17, 0
      %p163 = por %p161, %p162
      %p164 = scmp.ne.s32.totalorder %s156, %s158
      %p165 = scmp.eq.s32.totalorder %s22, 1
      %p166 = por %p164, %p165
      %p167 = scmp.ne.s32.totalorder %s158, %s159
      %p168 = scmp.eq.s32.totalorder %s22, 0
      %p169 = por %p167, %p168
      %p170 = scmp.ne.s32.totalorder %s158, %s159
      %p171 = scmp.eq.s32.totalorder %s23, 1
      %p172 = por %p170, %p171
      %p174 = scmp.ne.s32.totalorder %s159, %s173
      %p175 = scmp.eq.s32.totalorder %s23, 0
      %p176 = por %p174, %p175
      %s178 = sadd.s32 %s177, 1
      %p181 = scmp.eq.s32.totalorder %s17, 1
      %p182 = scmp.ne.s32.totalorder %s177, %s179
      %p183 = scmp.eq.s32.totalorder %s17, 0
      %p184 = por %p182, %p183
      %p185 = scmp.ne.s32.totalorder %s177, %s179
      %p186 = scmp.eq.s32.totalorder %s22, 1
      %p187 = por %p185, %p186
      %p188 = scmp.ne.s32.totalorder %s179, %s180
      %p189 = scmp.eq.s32.totalorder %s22, 0
      %p190 = por %p188, %p189
      %p191 = scmp.ne.s32.totalorder %s179, %s180
      %p192 = scmp.eq.s32.totalorder %s23, 1
      %p193 = por %p191, %p192
      %p195 = scmp.ne.s32.totalorder %s180, %s194
      %p196 = scmp.eq.s32.totalorder %s23, 0
      %p197 = por %p195, %p196
      %s198 = ssub.s32 %s17, %s24
      %p199 = scmp.eq.s32.totalorder %s198, 0
      %s201 = sadd.s32 %s200, 1
      %s202 = scalar_select %p199, %s200, %s201
      %p205 = pneg %p199
      %p206 = scmp.eq.s32.totalorder %s17, 1
      %p207 = por %p205, %p206
      %p208 = scmp.ne.s32.totalorder %s200, %s203
      %p209 = scmp.eq.s32.totalorder %s17, 0
      %p210 = por %p208, %p209
      %p211 = scmp.ne.s32.totalorder %s200, %s203
      %p212 = scmp.eq.s32.totalorder %s22, 1
      %p213 = por %p211, %p212
      %p214 = scmp.ne.s32.totalorder %s203, %s204
      %p215 = scmp.eq.s32.totalorder %s22, 0
      %p216 = por %p214, %p215
      %p217 = scmp.ne.s32.totalorder %s203, %s204
      %p218 = scmp.eq.s32.totalorder %s23, 1
      %p219 = por %p217, %p218
      %p221 = scmp.ne.s32.totalorder %s204, %s220
      %p222 = scmp.eq.s32.totalorder %s23, 0
      %p223 = por %p221, %p222
      %p224 = scmp.le.s32.totalorder 1, %s17
      %p225 = scmp.lt.s32.totalorder %s17, 3
      %p226 = pnand %p224, %p225
      %p227 = pneg %p226
      // Predicated region
      $region9: #{tpu_custom_call.1} parent=5 // pred_check
        _
      $region10: #{tpu_custom_call.1} parent=5 // pred_check_branch
        %229 = sbr.rel (%p226) target = $region12
      $region11: #{tpu_custom_call.1} parent=5 // pred_region
        %s230 = ssub.s32 %s17, 1
        // Predicated region
        $region13: #{tpu_custom_call.1} parent=11 // pred_check
          %p231 = pneg %p64
        $region14: #{tpu_custom_call.1} parent=11 // pred_check_branch
          %233 = sbr.rel (%p231) target = $region16
        $region15: #{tpu_custom_call.1} parent=11 // pred_region
          _
        $region16: #{tpu_custom_call.1} parent=11 // pred_fallthru
          _
        // Predicated region
        $region17: #{tpu_custom_call.1} parent=11 // pred_check
          %p234 = pneg %p85
        $region18: #{tpu_custom_call.1} parent=11 // pred_check_branch
          %236 = sbr.rel (%p234) target = $region20
        $region19: #{tpu_custom_call.1} parent=11 // pred_region
          _
        $region20: #{tpu_custom_call.1} parent=11 // pred_fallthru
          _
        // Predicated region
        $region21: #{tpu_custom_call.1} parent=11 // pred_check
          %p237 = pneg %p106
        $region22: #{tpu_custom_call.1} parent=11 // pred_check_branch
          %239 = sbr.rel (%p237) target = $region24
        $region23: #{tpu_custom_call.1} parent=11 // pred_region
          _
        $region24: #{tpu_custom_call.1} parent=11 // pred_fallthru
          _
        // Predicated region
        $region25: #{tpu_custom_call.1} parent=11 // pred_check
          %p240 = pneg %p127
        $region26: #{tpu_custom_call.1} parent=11 // pred_check_branch
          %242 = sbr.rel (%p240) target = $region28
        $region27: #{tpu_custom_call.1} parent=11 // pred_region
          _
        $region28: #{tpu_custom_call.1} parent=11 // pred_fallthru
          _
        // Predicated region
        $region29: #{tpu_custom_call.1} parent=11 // pred_check
          %p243 = pneg %p148
        $region30: #{tpu_custom_call.1} parent=11 // pred_check_branch
          %245 = sbr.rel (%p243) target = $region32
        $region31: #{tpu_custom_call.1} parent=11 // pred_region
          _
        $region32: #{tpu_custom_call.1} parent=11 // pred_fallthru
          _
        // Predicated region
        $region33: #{tpu_custom_call.1} parent=11 // pred_check
          %p246 = pneg %p169
        $region34: #{tpu_custom_call.1} parent=11 // pred_check_branch
          %248 = sbr.rel (%p246) target = $region36
        $region35: #{tpu_custom_call.1} parent=11 // pred_region
          _
        $region36: #{tpu_custom_call.1} parent=11 // pred_fallthru
          _
        // Predicated region
        $region37: #{tpu_custom_call.1} parent=11 // pred_check
          %p249 = pneg %p190
        $region38: #{tpu_custom_call.1} parent=11 // pred_check_branch
          %251 = sbr.rel (%p249) target = $region40
        $region39: #{tpu_custom_call.1} parent=11 // pred_region
          _
        $region40: #{tpu_custom_call.1} parent=11 // pred_fallthru
          _
      $region12: #{tpu_custom_call.1} parent=5 // pred_fallthru
        _
      %p252 = scmp.lt.s32.totalorder %s17, 2
      // Predicated region
      $region41: #{tpu_custom_call.1} parent=5 // pred_check
        %p253 = pneg %p252
      $region42: #{tpu_custom_call.1} parent=5 // pred_check_branch
        %255 = sbr.rel (%p253) target = $region44
      $region43: #{tpu_custom_call.1} parent=5 // pred_region
        // Predicated region
        $region45: #{tpu_custom_call.1} parent=43 // pred_check
          %p256 = pneg %p37
        $region46: #{tpu_custom_call.1} parent=43 // pred_check_branch
          %258 = sbr.rel (%p256) target = $region48
        $region47: #{tpu_custom_call.1} parent=43 // pred_region
          %p259 = scmp.lt.s32.totalorder %s17, 1
          %s260 = scalar_select %p259, %s17, 1
          %s261 = smul.addr %s260, 32
          %s262 = smul.addr %s261, 8
          %s263 = scalar_lea.vmem %s0, %s262
        $region48: #{tpu_custom_call.1} parent=43 // pred_fallthru
          _
      $region44: #{tpu_custom_call.1} parent=5 // pred_fallthru
        _
      %p264 = scmp.le.s32.totalorder 1, %s17
      %p265 = scmp.lt.s32.totalorder %s17, 3
      %p266 = pnand %p264, %p265
      %p267 = pneg %p266
      // Predicated region
      $region49: #{tpu_custom_call.1} parent=5 // pred_check
        _
      $region50: #{tpu_custom_call.1} parent=5 // pred_check_branch
        %269 = sbr.rel (%p266) target = $region52
      $region51: #{tpu_custom_call.1} parent=5 // pred_region
        %s270 = ssub.s32 %s17, 1
        %p271 = scmp.lt.s32.totalorder %s22, 1
        %s272 = scalar_select %p271, %s22, 1
        %s273 = smul.addr %s272, 32
        %s274 = smul.addr %s273, 8
        %s275 = scalar_lea.vmem %s0, %s274
        %p276 = pneg %p43
        %p277 = pneg %p40
        %p278 = pneg %p64
        %p279 = pneg %p61
        %p280 = pneg %p85
        %p281 = pneg %p82
        %p282 = pneg %p106
        %p283 = pneg %p103
        %p284 = pneg %p127
        %p285 = pneg %p124
        %p286 = pneg %p148
        %p287 = pneg %p145
        %p288 = pneg %p169
        %p289 = pneg %p166
        %p290 = pneg %p190
        %p291 = pneg %p187
        %p292 = pneg %p216
        %p293 = pneg %p213
        %s294 = sand.u32 %s203, 1
        %s295 = scalar_lea.sflag [#allocation4], %s294
        %s296 = sand.u32 %s203, 1
        %s297 = smul.addr %s296, 256
        %s298 = scalar_lea.vmem [#allocation3], %s297
        %p299 = scmp.lt.s32.totalorder %s22, 1
        %s300 = scalar_select %p299, %s22, 1
        %s301 = smul.addr %s300, 32
        %s302 = smul.addr %s301, 8
        %s303 = scalar_lea.vmem %s0, %s302
        %v305 = vld [vmem:[%s303] sm:$0xff]
        %v306 = vld [vmem:[%s303 + $0x8] sm:$0xff]
        %v307 = vld [vmem:[%s303 + $0x10] sm:$0xff]
        %v308 = vld [vmem:[%s303 + $0x18] sm:$0xff]
        %v309 = vld [vmem:[%s303 + $0x20] sm:$0xff]
        %v310 = vld [vmem:[%s303 + $0x28] sm:$0xff]
        %v311 = vld [vmem:[%s303 + $0x30] sm:$0xff]
        %v312 = vld [vmem:[%s303 + $0x38] sm:$0xff]
        %v313 = vld [vmem:[%s303 + $0x40] sm:$0xff]
        %v314 = vld [vmem:[%s303 + $0x48] sm:$0xff]
        %v315 = vld [vmem:[%s303 + $0x50] sm:$0xff]
        %v316 = vld [vmem:[%s303 + $0x58] sm:$0xff]
        %v317 = vld [vmem:[%s303 + $0x60] sm:$0xff]
        %v318 = vld [vmem:[%s303 + $0x68] sm:$0xff]
        %v319 = vld [vmem:[%s303 + $0x70] sm:$0xff]
        %v320 = vld [vmem:[%s303 + $0x78] sm:$0xff]
        %v321 = vld [vmem:[%s303 + $0x80] sm:$0xff]
        %v322 = vld [vmem:[%s303 + $0x88] sm:$0xff]
        %v323 = vld [vmem:[%s303 + $0x90] sm:$0xff]
        %v324 = vld [vmem:[%s303 + $0x98] sm:$0xff]
        %v325 = vld [vmem:[%s303 + $0xa0] sm:$0xff]
        %v326 = vld [vmem:[%s303 + $0xa8] sm:$0xff]
        %v327 = vld [vmem:[%s303 + $0xb0] sm:$0xff]
        %v328 = vld [vmem:[%s303 + $0xb8] sm:$0xff]
        %v329 = vld [vmem:[%s303 + $0xc0] sm:$0xff]
        %v330 = vld [vmem:[%s303 + $0xc8] sm:$0xff]
        %v331 = vld [vmem:[%s303 + $0xd0] sm:$0xff]
        %v332 = vld [vmem:[%s303 + $0xd8] sm:$0xff]
        %v333 = vld [vmem:[%s303 + $0xe0] sm:$0xff]
        %v334 = vld [vmem:[%s303 + $0xe8] sm:$0xff]
        %v335 = vld [vmem:[%s303 + $0xf0] sm:$0xff]
        %v336 = vld [vmem:[%s303 + $0xf8] sm:$0xff]
        %v337 = vpack.c.bf16 %v306, %v305
        %v338 = vpack.c.bf16 %v308, %v307
        %v339 = vpack.c.bf16 %v310, %v309
        %v340 = vpack.c.bf16 %v312, %v311
        %v341 = vpack.c.bf16 %v314, %v313
        %v342 = vpack.c.bf16 %v316, %v315
        %v343 = vpack.c.bf16 %v318, %v317
        %v344 = vpack.c.bf16 %v320, %v319
        %v345 = vpack.c.bf16 %v322, %v321
        %v346 = vpack.c.bf16 %v324, %v323
        %v347 = vpack.c.bf16 %v326, %v325
        %v348 = vpack.c.bf16 %v328, %v327
        %v349 = vpack.c.bf16 %v330, %v329
        %v350 = vpack.c.bf16 %v332, %v331
        %v351 = vpack.c.bf16 %v334, %v333
        %v352 = vpack.c.bf16 %v336, %v335
        %v353 = vld [vmem:[%s1] sm:$0xf]
        %v354 = vld [vmem:[%s2] sm:$0x1]
        %v356 = vlaneseq
        %v357 = vshrl.u32 %v356, 7
        %v358 = vsub.s32 0, %v357
        %v359 = vrot.slane %v354, %v358
        %vm361 = vcmask 64512
        %v363 = vsel %vm361, %v337, 0
        %v366 = vsel %vm361, %v338, 0
        %v369 = vsel %vm361, %v339, 0
        %v372 = vsel %vm361, %v340, 0
        %v375 = vsel %vm361, %v341, 0
        %v378 = vsel %vm361, %v342, 0
        %v381 = vsel %vm361, %v343, 0
        %v384 = vsel %vm361, %v344, 0
        %v387 = vsel %vm361, %v345, 0
        %v390 = vsel %vm361, %v346, 0
        %v393 = vsel %vm361, %v347, 0
        %v396 = vsel %vm361, %v348, 0
        %v399 = vsel %vm361, %v349, 0
        %v402 = vsel %vm361, %v350, 0
        %v405 = vsel %vm361, %v351, 0
        %v408 = vsel %vm361, %v352, 0
        %vm410 = vcmask 1043456
        %v412 = vsel %vm410, %v353, 0
        %414 = vmatprep.subr.bf16.mxu0 0
        %415 = vmatpush1.bf16.msra.mxu0 %v412
        %416 = vmatprep.subr.bf16.mxu0 0
        %417 = vmatpush1.bf16.msra.mxu0 0
        %418 = vmatprep.subr.bf16.mxu0 0
        %419 = vmatpush1.bf16.msra.mxu0 0
        %420 = vmatprep.subr.bf16.mxu0 0
        %421 = vmatpush1.bf16.msra.mxu0 0
        %422 = vmatprep.subr.bf16.mxu0 0
        %423 = vmatpush1.bf16.msra.mxu0 0
        %424 = vmatprep.subr.bf16.mxu0 0
        %425 = vmatpush1.bf16.msra.mxu0 0
        %426 = vmatprep.subr.bf16.mxu0 0
        %427 = vmatpush1.bf16.msra.mxu0 0
        %428 = vmatprep.subr.bf16.mxu0 0
        %429 = vmatpush1.bf16.msra.mxu0 0
        %430 = vmatprep.subr.bf16.mxu0 0
        %431 = vmatpush1.bf16.msra.mxu0 0
        %432 = vmatprep.subr.bf16.mxu0 0
        %433 = vmatpush1.bf16.msra.mxu0 0
        %434 = vmatprep.subr.bf16.mxu0 0
        %435 = vmatpush1.bf16.msra.mxu0 0
        %436 = vmatprep.subr.bf16.mxu0 0
        %437 = vmatpush1.bf16.msra.mxu0 0
        %438 = vmatprep.subr.bf16.mxu0 0
        %439 = vmatpush1.bf16.msra.mxu0 0
        %440 = vmatprep.subr.bf16.mxu0 0
        %441 = vmatpush1.bf16.msra.mxu0 0
        %442 = vmatprep.subr.bf16.mxu0 0
        %443 = vmatpush1.bf16.msra.mxu0 0
        %444 = vmatprep.subr.bf16.mxu0 0
        %445 = vmatpush1.bf16.msra.mxu0 0
        %446 = vmatprep.mubr.bf16.mxu0 0
        %447 = vmatmul.mubr.bf16.gmra.mrb[0].mxu0 %v363
        %v448 = vpop.f32.mrb[0].mxu0
        %v449 = vadd.f32 %v359, %v448
        %v450 = vpop.f32.mrb[0].mxu0
        %v451 = vpop.f32.mrb[0].mxu0
        %v452 = vadd.f32 %v359, %v451
        %v453 = vpop.f32.mrb[0].mxu0
        %454 = vmatprep.mubr.bf16.mxu0 0
        %455 = vmatmul.mubr.bf16.gmra.mrb[0].mxu0 %v366
        %v456 = vpop.f32.mrb[0].mxu0
        %v457 = vadd.f32 %v359, %v456
        %v458 = vpop.f32.mrb[0].mxu0
        %v459 = vpop.f32.mrb[0].mxu0
        %v460 = vadd.f32 %v359, %v459
        %v461 = vpop.f32.mrb[0].mxu0
        %462 = vmatprep.mubr.bf16.mxu0 0
        %463 = vmatmul.mubr.bf16.gmra.mrb[0].mxu0 %v369
        %v464 = vpop.f32.mrb[0].mxu0
        %v465 = vadd.f32 %v359, %v464
        %v466 = vpop.f32.mrb[0].mxu0
        %v467 = vpop.f32.mrb[0].mxu0
        %v468 = vadd.f32 %v359, %v467
        %v469 = vpop.f32.mrb[0].mxu0
        %470 = vmatprep.mubr.bf16.mxu0 0
        %471 = vmatmul.mubr.bf16.gmra.mrb[0].mxu0 %v372
        %v472 = vpop.f32.mrb[0].mxu0
        %v473 = vadd.f32 %v359, %v472
        %v474 = vpop.f32.mrb[0].mxu0
        %v475 = vpop.f32.mrb[0].mxu0
        %v476 = vadd.f32 %v359, %v475
        %v477 = vpop.f32.mrb[0].mxu0
        %478 = vmatprep.mubr.bf16.mxu0 0
        %479 = vmatmul.mubr.bf16.gmra.mrb[0].mxu0 %v375
        %v480 = vpop.f32.mrb[0].mxu0
        %v481 = vadd.f32 %v359, %v480
        %v482 = vpop.f32.mrb[0].mxu0
        %v483 = vpop.f32.mrb[0].mxu0
        %v484 = vadd.f32 %v359, %v483
        %v485 = vpop.f32.mrb[0].mxu0
        %486 = vmatprep.mubr.bf16.mxu0 0
        %487 = vmatmul.mubr.bf16.gmra.mrb[0].mxu0 %v378
        %v488 = vpop.f32.mrb[0].mxu0
        %v489 = vadd.f32 %v359, %v488
        %v490 = vpop.f32.mrb[0].mxu0
        %v491 = vpop.f32.mrb[0].mxu0
        %v492 = vadd.f32 %v359, %v491
        %v493 = vpop.f32.mrb[0].mxu0
        %494 = vmatprep.mubr.bf16.mxu0 0
        %495 = vmatmul.mubr.bf16.gmra.mrb[0].mxu0 %v381
        %v496 = vpop.f32.mrb[0].mxu0
        %v497 = vadd.f32 %v359, %v496
        %v498 = vpop.f32.mrb[0].mxu0
        %v499 = vpop.f32.mrb[0].mxu0
        %v500 = vadd.f32 %v359, %v499
        %v501 = vpop.f32.mrb[0].mxu0
        %502 = vmatprep.mubr.bf16.mxu0 0
        %503 = vmatmul.mubr.bf16.gmra.mrb[0].mxu0 %v384
        %v504 = vpop.f32.mrb[0].mxu0
        %v505 = vadd.f32 %v359, %v504
        %v506 = vpop.f32.mrb[0].mxu0
        %v507 = vpop.f32.mrb[0].mxu0
        %v508 = vadd.f32 %v359, %v507
        %v509 = vpop.f32.mrb[0].mxu0
        %510 = vmatprep.mubr.bf16.mxu0 0
        %511 = vmatmul.mubr.bf16.gmra.mrb[0].mxu0 %v387
        %v512 = vpop.f32.mrb[0].mxu0
        %v513 = vadd.f32 %v359, %v512
        %v514 = vpop.f32.mrb[0].mxu0
        %v515 = vpop.f32.mrb[0].mxu0
        %v516 = vadd.f32 %v359, %v515
        %v517 = vpop.f32.mrb[0].mxu0
        %518 = vmatprep.mubr.bf16.mxu0 0
        %519 = vmatmul.mubr.bf16.gmra.mrb[0].mxu0 %v390
        %v520 = vpop.f32.mrb[0].mxu0
        %v521 = vadd.f32 %v359, %v520
        %v522 = vpop.f32.mrb[0].mxu0
        %v523 = vpop.f32.mrb[0].mxu0
        %v524 = vadd.f32 %v359, %v523
        %v525 = vpop.f32.mrb[0].mxu0
        %526 = vmatprep.mubr.bf16.mxu0 0
        %527 = vmatmul.mubr.bf16.gmra.mrb[0].mxu0 %v393
        %v528 = vpop.f32.mrb[0].mxu0
        %v529 = vadd.f32 %v359, %v528
        %v530 = vpop.f32.mrb[0].mxu0
        %v531 = vpop.f32.mrb[0].mxu0
        %v532 = vadd.f32 %v359, %v531
        %v533 = vpop.f32.mrb[0].mxu0
        %534 = vmatprep.mubr.bf16.mxu0 0
        %535 = vmatmul.mubr.bf16.gmra.mrb[0].mxu0 %v396
        %v536 = vpop.f32.mrb[0].mxu0
        %v537 = vadd.f32 %v359, %v536
        %v538 = vpop.f32.mrb[0].mxu0
        %v539 = vpop.f32.mrb[0].mxu0
        %v540 = vadd.f32 %v359, %v539
        %v541 = vpop.f32.mrb[0].mxu0
        %542 = vmatprep.mubr.bf16.mxu0 0
        %543 = vmatmul.mubr.bf16.gmra.mrb[0].mxu0 %v399
        %v544 = vpop.f32.mrb[0].mxu0
        %v545 = vadd.f32 %v359, %v544
        %v546 = vpop.f32.mrb[0].mxu0
        %v547 = vpop.f32.mrb[0].mxu0
        %v548 = vadd.f32 %v359, %v547
        %v549 = vpop.f32.mrb[0].mxu0
        %550 = vmatprep.mubr.bf16.mxu0 0
        %551 = vmatmul.mubr.bf16.gmra.mrb[0].mxu0 %v402
        %v552 = vpop.f32.mrb[0].mxu0
        %v553 = vadd.f32 %v359, %v552
        %v554 = vpop.f32.mrb[0].mxu0
        %v555 = vpop.f32.mrb[0].mxu0
        %v556 = vadd.f32 %v359, %v555
        %v557 = vpop.f32.mrb[0].mxu0
        %558 = vmatprep.mubr.bf16.mxu0 0
        %559 = vmatmul.mubr.bf16.gmra.mrb[0].mxu0 %v405
        %v560 = vpop.f32.mrb[0].mxu0
        %v561 = vadd.f32 %v359, %v560
        %v562 = vpop.f32.mrb[0].mxu0
        %v563 = vpop.f32.mrb[0].mxu0
        %v564 = vadd.f32 %v359, %v563
        %v565 = vpop.f32.mrb[0].mxu0
        %566 = vmatprep.mubr.bf16.mxu0 0
        %567 = vmatmul.mubr.bf16.gmra.mrb[0].mxu0 %v408
        %v568 = vpop.f32.mrb[0].mxu0
        %v569 = vadd.f32 %v359, %v568
        %v570 = vpop.f32.mrb[0].mxu0
        %v571 = vpop.f32.mrb[0].mxu0
        %v572 = vadd.f32 %v359, %v571
        %v573 = vpop.f32.mrb[0].mxu0
        %574 = vdwg.mxu0
        %v575 = vxor.u32 %v449, 2147483648
        %v576 = vxor.u32 %v452, 2147483648
        %v577 = vxor.u32 %v457, 2147483648
        %v578 = vxor.u32 %v460, 2147483648
        %v579 = vxor.u32 %v465, 2147483648
        %v580 = vxor.u32 %v468, 2147483648
        %v581 = vxor.u32 %v473, 2147483648
        %v582 = vxor.u32 %v476, 2147483648
        %v583 = vxor.u32 %v481, 2147483648
        %v584 = vxor.u32 %v484, 2147483648
        %v585 = vxor.u32 %v489, 2147483648
        %v586 = vxor.u32 %v492, 2147483648
        %v587 = vxor.u32 %v497, 2147483648
        %v588 = vxor.u32 %v500, 2147483648
        %v589 = vxor.u32 %v505, 2147483648
        %v590 = vxor.u32 %v508, 2147483648
        %v591 = vxor.u32 %v513, 2147483648
        %v592 = vxor.u32 %v516, 2147483648
        %v593 = vxor.u32 %v521, 2147483648
        %v594 = vxor.u32 %v524, 2147483648
        %v595 = vxor.u32 %v529, 2147483648
        %v596 = vxor.u32 %v532, 2147483648
        %v597 = vxor.u32 %v537, 2147483648
        %v598 = vxor.u32 %v540, 2147483648
        %v599 = vxor.u32 %v545, 2147483648
        %v600 = vxor.u32 %v548, 2147483648
        %v601 = vxor.u32 %v553, 2147483648
        %v602 = vxor.u32 %v556, 2147483648
        %v603 = vxor.u32 %v561, 2147483648
        %v604 = vxor.u32 %v564, 2147483648
        %v605 = vxor.u32 %v569, 2147483648
        %v606 = vxor.u32 %v572, 2147483648
        %v607 = vmul.f32 %v575, 1.442695
        %v608 = vpow.pop %v607
        %v609 = vmul.f32 %v576, 1.442695
        %v610 = vpow.pop %v609
        %v611 = vmul.f32 %v577, 1.442695
        %v612 = vpow.pop %v611
        %v613 = vmul.f32 %v578, 1.442695
        %v614 = vpow.pop %v613
        %v615 = vmul.f32 %v579, 1.442695
        %v616 = vpow.pop %v615
        %v617 = vmul.f32 %v580, 1.442695
        %v618 = vpow.pop %v617
        %v619 = vmul.f32 %v581, 1.442695
        %v620 = vpow.pop %v619
        %v621 = vmul.f32 %v582, 1.442695
        %v622 = vpow.pop %v621
        %v623 = vmul.f32 %v583, 1.442695
        %v624 = vpow.pop %v623
        %v625 = vmul.f32 %v584, 1.442695
        %v626 = vpow.pop %v625
        %v627 = vmul.f32 %v585, 1.442695
        %v628 = vpow.pop %v627
        %v629 = vmul.f32 %v586, 1.442695
        %v630 = vpow.pop %v629
        %v631 = vmul.f32 %v587, 1.442695
        %v632 = vpow.pop %v631
        %v633 = vmul.f32 %v588, 1.442695
        %v634 = vpow.pop %v633
        %v635 = vmul.f32 %v589, 1.442695
        %v636 = vpow.pop %v635
        %v637 = vmul.f32 %v590, 1.442695
        %v638 = vpow.pop %v637
        %v639 = vmul.f32 %v591, 1.442695
        %v640 = vpow.pop %v639
        %v641 = vmul.f32 %v592, 1.442695
        %v642 = vpow.pop %v641
        %v643 = vmul.f32 %v593, 1.442695
        %v644 = vpow.pop %v643
        %v645 = vmul.f32 %v594, 1.442695
        %v646 = vpow.pop %v645
        %v647 = vmul.f32 %v595, 1.442695
        %v648 = vpow.pop %v647
        %v649 = vmul.f32 %v596, 1.442695
        %v650 = vpow.pop %v649
        %v651 = vmul.f32 %v597, 1.442695
        %v652 = vpow.pop %v651
        %v653 = vmul.f32 %v598, 1.442695
        %v654 = vpow.pop %v653
        %v655 = vmul.f32 %v599, 1.442695
        %v656 = vpow.pop %v655
        %v657 = vmul.f32 %v600, 1.442695
        %v658 = vpow.pop %v657
        %v659 = vmul.f32 %v601, 1.442695
        %v660 = vpow.pop %v659
        %v661 = vmul.f32 %v602, 1.442695
        %v662 = vpow.pop %v661
        %v663 = vmul.f32 %v603, 1.442695
        %v664 = vpow.pop %v663
        %v665 = vmul.f32 %v604, 1.442695
        %v666 = vpow.pop %v665
        %v667 = vmul.f32 %v605, 1.442695
        %v668 = vpow.pop %v667
        %v669 = vmul.f32 %v606, 1.442695
        %v670 = vpow.pop %v669
        %v671 = vadd.f32 %v608, 1.0
        %v672 = vadd.f32 %v610, 1.0
        %v673 = vadd.f32 %v612, 1.0
        %v674 = vadd.f32 %v614, 1.0
        %v675 = vadd.f32 %v616, 1.0
        %v676 = vadd.f32 %v618, 1.0
        %v677 = vadd.f32 %v620, 1.0
        %v678 = vadd.f32 %v622, 1.0
        %v679 = vadd.f32 %v624, 1.0
        %v680 = vadd.f32 %v626, 1.0
        %v681 = vadd.f32 %v628, 1.0
        %v682 = vadd.f32 %v630, 1.0
        %v683 = vadd.f32 %v632, 1.0
        %v684 = vadd.f32 %v634, 1.0
        %v685 = vadd.f32 %v636, 1.0
        %v686 = vadd.f32 %v638, 1.0
        %v687 = vadd.f32 %v640, 1.0
        %v688 = vadd.f32 %v642, 1.0
        %v689 = vadd.f32 %v644, 1.0
        %v690 = vadd.f32 %v646, 1.0
        %v691 = vadd.f32 %v648, 1.0
        %v692 = vadd.f32 %v650, 1.0
        %v693 = vadd.f32 %v652, 1.0
        %v694 = vadd.f32 %v654, 1.0
        %v695 = vadd.f32 %v656, 1.0
        %v696 = vadd.f32 %v658, 1.0
        %v697 = vadd.f32 %v660, 1.0
        %v698 = vadd.f32 %v662, 1.0
        %v699 = vadd.f32 %v664, 1.0
        %v700 = vadd.f32 %v666, 1.0
        %v701 = vadd.f32 %v668, 1.0
        %v702 = vadd.f32 %v670, 1.0
        %v703 = vrcp.pop %v671
        %v704 = vmul.f32 1.0, %v703
        %v705 = vrcp.pop %v672
        %v706 = vmul.f32 1.0, %v705
        %v707 = vrcp.pop %v673
        %v708 = vmul.f32 1.0, %v707
        %v709 = vrcp.pop %v674
        %v710 = vmul.f32 1.0, %v709
        %v711 = vrcp.pop %v675
        %v712 = vmul.f32 1.0, %v711
        %v713 = vrcp.pop %v676
        %v714 = vmul.f32 1.0, %v713
        %v715 = vrcp.pop %v677
        %v716 = vmul.f32 1.0, %v715
        %v717 = vrcp.pop %v678
        %v718 = vmul.f32 1.0, %v717
        %v719 = vrcp.pop %v679
        %v720 = vmul.f32 1.0, %v719
        %v721 = vrcp.pop %v680
        %v722 = vmul.f32 1.0, %v721
        %v723 = vrcp.pop %v681
        %v724 = vmul.f32 1.0, %v723
        %v725 = vrcp.pop %v682
        %v726 = vmul.f32 1.0, %v725
        %v727 = vrcp.pop %v683
        %v728 = vmul.f32 1.0, %v727
        %v729 = vrcp.pop %v684
        %v730 = vmul.f32 1.0, %v729
        %v731 = vrcp.pop %v685
        %v732 = vmul.f32 1.0, %v731
        %v733 = vrcp.pop %v686
        %v734 = vmul.f32 1.0, %v733
        %v735 = vrcp.pop %v687
        %v736 = vmul.f32 1.0, %v735
        %v737 = vrcp.pop %v688
        %v738 = vmul.f32 1.0, %v737
        %v739 = vrcp.pop %v689
        %v740 = vmul.f32 1.0, %v739
        %v741 = vrcp.pop %v690
        %v742 = vmul.f32 1.0, %v741
        %v743 = vrcp.pop %v691
        %v744 = vmul.f32 1.0, %v743
        %v745 = vrcp.pop %v692
        %v746 = vmul.f32 1.0, %v745
        %v747 = vrcp.pop %v693
        %v748 = vmul.f32 1.0, %v747
        %v749 = vrcp.pop %v694
        %v750 = vmul.f32 1.0, %v749
        %v751 = vrcp.pop %v695
        %v752 = vmul.f32 1.0, %v751
        %v753 = vrcp.pop %v696
        %v754 = vmul.f32 1.0, %v753
        %v755 = vrcp.pop %v697
        %v756 = vmul.f32 1.0, %v755
        %v757 = vrcp.pop %v698
        %v758 = vmul.f32 1.0, %v757
        %v759 = vrcp.pop %v699
        %v760 = vmul.f32 1.0, %v759
        %v761 = vrcp.pop %v700
        %v762 = vmul.f32 1.0, %v761
        %v763 = vrcp.pop %v701
        %v764 = vmul.f32 1.0, %v763
        %v765 = vrcp.pop %v702
        %v766 = vmul.f32 1.0, %v765
        %v767 = vmul.f32 %v449, %v704
        %v768 = vmul.f32 %v452, %v706
        %v769 = vmul.f32 %v457, %v708
        %v770 = vmul.f32 %v460, %v710
        %v771 = vmul.f32 %v465, %v712
        %v772 = vmul.f32 %v468, %v714
        %v773 = vmul.f32 %v473, %v716
        %v774 = vmul.f32 %v476, %v718
        %v775 = vmul.f32 %v481, %v720
        %v776 = vmul.f32 %v484, %v722
        %v777 = vmul.f32 %v489, %v724
        %v778 = vmul.f32 %v492, %v726
        %v779 = vmul.f32 %v497, %v728
        %v780 = vmul.f32 %v500, %v730
        %v781 = vmul.f32 %v505, %v732
        %v782 = vmul.f32 %v508, %v734
        %v783 = vmul.f32 %v513, %v736
        %v784 = vmul.f32 %v516, %v738
        %v785 = vmul.f32 %v521, %v740
        %v786 = vmul.f32 %v524, %v742
        %v787 = vmul.f32 %v529, %v744
        %v788 = vmul.f32 %v532, %v746
        %v789 = vmul.f32 %v537, %v748
        %v790 = vmul.f32 %v540, %v750
        %v791 = vmul.f32 %v545, %v752
        %v792 = vmul.f32 %v548, %v754
        %v793 = vmul.f32 %v553, %v756
        %v794 = vmul.f32 %v556, %v758
        %v795 = vmul.f32 %v561, %v760
        %v796 = vmul.f32 %v564, %v762
        %v797 = vmul.f32 %v569, %v764
        %v798 = vmul.f32 %v572, %v766
        %799 = vst [vmem:[#allocation2] sm:$0xff] 0.0
        %800 = vst [vmem:[#allocation2 + $0x8] sm:$0xff] 0.0
        %801 = vst [vmem:[#allocation2 + $0x10] sm:$0xff] 0.0
        %802 = vst [vmem:[#allocation2 + $0x18] sm:$0x1] 0.0
        %803 = vst [vmem:[#allocation2 + $0x20] sm:$0xff] 0.0
        %804 = vst [vmem:[#allocation2 + $0x28] sm:$0xff] 0.0
        %805 = vst [vmem:[#allocation2 + $0x30] sm:$0xff] 0.0
        %806 = vst [vmem:[#allocation2 + $0x38] sm:$0x1] 0.0
        %807 = vst [vmem:[#allocation2 + $0x40] sm:$0xff] 0.0
        %808 = vst [vmem:[#allocation2 + $0x48] sm:$0xff] 0.0
        %809 = vst [vmem:[#allocation2 + $0x50] sm:$0xff] 0.0
        %810 = vst [vmem:[#allocation2 + $0x58] sm:$0x1] 0.0
        %811 = vst [vmem:[#allocation2 + $0x60] sm:$0xff] 0.0
        %812 = vst [vmem:[#allocation2 + $0x68] sm:$0xff] 0.0
        %813 = vst [vmem:[#allocation2 + $0x70] sm:$0xff] 0.0
        %814 = vst [vmem:[#allocation2 + $0x78] sm:$0x1] 0.0
        %815 = vst [vmem:[#allocation2 + $0x80] sm:$0xff] 0.0
        %816 = vst [vmem:[#allocation2 + $0x88] sm:$0xff] 0.0
        %817 = vst [vmem:[#allocation2 + $0x90] sm:$0xff] 0.0
        %818 = vst [vmem:[#allocation2 + $0x98] sm:$0x1] 0.0
        %819 = vst [vmem:[#allocation2 + $0xa0] sm:$0xff] 0.0
        %820 = vst [vmem:[#allocation2 + $0xa8] sm:$0xff] 0.0
        %821 = vst [vmem:[#allocation2 + $0xb0] sm:$0xff] 0.0
        %822 = vst [vmem:[#allocation2 + $0xb8] sm:$0x1] 0.0
        %823 = vst [vmem:[#allocation2 + $0xc0] sm:$0xff] 0.0
        %824 = vst [vmem:[#allocation2 + $0xc8] sm:$0xff] 0.0
        %825 = vst [vmem:[#allocation2 + $0xd0] sm:$0xff] 0.0
        %826 = vst [vmem:[#allocation2 + $0xd8] sm:$0x1] 0.0
        %827 = vst [vmem:[#allocation2 + $0xe0] sm:$0xff] 0.0
        %828 = vst [vmem:[#allocation2 + $0xe8] sm:$0xff] 0.0
        %829 = vst [vmem:[#allocation2 + $0xf0] sm:$0xff] 0.0
        %830 = vst [vmem:[#allocation2 + $0xf8] sm:$0x1] 0.0
        %831 = vst [vmem:[#allocation2 + $0x100] sm:$0xff] 0.0
        %832 = vst [vmem:[#allocation2 + $0x108] sm:$0xff] 0.0
        %833 = vst [vmem:[#allocation2 + $0x110] sm:$0xff] 0.0
        %834 = vst [vmem:[#allocation2 + $0x118] sm:$0x1] 0.0
        %835 = vst [vmem:[#allocation2 + $0x120] sm:$0xff] 0.0
        %836 = vst [vmem:[#allocation2 + $0x128] sm:$0xff] 0.0
        %837 = vst [vmem:[#allocation2 + $0x130] sm:$0xff] 0.0
        %838 = vst [vmem:[#allocation2 + $0x138] sm:$0x1] 0.0
        %839 = vst [vmem:[#allocation2 + $0x140] sm:$0xff] 0.0
        %840 = vst [vmem:[#allocation2 + $0x148] sm:$0xff] 0.0
        %841 = vst [vmem:[#allocation2 + $0x150] sm:$0xff] 0.0
        %842 = vst [vmem:[#allocation2 + $0x158] sm:$0x1] 0.0
        %843 = vst [vmem:[#allocation2 + $0x160] sm:$0xff] 0.0
        %844 = vst [vmem:[#allocation2 + $0x168] sm:$0xff] 0.0
        %845 = vst [vmem:[#allocation2 + $0x170] sm:$0xff] 0.0
        %846 = vst [vmem:[#allocation2 + $0x178] sm:$0x1] 0.0
        %847 = vst [vmem:[#allocation2 + $0x180] sm:$0xff] 0.0
        %848 = vst [vmem:[#allocation2 + $0x188] sm:$0xff] 0.0
        %849 = vst [vmem:[#allocation2 + $0x190] sm:$0xff] 0.0
        %850 = vst [vmem:[#allocation2 + $0x198] sm:$0x1] 0.0
        %851 = vst [vmem:[#allocation2 + $0x1a0] sm:$0xff] 0.0
        %852 = vst [vmem:[#allocation2 + $0x1a8] sm:$0xff] 0.0
        %853 = vst [vmem:[#allocation2 + $0x1b0] sm:$0xff] 0.0
        %854 = vst [vmem:[#allocation2 + $0x1b8] sm:$0x1] 0.0
        %855 = vst [vmem:[#allocation2 + $0x1c0] sm:$0xff] 0.0
        %856 = vst [vmem:[#allocation2 + $0x1c8] sm:$0xff] 0.0
        %857 = vst [vmem:[#allocation2 + $0x1d0] sm:$0xff] 0.0
        %858 = vst [vmem:[#allocation2 + $0x1d8] sm:$0x1] 0.0
        %859 = vst [vmem:[#allocation2 + $0x1e0] sm:$0xff] 0.0
        %860 = vst [vmem:[#allocation2 + $0x1e8] sm:$0xff] 0.0
        %861 = vst [vmem:[#allocation2 + $0x1f0] sm:$0xff] 0.0
        %862 = vst [vmem:[#allocation2 + $0x1f8] sm:$0x1] 0.0
        %863 = vst [vmem:[#allocation2 + $0x200] sm:$0xff] 0.0
        %864 = vst [vmem:[#allocation2 + $0x208] sm:$0xff] 0.0
        %865 = vst [vmem:[#allocation2 + $0x210] sm:$0xff] 0.0
        %866 = vst [vmem:[#allocation2 + $0x218] sm:$0x1] 0.0
        %867 = vst [vmem:[#allocation2 + $0x220] sm:$0xff] 0.0
        %868 = vst [vmem:[#allocation2 + $0x228] sm:$0xff] 0.0
        %869 = vst [vmem:[#allocation2 + $0x230] sm:$0xff] 0.0
        %870 = vst [vmem:[#allocation2 + $0x238] sm:$0x1] 0.0
        %s871 = scalar_lea.vmem [#allocation2], 32
        %872 = vst [vmem:[%s871 + $0x8] sm:$0xff] %v767
        %873 = vst [vmem:[%s871 + $0x10] sm:$0xff] %v768
        %874 = vst [vmem:[%s871 + $0x28] sm:$0xff] %v769
        %875 = vst [vmem:[%s871 + $0x30] sm:$0xff] %v770
        %876 = vst [vmem:[%s871 + $0x48] sm:$0xff] %v771
        %877 = vst [vmem:[%s871 + $0x50] sm:$0xff] %v772
        %878 = vst [vmem:[%s871 + $0x68] sm:$0xff] %v773
        %879 = vst [vmem:[%s871 + $0x70] sm:$0xff] %v774
        %880 = vst [vmem:[%s871 + $0x88] sm:$0xff] %v775
        %881 = vst [vmem:[%s871 + $0x90] sm:$0xff] %v776
        %882 = vst [vmem:[%s871 + $0xa8] sm:$0xff] %v777
        %883 = vst [vmem:[%s871 + $0xb0] sm:$0xff] %v778
        %884 = vst [vmem:[%s871 + $0xc8] sm:$0xff] %v779
        %885 = vst [vmem:[%s871 + $0xd0] sm:$0xff] %v780
        %886 = vst [vmem:[%s871 + $0xe8] sm:$0xff] %v781
        %887 = vst [vmem:[%s871 + $0xf0] sm:$0xff] %v782
        %888 = vst [vmem:[%s871 + $0x108] sm:$0xff] %v783
        %889 = vst [vmem:[%s871 + $0x110] sm:$0xff] %v784
        %890 = vst [vmem:[%s871 + $0x128] sm:$0xff] %v785
        %891 = vst [vmem:[%s871 + $0x130] sm:$0xff] %v786
        %892 = vst [vmem:[%s871 + $0x148] sm:$0xff] %v787
        %893 = vst [vmem:[%s871 + $0x150] sm:$0xff] %v788
        %894 = vst [vmem:[%s871 + $0x168] sm:$0xff] %v789
        %895 = vst [vmem:[%s871 + $0x170] sm:$0xff] %v790
        %896 = vst [vmem:[%s871 + $0x188] sm:$0xff] %v791
        %897 = vst [vmem:[%s871 + $0x190] sm:$0xff] %v792
        %898 = vst [vmem:[%s871 + $0x1a8] sm:$0xff] %v793
        %899 = vst [vmem:[%s871 + $0x1b0] sm:$0xff] %v794
        %900 = vst [vmem:[%s871 + $0x1c8] sm:$0xff] %v795
        %901 = vst [vmem:[%s871 + $0x1d0] sm:$0xff] %v796
        %902 = vst [vmem:[%s871 + $0x1e8] sm:$0xff] %v797
        %903 = vst [vmem:[%s871 + $0x1f0] sm:$0xff] %v798
        %v904 = vld [vmem:[#allocation2] sm:$0xff]
        %v905 = vld [vmem:[#allocation2 + $0x8] sm:$0xff]
        %v906 = vld [vmem:[#allocation2 + $0x10] sm:$0xff]
        %v907 = vld [vmem:[#allocation2 + $0x18] sm:$0x1]
        %v908 = vld [vmem:[#allocation2 + $0x20] sm:$0xff]
        %v909 = vld [vmem:[#allocation2 + $0x28] sm:$0xff]
        %v910 = vld [vmem:[#allocation2 + $0x30] sm:$0xff]
        %v911 = vld [vmem:[#allocation2 + $0x38] sm:$0x1]
        %v912 = vld [vmem:[#allocation2 + $0x40] sm:$0xff]
        %v913 = vld [vmem:[#allocation2 + $0x48] sm:$0xff]
        %v914 = vld [vmem:[#allocation2 + $0x50] sm:$0xff]
        %v915 = vld [vmem:[#allocation2 + $0x58] sm:$0x1]
        %v916 = vld [vmem:[#allocation2 + $0x60] sm:$0xff]
        %v917 = vld [vmem:[#allocation2 + $0x68] sm:$0xff]
        %v918 = vld [vmem:[#allocation2 + $0x70] sm:$0xff]
        %v919 = vld [vmem:[#allocation2 + $0x78] sm:$0x1]
        %v920 = vld [vmem:[#allocation2 + $0x80] sm:$0xff]
        %v921 = vld [vmem:[#allocation2 + $0x88] sm:$0xff]
        %v922 = vld [vmem:[#allocation2 + $0x90] sm:$0xff]
        %v923 = vld [vmem:[#allocation2 + $0x98] sm:$0x1]
        %v924 = vld [vmem:[#allocation2 + $0xa0] sm:$0xff]
        %v925 = vld [vmem:[#allocation2 + $0xa8] sm:$0xff]
        %v926 = vld [vmem:[#allocation2 + $0xb0] sm:$0xff]
        %v927 = vld [vmem:[#allocation2 + $0xb8] sm:$0x1]
        %v928 = vld [vmem:[#allocation2 + $0xc0] sm:$0xff]
        %v929 = vld [vmem:[#allocation2 + $0xc8] sm:$0xff]
        %v930 = vld [vmem:[#allocation2 + $0xd0] sm:$0xff]
        %v931 = vld [vmem:[#allocation2 + $0xd8] sm:$0x1]
        %v932 = vld [vmem:[#allocation2 + $0xe0] sm:$0xff]
        %v933 = vld [vmem:[#allocation2 + $0xe8] sm:$0xff]
        %v934 = vld [vmem:[#allocation2 + $0xf0] sm:$0xff]
        %v935 = vld [vmem:[#allocation2 + $0xf8] sm:$0x1]
        %v936 = vld [vmem:[#allocation2 + $0x100] sm:$0xff]
        %v937 = vld [vmem:[#allocation2 + $0x108] sm:$0xff]
        %v938 = vld [vmem:[#allocation2 + $0x110] sm:$0xff]
        %v939 = vld [vmem:[#allocation2 + $0x118] sm:$0x1]
        %v940 = vld [vmem:[#allocation2 + $0x120] sm:$0xff]
        %v941 = vld [vmem:[#allocation2 + $0x128] sm:$0xff]
        %v942 = vld [vmem:[#allocation2 + $0x130] sm:$0xff]
        %v943 = vld [vmem:[#allocation2 + $0x138] sm:$0x1]
        %v944 = vld [vmem:[#allocation2 + $0x140] sm:$0xff]
        %v945 = vld [vmem:[#allocation2 + $0x148] sm:$0xff]
        %v946 = vld [vmem:[#allocation2 + $0x150] sm:$0xff]
        %v947 = vld [vmem:[#allocation2 + $0x158] sm:$0x1]
        %v948 = vld [vmem:[#allocation2 + $0x160] sm:$0xff]
        %v949 = vld [vmem:[#allocation2 + $0x168] sm:$0xff]
        %v950 = vld [vmem:[#allocation2 + $0x170] sm:$0xff]
        %v951 = vld [vmem:[#allocation2 + $0x178] sm:$0x1]
        %v952 = vld [vmem:[#allocation2 + $0x180] sm:$0xff]
        %v953 = vld [vmem:[#allocation2 + $0x188] sm:$0xff]
        %v954 = vld [vmem:[#allocation2 + $0x190] sm:$0xff]
        %v955 = vld [vmem:[#allocation2 + $0x198] sm:$0x1]
        %v956 = vld [vmem:[#allocation2 + $0x1a0] sm:$0xff]
        %v957 = vld [vmem:[#allocation2 + $0x1a8] sm:$0xff]
        %v958 = vld [vmem:[#allocation2 + $0x1b0] sm:$0xff]
        %v959 = vld [vmem:[#allocation2 + $0x1b8] sm:$0x1]
        %v960 = vld [vmem:[#allocation2 + $0x1c0] sm:$0xff]
        %v961 = vld [vmem:[#allocation2 + $0x1c8] sm:$0xff]
        %v962 = vld [vmem:[#allocation2 + $0x1d0] sm:$0xff]
        %v963 = vld [vmem:[#allocation2 + $0x1d8] sm:$0x1]
        %v964 = vld [vmem:[#allocation2 + $0x1e0] sm:$0xff]
        %v965 = vld [vmem:[#allocation2 + $0x1e8] sm:$0xff]
        %v966 = vld [vmem:[#allocation2 + $0x1f0] sm:$0xff]
        %v967 = vld [vmem:[#allocation2 + $0x1f8] sm:$0x1]
        %v968 = vld [vmem:[#allocation2 + $0x200] sm:$0xff]
        %v969 = vld [vmem:[#allocation2 + $0x208] sm:$0xff]
        %v970 = vld [vmem:[#allocation2 + $0x210] sm:$0xff]
        %v971 = vld [vmem:[#allocation2 + $0x218] sm:$0x1]
        %v972 = vld [vmem:[#allocation2 + $0x220] sm:$0xff]
        %v973 = vld [vmem:[#allocation2 + $0x228] sm:$0xff]
        %v974 = vld [vmem:[#allocation2 + $0x230] sm:$0xff]
        %v975 = vld [vmem:[#allocation2 + $0x238] sm:$0x1]
        %v976 = vld [vmem:[%s3] sm:$0x7]
        %v977 = vld [vmem:[%s3 + $0x4] sm:$0x7]
        %v978 = vld [vmem:[%s3 + $0x8] sm:$0x7]
        %v979 = vlaneseq
        %v980 = vshrl.u32 %v979, 7
        %v981 = vsub.s32 0, %v980
        %v982 = vrot.slane %v976, %v981
        %v983 = vmul.f32 %v904, %v982
        %v984 = vmul.f32 %v905, %v982
        %v985 = vmul.f32 %v906, %v982
        %v986 = vmul.f32 %v908, %v982
        %v987 = vmul.f32 %v909, %v982
        %v988 = vmul.f32 %v910, %v982
        %v989 = vmul.f32 %v912, %v982
        %v990 = vmul.f32 %v913, %v982
        %v991 = vmul.f32 %v914, %v982
        %v992 = vmul.f32 %v916, %v982
        %v993 = vmul.f32 %v917, %v982
        %v994 = vmul.f32 %v918, %v982
        %v995 = vmul.f32 %v920, %v982
        %v996 = vmul.f32 %v921, %v982
        %v997 = vmul.f32 %v922, %v982
        %v998 = vmul.f32 %v924, %v982
        %v999 = vmul.f32 %v925, %v982
        %v1000 = vmul.f32 %v926, %v982
        %v1001 = vmul.f32 %v928, %v982
        %v1002 = vmul.f32 %v929, %v982
        %v1003 = vmul.f32 %v930, %v982
        %v1004 = vmul.f32 %v932, %v982
        %v1005 = vmul.f32 %v933, %v982
        %v1006 = vmul.f32 %v934, %v982
        %v1007 = vmul.f32 %v936, %v982
        %v1008 = vmul.f32 %v937, %v982
        %v1009 = vmul.f32 %v938, %v982
        %v1010 = vmul.f32 %v940, %v982
        %v1011 = vmul.f32 %v941, %v982
        %v1012 = vmul.f32 %v942, %v982
        %v1013 = vmul.f32 %v944, %v982
        %v1014 = vmul.f32 %v945, %v982
        %v1015 = vmul.f32 %v946, %v982
        %v1016 = vmul.f32 %v948, %v982
        %v1017 = vmul.f32 %v949, %v982
        %v1018 = vmul.f32 %v950, %v982
        %v1019 = vmul.f32 %v952, %v982
        %v1020 = vmul.f32 %v953, %v982
        %v1021 = vmul.f32 %v954, %v982
        %v1022 = vmul.f32 %v956, %v982
        %v1023 = vmul.f32 %v957, %v982
        %v1024 = vmul.f32 %v958, %v982
        %v1025 = vmul.f32 %v960, %v982
        %v1026 = vmul.f32 %v961, %v982
        %v1027 = vmul.f32 %v962, %v982
        %v1028 = vmul.f32 %v964, %v982
        %v1029 = vmul.f32 %v965, %v982
        %v1030 = vmul.f32 %v966, %v982
        %v1031 = vadd.f32 %v983, 0.0
        %v1032 = vadd.f32 %v984, 0.0
        %v1033 = vadd.f32 %v985, 0.0
        %v1034 = vadd.f32 %v986, 0.0
        %v1035 = vadd.f32 %v987, 0.0
        %v1036 = vadd.f32 %v988, 0.0
        %v1037 = vadd.f32 %v989, 0.0
        %v1038 = vadd.f32 %v990, 0.0
        %v1039 = vadd.f32 %v991, 0.0
        %v1040 = vadd.f32 %v992, 0.0
        %v1041 = vadd.f32 %v993, 0.0
        %v1042 = vadd.f32 %v994, 0.0
        %v1043 = vadd.f32 %v995, 0.0
        %v1044 = vadd.f32 %v996, 0.0
        %v1045 = vadd.f32 %v997, 0.0
        %v1046 = vadd.f32 %v998, 0.0
        %v1047 = vadd.f32 %v999, 0.0
        %v1048 = vadd.f32 %v1000, 0.0
        %v1049 = vadd.f32 %v1001, 0.0
        %v1050 = vadd.f32 %v1002, 0.0
        %v1051 = vadd.f32 %v1003, 0.0
        %v1052 = vadd.f32 %v1004, 0.0
        %v1053 = vadd.f32 %v1005, 0.0
        %v1054 = vadd.f32 %v1006, 0.0
        %v1055 = vadd.f32 %v1007, 0.0
        %v1056 = vadd.f32 %v1008, 0.0
        %v1057 = vadd.f32 %v1009, 0.0
        %v1058 = vadd.f32 %v1010, 0.0
        %v1059 = vadd.f32 %v1011, 0.0
        %v1060 = vadd.f32 %v1012, 0.0
        %v1061 = vadd.f32 %v1013, 0.0
        %v1062 = vadd.f32 %v1014, 0.0
        %v1063 = vadd.f32 %v1015, 0.0
        %v1064 = vadd.f32 %v1016, 0.0
        %v1065 = vadd.f32 %v1017, 0.0
        %v1066 = vadd.f32 %v1018, 0.0
        %v1067 = vadd.f32 %v1019, 0.0
        %v1068 = vadd.f32 %v1020, 0.0
        %v1069 = vadd.f32 %v1021, 0.0
        %v1070 = vadd.f32 %v1022, 0.0
        %v1071 = vadd.f32 %v1023, 0.0
        %v1072 = vadd.f32 %v1024, 0.0
        %v1073 = vadd.f32 %v1025, 0.0
        %v1074 = vadd.f32 %v1026, 0.0
        %v1075 = vadd.f32 %v1027, 0.0
        %v1076 = vadd.f32 %v1028, 0.0
        %v1077 = vadd.f32 %v1029, 0.0
        %v1078 = vadd.f32 %v1030, 0.0
        %v1079 = vlaneseq
        %v1080 = vshrl.u32 %v1079, 7
        %v1081 = vsub.s32 0, %v1080
        %v1082 = vrot.slane %v977, %v1081
        %v1083 = vmul.f32 %v908, %v1082
        %v1084 = vmul.f32 %v909, %v1082
        %v1085 = vmul.f32 %v910, %v1082
        %v1086 = vmul.f32 %v912, %v1082
        %v1087 = vmul.f32 %v913, %v1082
        %v1088 = vmul.f32 %v914, %v1082
        %v1089 = vmul.f32 %v916, %v1082
        %v1090 = vmul.f32 %v917, %v1082
        %v1091 = vmul.f32 %v918, %v1082
        %v1092 = vmul.f32 %v920, %v1082
        %v1093 = vmul.f32 %v921, %v1082
        %v1094 = vmul.f32 %v922, %v1082
        %v1095 = vmul.f32 %v924, %v1082
        %v1096 = vmul.f32 %v925, %v1082
        %v1097 = vmul.f32 %v926, %v1082
        %v1098 = vmul.f32 %v928, %v1082
        %v1099 = vmul.f32 %v929, %v1082
        %v1100 = vmul.f32 %v930, %v1082
        %v1101 = vmul.f32 %v932, %v1082
        %v1102 = vmul.f32 %v933, %v1082
        %v1103 = vmul.f32 %v934, %v1082
        %v1104 = vmul.f32 %v936, %v1082
        %v1105 = vmul.f32 %v937, %v1082
        %v1106 = vmul.f32 %v938, %v1082
        %v1107 = vmul.f32 %v940, %v1082
        %v1108 = vmul.f32 %v941, %v1082
        %v1109 = vmul.f32 %v942, %v1082
        %v1110 = vmul.f32 %v944, %v1082
        %v1111 = vmul.f32 %v945, %v1082
        %v1112 = vmul.f32 %v946, %v1082
        %v1113 = vmul.f32 %v948, %v1082
        %v1114 = vmul.f32 %v949, %v1082
        %v1115 = vmul.f32 %v950, %v1082
        %v1116 = vmul.f32 %v952, %v1082
        %v1117 = vmul.f32 %v953, %v1082
        %v1118 = vmul.f32 %v954, %v1082
        %v1119 = vmul.f32 %v956, %v1082
        %v1120 = vmul.f32 %v957, %v1082
        %v1121 = vmul.f32 %v958, %v1082
        %v1122 = vmul.f32 %v960, %v1082
        %v1123 = vmul.f32 %v961, %v1082
        %v1124 = vmul.f32 %v962, %v1082
        %v1125 = vmul.f32 %v964, %v1082
        %v1126 = vmul.f32 %v965, %v1082
        %v1127 = vmul.f32 %v966, %v1082
        %v1128 = vmul.f32 %v968, %v1082
        %v1129 = vmul.f32 %v969, %v1082
        %v1130 = vmul.f32 %v970, %v1082
        %v1131 = vadd.f32 %v1031, %v1083
        %v1132 = vadd.f32 %v1032, %v1084
        %v1133 = vadd.f32 %v1033, %v1085
        %v1134 = vadd.f32 %v1034, %v1086
        %v1135 = vadd.f32 %v1035, %v1087
        %v1136 = vadd.f32 %v1036, %v1088
        %v1137 = vadd.f32 %v1037, %v1089
        %v1138 = vadd.f32 %v1038, %v1090
        %v1139 = vadd.f32 %v1039, %v1091
        %v1140 = vadd.f32 %v1040, %v1092
        %v1141 = vadd.f32 %v1041, %v1093
        %v1142 = vadd.f32 %v1042, %v1094
        %v1143 = vadd.f32 %v1043, %v1095
        %v1144 = vadd.f32 %v1044, %v1096
        %v1145 = vadd.f32 %v1045, %v1097
        %v1146 = vadd.f32 %v1046, %v1098
        %v1147 = vadd.f32 %v1047, %v1099
        %v1148 = vadd.f32 %v1048, %v1100
        %v1149 = vadd.f32 %v1049, %v1101
        %v1150 = vadd.f32 %v1050, %v1102
        %v1151 = vadd.f32 %v1051, %v1103
        %v1152 = vadd.f32 %v1052, %v1104
        %v1153 = vadd.f32 %v1053, %v1105
        %v1154 = vadd.f32 %v1054, %v1106
        %v1155 = vadd.f32 %v1055, %v1107
        %v1156 = vadd.f32 %v1056, %v1108
        %v1157 = vadd.f32 %v1057, %v1109
        %v1158 = vadd.f32 %v1058, %v1110
        %v1159 = vadd.f32 %v1059, %v1111
        %v1160 = vadd.f32 %v1060, %v1112
        %v1161 = vadd.f32 %v1061, %v1113
        %v1162 = vadd.f32 %v1062, %v1114
        %v1163 = vadd.f32 %v1063, %v1115
        %v1164 = vadd.f32 %v1064, %v1116
        %v1165 = vadd.f32 %v1065, %v1117
        %v1166 = vadd.f32 %v1066, %v1118
        %v1167 = vadd.f32 %v1067, %v1119
        %v1168 = vadd.f32 %v1068, %v1120
        %v1169 = vadd.f32 %v1069, %v1121
        %v1170 = vadd.f32 %v1070, %v1122
        %v1171 = vadd.f32 %v1071, %v1123
        %v1172 = vadd.f32 %v1072, %v1124
        %v1173 = vadd.f32 %v1073, %v1125
        %v1174 = vadd.f32 %v1074, %v1126
        %v1175 = vadd.f32 %v1075, %v1127
        %v1176 = vadd.f32 %v1076, %v1128
        %v1177 = vadd.f32 %v1077, %v1129
        %v1178 = vadd.f32 %v1078, %v1130
        %v1179 = vlaneseq
        %v1180 = vshrl.u32 %v1179, 7
        %v1181 = vsub.s32 0, %v1180
        %v1182 = vrot.slane %v978, %v1181
        %v1183 = vmul.f32 %v912, %v1182
        %v1184 = vmul.f32 %v913, %v1182
        %v1185 = vmul.f32 %v914, %v1182
        %v1186 = vmul.f32 %v916, %v1182
        %v1187 = vmul.f32 %v917, %v1182
        %v1188 = vmul.f32 %v918, %v1182
        %v1189 = vmul.f32 %v920, %v1182
        %v1190 = vmul.f32 %v921, %v1182
        %v1191 = vmul.f32 %v922, %v1182
        %v1192 = vmul.f32 %v924, %v1182
        %v1193 = vmul.f32 %v925, %v1182
        %v1194 = vmul.f32 %v926, %v1182
        %v1195 = vmul.f32 %v928, %v1182
        %v1196 = vmul.f32 %v929, %v1182
        %v1197 = vmul.f32 %v930, %v1182
        %v1198 = vmul.f32 %v932, %v1182
        %v1199 = vmul.f32 %v933, %v1182
        %v1200 = vmul.f32 %v934, %v1182
        %v1201 = vmul.f32 %v936, %v1182
        %v1202 = vmul.f32 %v937, %v1182
        %v1203 = vmul.f32 %v938, %v1182
        %v1204 = vmul.f32 %v940, %v1182
        %v1205 = vmul.f32 %v941, %v1182
        %v1206 = vmul.f32 %v942, %v1182
        %v1207 = vmul.f32 %v944, %v1182
        %v1208 = vmul.f32 %v945, %v1182
        %v1209 = vmul.f32 %v946, %v1182
        %v1210 = vmul.f32 %v948, %v1182
        %v1211 = vmul.f32 %v949, %v1182
        %v1212 = vmul.f32 %v950, %v1182
        %v1213 = vmul.f32 %v952, %v1182
        %v1214 = vmul.f32 %v953, %v1182
        %v1215 = vmul.f32 %v954, %v1182
        %v1216 = vmul.f32 %v956, %v1182
        %v1217 = vmul.f32 %v957, %v1182
        %v1218 = vmul.f32 %v958, %v1182
        %v1219 = vmul.f32 %v960, %v1182
        %v1220 = vmul.f32 %v961, %v1182
        %v1221 = vmul.f32 %v962, %v1182
        %v1222 = vmul.f32 %v964, %v1182
        %v1223 = vmul.f32 %v965, %v1182
        %v1224 = vmul.f32 %v966, %v1182
        %v1225 = vmul.f32 %v968, %v1182
        %v1226 = vmul.f32 %v969, %v1182
        %v1227 = vmul.f32 %v970, %v1182
        %v1228 = vmul.f32 %v972, %v1182
        %v1229 = vmul.f32 %v973, %v1182
        %v1230 = vmul.f32 %v974, %v1182
        %v1231 = vadd.f32 %v1131, %v1183
        %v1232 = vadd.f32 %v1132, %v1184
        %v1233 = vadd.f32 %v1133, %v1185
        %v1234 = vadd.f32 %v1134, %v1186
        %v1235 = vadd.f32 %v1135, %v1187
        %v1236 = vadd.f32 %v1136, %v1188
        %v1237 = vadd.f32 %v1137, %v1189
        %v1238 = vadd.f32 %v1138, %v1190
        %v1239 = vadd.f32 %v1139, %v1191
        %v1240 = vadd.f32 %v1140, %v1192
        %v1241 = vadd.f32 %v1141, %v1193
        %v1242 = vadd.f32 %v1142, %v1194
        %v1243 = vadd.f32 %v1143, %v1195
        %v1244 = vadd.f32 %v1144, %v1196
        %v1245 = vadd.f32 %v1145, %v1197
        %v1246 = vadd.f32 %v1146, %v1198
        %v1247 = vadd.f32 %v1147, %v1199
        %v1248 = vadd.f32 %v1148, %v1200
        %v1249 = vadd.f32 %v1149, %v1201
        %v1250 = vadd.f32 %v1150, %v1202
        %v1251 = vadd.f32 %v1151, %v1203
        %v1252 = vadd.f32 %v1152, %v1204
        %v1253 = vadd.f32 %v1153, %v1205
        %v1254 = vadd.f32 %v1154, %v1206
        %v1255 = vadd.f32 %v1155, %v1207
        %v1256 = vadd.f32 %v1156, %v1208
        %v1257 = vadd.f32 %v1157, %v1209
        %v1258 = vadd.f32 %v1158, %v1210
        %v1259 = vadd.f32 %v1159, %v1211
        %v1260 = vadd.f32 %v1160, %v1212
        %v1261 = vadd.f32 %v1161, %v1213
        %v1262 = vadd.f32 %v1162, %v1214
        %v1263 = vadd.f32 %v1163, %v1215
        %v1264 = vadd.f32 %v1164, %v1216
        %v1265 = vadd.f32 %v1165, %v1217
        %v1266 = vadd.f32 %v1166, %v1218
        %v1267 = vadd.f32 %v1167, %v1219
        %v1268 = vadd.f32 %v1168, %v1220
        %v1269 = vadd.f32 %v1169, %v1221
        %v1270 = vadd.f32 %v1170, %v1222
        %v1271 = vadd.f32 %v1171, %v1223
        %v1272 = vadd.f32 %v1172, %v1224
        %v1273 = vadd.f32 %v1173, %v1225
        %v1274 = vadd.f32 %v1174, %v1226
        %v1275 = vadd.f32 %v1175, %v1227
        %v1276 = vadd.f32 %v1176, %v1228
        %v1277 = vadd.f32 %v1177, %v1229
        %v1278 = vadd.f32 %v1178, %v1230
        %v1279 = vlaneseq
        %v1280 = vshrl.u32 %v1279, 7
        %v1281 = vsub.s32 1, %v1280
        %v1282 = vrot.slane %v976, %v1281
        %v1283 = vmul.f32 %v905, %v1282
        %v1284 = vmul.f32 %v906, %v1282
        %v1285 = vmul.f32 %v909, %v1282
        %v1286 = vmul.f32 %v910, %v1282
        %v1287 = vmul.f32 %v913, %v1282
        %v1288 = vmul.f32 %v914, %v1282
        %v1289 = vmul.f32 %v917, %v1282
        %v1290 = vmul.f32 %v918, %v1282
        %v1291 = vmul.f32 %v921, %v1282
        %v1292 = vmul.f32 %v922, %v1282
        %v1293 = vmul.f32 %v925, %v1282
        %v1294 = vmul.f32 %v926, %v1282
        %v1295 = vmul.f32 %v929, %v1282
        %v1296 = vmul.f32 %v930, %v1282
        %v1297 = vmul.f32 %v933, %v1282
        %v1298 = vmul.f32 %v934, %v1282
        %v1299 = vmul.f32 %v937, %v1282
        %v1300 = vmul.f32 %v938, %v1282
        %v1301 = vmul.f32 %v941, %v1282
        %v1302 = vmul.f32 %v942, %v1282
        %v1303 = vmul.f32 %v945, %v1282
        %v1304 = vmul.f32 %v946, %v1282
        %v1305 = vmul.f32 %v949, %v1282
        %v1306 = vmul.f32 %v950, %v1282
        %v1307 = vmul.f32 %v953, %v1282
        %v1308 = vmul.f32 %v954, %v1282
        %v1309 = vmul.f32 %v957, %v1282
        %v1310 = vmul.f32 %v958, %v1282
        %v1311 = vmul.f32 %v961, %v1282
        %v1312 = vmul.f32 %v962, %v1282
        %v1313 = vmul.f32 %v965, %v1282
        %v1314 = vmul.f32 %v966, %v1282
        %vm1347 = vcmask 1046528
        %v1348 = vrot.slane %v1283, 1
        %v1349 = vrot.slane %v1284, 1
        %v1350 = vsel %vm1347, %v1348, %v1349
        %v1351 = vrot.slane %v1285, 1
        %v1352 = vrot.slane %v1286, 1
        %v1353 = vsel %vm1347, %v1351, %v1352
        %v1354 = vrot.slane %v1287, 1
        %v1355 = vrot.slane %v1288, 1
        %v1356 = vsel %vm1347, %v1354, %v1355
        %v1357 = vrot.slane %v1289, 1
        %v1358 = vrot.slane %v1290, 1
        %v1359 = vsel %vm1347, %v1357, %v1358
        %v1360 = vrot.slane %v1291, 1
        %v1361 = vrot.slane %v1292, 1
        %v1362 = vsel %vm1347, %v1360, %v1361
        %v1363 = vrot.slane %v1293, 1
        %v1364 = vrot.slane %v1294, 1
        %v1365 = vsel %vm1347, %v1363, %v1364
        %v1366 = vrot.slane %v1295, 1
        %v1367 = vrot.slane %v1296, 1
        %v1368 = vsel %vm1347, %v1366, %v1367
        %v1369 = vrot.slane %v1297, 1
        %v1370 = vrot.slane %v1298, 1
        %v1371 = vsel %vm1347, %v1369, %v1370
        %v1372 = vrot.slane %v1299, 1
        %v1373 = vrot.slane %v1300, 1
        %v1374 = vsel %vm1347, %v1372, %v1373
        %v1375 = vrot.slane %v1301, 1
        %v1376 = vrot.slane %v1302, 1
        %v1377 = vsel %vm1347, %v1375, %v1376
        %v1378 = vrot.slane %v1303, 1
        %v1379 = vrot.slane %v1304, 1
        %v1380 = vsel %vm1347, %v1378, %v1379
        %v1381 = vrot.slane %v1305, 1
        %v1382 = vrot.slane %v1306, 1
        %v1383 = vsel %vm1347, %v1381, %v1382
        %v1384 = vrot.slane %v1307, 1
        %v1385 = vrot.slane %v1308, 1
        %v1386 = vsel %vm1347, %v1384, %v1385
        %v1387 = vrot.slane %v1309, 1
        %v1388 = vrot.slane %v1310, 1
        %v1389 = vsel %vm1347, %v1387, %v1388
        %v1390 = vrot.slane %v1311, 1
        %v1391 = vrot.slane %v1312, 1
        %v1392 = vsel %vm1347, %v1390, %v1391
        %v1393 = vrot.slane %v1313, 1
        %v1394 = vrot.slane %v1314, 1
        %v1395 = vsel %vm1347, %v1393, %v1394
        %v1444 = vadd.f32 %v1231, %v1348
        %v1445 = vadd.f32 %v1232, %v1350
        %v1446 = vadd.f32 %v1233, %v1349
        %v1447 = vadd.f32 %v1234, %v1351
        %v1448 = vadd.f32 %v1235, %v1353
        %v1449 = vadd.f32 %v1236, %v1352
        %v1450 = vadd.f32 %v1237, %v1354
        %v1451 = vadd.f32 %v1238, %v1356
        %v1452 = vadd.f32 %v1239, %v1355
        %v1453 = vadd.f32 %v1240, %v1357
        %v1454 = vadd.f32 %v1241, %v1359
        %v1455 = vadd.f32 %v1242, %v1358
        %v1456 = vadd.f32 %v1243, %v1360
        %v1457 = vadd.f32 %v1244, %v1362
        %v1458 = vadd.f32 %v1245, %v1361
        %v1459 = vadd.f32 %v1246, %v1363
        %v1460 = vadd.f32 %v1247, %v1365
        %v1461 = vadd.f32 %v1248, %v1364
        %v1462 = vadd.f32 %v1249, %v1366
        %v1463 = vadd.f32 %v1250, %v1368
        %v1464 = vadd.f32 %v1251, %v1367
        %v1465 = vadd.f32 %v1252, %v1369
        %v1466 = vadd.f32 %v1253, %v1371
        %v1467 = vadd.f32 %v1254, %v1370
        %v1468 = vadd.f32 %v1255, %v1372
        %v1469 = vadd.f32 %v1256, %v1374
        %v1470 = vadd.f32 %v1257, %v1373
        %v1471 = vadd.f32 %v1258, %v1375
        %v1472 = vadd.f32 %v1259, %v1377
        %v1473 = vadd.f32 %v1260, %v1376
        %v1474 = vadd.f32 %v1261, %v1378
        %v1475 = vadd.f32 %v1262, %v1380
        %v1476 = vadd.f32 %v1263, %v1379
        %v1477 = vadd.f32 %v1264, %v1381
        %v1478 = vadd.f32 %v1265, %v1383
        %v1479 = vadd.f32 %v1266, %v1382
        %v1480 = vadd.f32 %v1267, %v1384
        %v1481 = vadd.f32 %v1268, %v1386
        %v1482 = vadd.f32 %v1269, %v1385
        %v1483 = vadd.f32 %v1270, %v1387
        %v1484 = vadd.f32 %v1271, %v1389
        %v1485 = vadd.f32 %v1272, %v1388
        %v1486 = vadd.f32 %v1273, %v1390
        %v1487 = vadd.f32 %v1274, %v1392
        %v1488 = vadd.f32 %v1275, %v1391
        %v1489 = vadd.f32 %v1276, %v1393
        %v1490 = vadd.f32 %v1277, %v1395
        %v1491 = vadd.f32 %v1278, %v1394
        %v1492 = vlaneseq
        %v1493 = vshrl.u32 %v1492, 7
        %v1494 = vsub.s32 1, %v1493
        %v1495 = vrot.slane %v977, %v1494
        %v1496 = vmul.f32 %v909, %v1495
        %v1497 = vmul.f32 %v910, %v1495
        %v1498 = vmul.f32 %v913, %v1495
        %v1499 = vmul.f32 %v914, %v1495
        %v1500 = vmul.f32 %v917, %v1495
        %v1501 = vmul.f32 %v918, %v1495
        %v1502 = vmul.f32 %v921, %v1495
        %v1503 = vmul.f32 %v922, %v1495
        %v1504 = vmul.f32 %v925, %v1495
        %v1505 = vmul.f32 %v926, %v1495
        %v1506 = vmul.f32 %v929, %v1495
        %v1507 = vmul.f32 %v930, %v1495
        %v1508 = vmul.f32 %v933, %v1495
        %v1509 = vmul.f32 %v934, %v1495
        %v1510 = vmul.f32 %v937, %v1495
        %v1511 = vmul.f32 %v938, %v1495
        %v1512 = vmul.f32 %v941, %v1495
        %v1513 = vmul.f32 %v942, %v1495
        %v1514 = vmul.f32 %v945, %v1495
        %v1515 = vmul.f32 %v946, %v1495
        %v1516 = vmul.f32 %v949, %v1495
        %v1517 = vmul.f32 %v950, %v1495
        %v1518 = vmul.f32 %v953, %v1495
        %v1519 = vmul.f32 %v954, %v1495
        %v1520 = vmul.f32 %v957, %v1495
        %v1521 = vmul.f32 %v958, %v1495
        %v1522 = vmul.f32 %v961, %v1495
        %v1523 = vmul.f32 %v962, %v1495
        %v1524 = vmul.f32 %v965, %v1495
        %v1525 = vmul.f32 %v966, %v1495
        %v1526 = vmul.f32 %v969, %v1495
        %v1527 = vmul.f32 %v970, %v1495
        %v1560 = vrot.slane %v1496, 1
        %v1561 = vrot.slane %v1497, 1
        %v1562 = vsel %vm1347, %v1560, %v1561
        %v1563 = vrot.slane %v1498, 1
        %v1564 = vrot.slane %v1499, 1
        %v1565 = vsel %vm1347, %v1563, %v1564
        %v1566 = vrot.slane %v1500, 1
        %v1567 = vrot.slane %v1501, 1
        %v1568 = vsel %vm1347, %v1566, %v1567
        %v1569 = vrot.slane %v1502, 1
        %v1570 = vrot.slane %v1503, 1
        %v1571 = vsel %vm1347, %v1569, %v1570
        %v1572 = vrot.slane %v1504, 1
        %v1573 = vrot.slane %v1505, 1
        %v1574 = vsel %vm1347, %v1572, %v1573
        %v1575 = vrot.slane %v1506, 1
        %v1576 = vrot.slane %v1507, 1
        %v1577 = vsel %vm1347, %v1575, %v1576
        %v1578 = vrot.slane %v1508, 1
        %v1579 = vrot.slane %v1509, 1
        %v1580 = vsel %vm1347, %v1578, %v1579
        %v1581 = vrot.slane %v1510, 1
        %v1582 = vrot.slane %v1511, 1
        %v1583 = vsel %vm1347, %v1581, %v1582
        %v1584 = vrot.slane %v1512, 1
        %v1585 = vrot.slane %v1513, 1
        %v1586 = vsel %vm1347, %v1584, %v1585
        %v1587 = vrot.slane %v1514, 1
        %v1588 = vrot.slane %v1515, 1
        %v1589 = vsel %vm1347, %v1587, %v1588
        %v1590 = vrot.slane %v1516, 1
        %v1591 = vrot.slane %v1517, 1
        %v1592 = vsel %vm1347, %v1590, %v1591
        %v1593 = vrot.slane %v1518, 1
        %v1594 = vrot.slane %v1519, 1
        %v1595 = vsel %vm1347, %v1593, %v1594
        %v1596 = vrot.slane %v1520, 1
        %v1597 = vrot.slane %v1521, 1
        %v1598 = vsel %vm1347, %v1596, %v1597
        %v1599 = vrot.slane %v1522, 1
        %v1600 = vrot.slane %v1523, 1
        %v1601 = vsel %vm1347, %v1599, %v1600
        %v1602 = vrot.slane %v1524, 1
        %v1603 = vrot.slane %v1525, 1
        %v1604 = vsel %vm1347, %v1602, %v1603
        %v1605 = vrot.slane %v1526, 1
        %v1606 = vrot.slane %v1527, 1
        %v1607 = vsel %vm1347, %v1605, %v1606
        %v1656 = vadd.f32 %v1444, %v1560
        %v1657 = vadd.f32 %v1445, %v1562
        %v1658 = vadd.f32 %v1446, %v1561
        %v1659 = vadd.f32 %v1447, %v1563
        %v1660 = vadd.f32 %v1448, %v1565
        %v1661 = vadd.f32 %v1449, %v1564
        %v1662 = vadd.f32 %v1450, %v1566
        %v1663 = vadd.f32 %v1451, %v1568
        %v1664 = vadd.f32 %v1452, %v1567
        %v1665 = vadd.f32 %v1453, %v1569
        %v1666 = vadd.f32 %v1454, %v1571
        %v1667 = vadd.f32 %v1455, %v1570
        %v1668 = vadd.f32 %v1456, %v1572
        %v1669 = vadd.f32 %v1457, %v1574
        %v1670 = vadd.f32 %v1458, %v1573
        %v1671 = vadd.f32 %v1459, %v1575
        %v1672 = vadd.f32 %v1460, %v1577
        %v1673 = vadd.f32 %v1461, %v1576
        %v1674 = vadd.f32 %v1462, %v1578
        %v1675 = vadd.f32 %v1463, %v1580
        %v1676 = vadd.f32 %v1464, %v1579
        %v1677 = vadd.f32 %v1465, %v1581
        %v1678 = vadd.f32 %v1466, %v1583
        %v1679 = vadd.f32 %v1467, %v1582
        %v1680 = vadd.f32 %v1468, %v1584
        %v1681 = vadd.f32 %v1469, %v1586
        %v1682 = vadd.f32 %v1470, %v1585
        %v1683 = vadd.f32 %v1471, %v1587
        %v1684 = vadd.f32 %v1472, %v1589
        %v1685 = vadd.f32 %v1473, %v1588
        %v1686 = vadd.f32 %v1474, %v1590
        %v1687 = vadd.f32 %v1475, %v1592
        %v1688 = vadd.f32 %v1476, %v1591
        %v1689 = vadd.f32 %v1477, %v1593
        %v1690 = vadd.f32 %v1478, %v1595
        %v1691 = vadd.f32 %v1479, %v1594
        %v1692 = vadd.f32 %v1480, %v1596
        %v1693 = vadd.f32 %v1481, %v1598
        %v1694 = vadd.f32 %v1482, %v1597
        %v1695 = vadd.f32 %v1483, %v1599
        %v1696 = vadd.f32 %v1484, %v1601
        %v1697 = vadd.f32 %v1485, %v1600
        %v1698 = vadd.f32 %v1486, %v1602
        %v1699 = vadd.f32 %v1487, %v1604
        %v1700 = vadd.f32 %v1488, %v1603
        %v1701 = vadd.f32 %v1489, %v1605
        %v1702 = vadd.f32 %v1490, %v1607
        %v1703 = vadd.f32 %v1491, %v1606
        %v1704 = vlaneseq
        %v1705 = vshrl.u32 %v1704, 7
        %v1706 = vsub.s32 1, %v1705
        %v1707 = vrot.slane %v978, %v1706
        %v1708 = vmul.f32 %v913, %v1707
        %v1709 = vmul.f32 %v914, %v1707
        %v1710 = vmul.f32 %v917, %v1707
        %v1711 = vmul.f32 %v918, %v1707
        %v1712 = vmul.f32 %v921, %v1707
        %v1713 = vmul.f32 %v922, %v1707
        %v1714 = vmul.f32 %v925, %v1707
        %v1715 = vmul.f32 %v926, %v1707
        %v1716 = vmul.f32 %v929, %v1707
        %v1717 = vmul.f32 %v930, %v1707
        %v1718 = vmul.f32 %v933, %v1707
        %v1719 = vmul.f32 %v934, %v1707
        %v1720 = vmul.f32 %v937, %v1707
        %v1721 = vmul.f32 %v938, %v1707
        %v1722 = vmul.f32 %v941, %v1707
        %v1723 = vmul.f32 %v942, %v1707
        %v1724 = vmul.f32 %v945, %v1707
        %v1725 = vmul.f32 %v946, %v1707
        %v1726 = vmul.f32 %v949, %v1707
        %v1727 = vmul.f32 %v950, %v1707
        %v1728 = vmul.f32 %v953, %v1707
        %v1729 = vmul.f32 %v954, %v1707
        %v1730 = vmul.f32 %v957, %v1707
        %v1731 = vmul.f32 %v958, %v1707
        %v1732 = vmul.f32 %v961, %v1707
        %v1733 = vmul.f32 %v962, %v1707
        %v1734 = vmul.f32 %v965, %v1707
        %v1735 = vmul.f32 %v966, %v1707
        %v1736 = vmul.f32 %v969, %v1707
        %v1737 = vmul.f32 %v970, %v1707
        %v1738 = vmul.f32 %v973, %v1707
        %v1739 = vmul.f32 %v974, %v1707
        %v1772 = vrot.slane %v1708, 1
        %v1773 = vrot.slane %v1709, 1
        %v1774 = vsel %vm1347, %v1772, %v1773
        %v1775 = vrot.slane %v1710, 1
        %v1776 = vrot.slane %v1711, 1
        %v1777 = vsel %vm1347, %v1775, %v1776
        %v1778 = vrot.slane %v1712, 1
        %v1779 = vrot.slane %v1713, 1
        %v1780 = vsel %vm1347, %v1778, %v1779
        %v1781 = vrot.slane %v1714, 1
        %v1782 = vrot.slane %v1715, 1
        %v1783 = vsel %vm1347, %v1781, %v1782
        %v1784 = vrot.slane %v1716, 1
        %v1785 = vrot.slane %v1717, 1
        %v1786 = vsel %vm1347, %v1784, %v1785
        %v1787 = vrot.slane %v1718, 1
        %v1788 = vrot.slane %v1719, 1
        %v1789 = vsel %vm1347, %v1787, %v1788
        %v1790 = vrot.slane %v1720, 1
        %v1791 = vrot.slane %v1721, 1
        %v1792 = vsel %vm1347, %v1790, %v1791
        %v1793 = vrot.slane %v1722, 1
        %v1794 = vrot.slane %v1723, 1
        %v1795 = vsel %vm1347, %v1793, %v1794
        %v1796 = vrot.slane %v1724, 1
        %v1797 = vrot.slane %v1725, 1
        %v1798 = vsel %vm1347, %v1796, %v1797
        %v1799 = vrot.slane %v1726, 1
        %v1800 = vrot.slane %v1727, 1
        %v1801 = vsel %vm1347, %v1799, %v1800
        %v1802 = vrot.slane %v1728, 1
        %v1803 = vrot.slane %v1729, 1
        %v1804 = vsel %vm1347, %v1802, %v1803
        %v1805 = vrot.slane %v1730, 1
        %v1806 = vrot.slane %v1731, 1
        %v1807 = vsel %vm1347, %v1805, %v1806
        %v1808 = vrot.slane %v1732, 1
        %v1809 = vrot.slane %v1733, 1
        %v1810 = vsel %vm1347, %v1808, %v1809
        %v1811 = vrot.slane %v1734, 1
        %v1812 = vrot.slane %v1735, 1
        %v1813 = vsel %vm1347, %v1811, %v1812
        %v1814 = vrot.slane %v1736, 1
        %v1815 = vrot.slane %v1737, 1
        %v1816 = vsel %vm1347, %v1814, %v1815
        %v1817 = vrot.slane %v1738, 1
        %v1818 = vrot.slane %v1739, 1
        %v1819 = vsel %vm1347, %v1817, %v1818
        %v1868 = vadd.f32 %v1656, %v1772
        %v1869 = vadd.f32 %v1657, %v1774
        %v1870 = vadd.f32 %v1658, %v1773
        %v1871 = vadd.f32 %v1659, %v1775
        %v1872 = vadd.f32 %v1660, %v1777
        %v1873 = vadd.f32 %v1661, %v1776
        %v1874 = vadd.f32 %v1662, %v1778
        %v1875 = vadd.f32 %v1663, %v1780
        %v1876 = vadd.f32 %v1664, %v1779
        %v1877 = vadd.f32 %v1665, %v1781
        %v1878 = vadd.f32 %v1666, %v1783
        %v1879 = vadd.f32 %v1667, %v1782
        %v1880 = vadd.f32 %v1668, %v1784
        %v1881 = vadd.f32 %v1669, %v1786
        %v1882 = vadd.f32 %v1670, %v1785
        %v1883 = vadd.f32 %v1671, %v1787
        %v1884 = vadd.f32 %v1672, %v1789
        %v1885 = vadd.f32 %v1673, %v1788
        %v1886 = vadd.f32 %v1674, %v1790
        %v1887 = vadd.f32 %v1675, %v1792
        %v1888 = vadd.f32 %v1676, %v1791
        %v1889 = vadd.f32 %v1677, %v1793
        %v1890 = vadd.f32 %v1678, %v1795
        %v1891 = vadd.f32 %v1679, %v1794
        %v1892 = vadd.f32 %v1680, %v1796
        %v1893 = vadd.f32 %v1681, %v1798
        %v1894 = vadd.f32 %v1682, %v1797
        %v1895 = vadd.f32 %v1683, %v1799
        %v1896 = vadd.f32 %v1684, %v1801
        %v1897 = vadd.f32 %v1685, %v1800
        %v1898 = vadd.f32 %v1686, %v1802
        %v1899 = vadd.f32 %v1687, %v1804
        %v1900 = vadd.f32 %v1688, %v1803
        %v1901 = vadd.f32 %v1689, %v1805
        %v1902 = vadd.f32 %v1690, %v1807
        %v1903 = vadd.f32 %v1691, %v1806
        %v1904 = vadd.f32 %v1692, %v1808
        %v1905 = vadd.f32 %v1693, %v1810
        %v1906 = vadd.f32 %v1694, %v1809
        %v1907 = vadd.f32 %v1695, %v1811
        %v1908 = vadd.f32 %v1696, %v1813
        %v1909 = vadd.f32 %v1697, %v1812
        %v1910 = vadd.f32 %v1698, %v1814
        %v1911 = vadd.f32 %v1699, %v1816
        %v1912 = vadd.f32 %v1700, %v1815
        %v1913 = vadd.f32 %v1701, %v1817
        %v1914 = vadd.f32 %v1702, %v1819
        %v1915 = vadd.f32 %v1703, %v1818
        %v1916 = vlaneseq
        %v1917 = vshrl.u32 %v1916, 7
        %v1918 = vsub.s32 2, %v1917
        %v1919 = vrot.slane %v976, %v1918
        %v1920 = vmul.f32 %v905, %v1919
        %v1921 = vmul.f32 %v906, %v1919
        %v1922 = vmul.f32 %v907, %v1919
        %v1923 = vmul.f32 %v909, %v1919
        %v1924 = vmul.f32 %v910, %v1919
        %v1925 = vmul.f32 %v911, %v1919
        %v1926 = vmul.f32 %v913, %v1919
        %v1927 = vmul.f32 %v914, %v1919
        %v1928 = vmul.f32 %v915, %v1919
        %v1929 = vmul.f32 %v917, %v1919
        %v1930 = vmul.f32 %v918, %v1919
        %v1931 = vmul.f32 %v919, %v1919
        %v1932 = vmul.f32 %v921, %v1919
        %v1933 = vmul.f32 %v922, %v1919
        %v1934 = vmul.f32 %v923, %v1919
        %v1935 = vmul.f32 %v925, %v1919
        %v1936 = vmul.f32 %v926, %v1919
        %v1937 = vmul.f32 %v927, %v1919
        %v1938 = vmul.f32 %v929, %v1919
        %v1939 = vmul.f32 %v930, %v1919
        %v1940 = vmul.f32 %v931, %v1919
        %v1941 = vmul.f32 %v933, %v1919
        %v1942 = vmul.f32 %v934, %v1919
        %v1943 = vmul.f32 %v935, %v1919
        %v1944 = vmul.f32 %v937, %v1919
        %v1945 = vmul.f32 %v938, %v1919
        %v1946 = vmul.f32 %v939, %v1919
        %v1947 = vmul.f32 %v941, %v1919
        %v1948 = vmul.f32 %v942, %v1919
        %v1949 = vmul.f32 %v943, %v1919
        %v1950 = vmul.f32 %v945, %v1919
        %v1951 = vmul.f32 %v946, %v1919
        %v1952 = vmul.f32 %v947, %v1919
        %v1953 = vmul.f32 %v949, %v1919
        %v1954 = vmul.f32 %v950, %v1919
        %v1955 = vmul.f32 %v951, %v1919
        %v1956 = vmul.f32 %v953, %v1919
        %v1957 = vmul.f32 %v954, %v1919
        %v1958 = vmul.f32 %v955, %v1919
        %v1959 = vmul.f32 %v957, %v1919
        %v1960 = vmul.f32 %v958, %v1919
        %v1961 = vmul.f32 %v959, %v1919
        %v1962 = vmul.f32 %v961, %v1919
        %v1963 = vmul.f32 %v962, %v1919
        %v1964 = vmul.f32 %v963, %v1919
        %v1965 = vmul.f32 %v965, %v1919
        %v1966 = vmul.f32 %v966, %v1919
        %v1967 = vmul.f32 %v967, %v1919
        %vm2016 = vcmask 1045504
        %v2017 = vrot.slane %v1920, 2
        %v2018 = vrot.slane %v1921, 2
        %v2019 = vsel %vm2016, %v2017, %v2018
        %v2020 = vrot.slane %v1922, 2
        %v2021 = vsel %vm2016, %v2018, %v2020
        %v2022 = vrot.slane %v1923, 2
        %v2023 = vrot.slane %v1924, 2
        %v2024 = vsel %vm2016, %v2022, %v2023
        %v2025 = vrot.slane %v1925, 2
        %v2026 = vsel %vm2016, %v2023, %v2025
        %v2027 = vrot.slane %v1926, 2
        %v2028 = vrot.slane %v1927, 2
        %v2029 = vsel %vm2016, %v2027, %v2028
        %v2030 = vrot.slane %v1928, 2
        %v2031 = vsel %vm2016, %v2028, %v2030
        %v2032 = vrot.slane %v1929, 2
        %v2033 = vrot.slane %v1930, 2
        %v2034 = vsel %vm2016, %v2032, %v2033
        %v2035 = vrot.slane %v1931, 2
        %v2036 = vsel %vm2016, %v2033, %v2035
        %v2037 = vrot.slane %v1932, 2
        %v2038 = vrot.slane %v1933, 2
        %v2039 = vsel %vm2016, %v2037, %v2038
        %v2040 = vrot.slane %v1934, 2
        %v2041 = vsel %vm2016, %v2038, %v2040
        %v2042 = vrot.slane %v1935, 2
        %v2043 = vrot.slane %v1936, 2
        %v2044 = vsel %vm2016, %v2042, %v2043
        %v2045 = vrot.slane %v1937, 2
        %v2046 = vsel %vm2016, %v2043, %v2045
        %v2047 = vrot.slane %v1938, 2
        %v2048 = vrot.slane %v1939, 2
        %v2049 = vsel %vm2016, %v2047, %v2048
        %v2050 = vrot.slane %v1940, 2
        %v2051 = vsel %vm2016, %v2048, %v2050
        %v2052 = vrot.slane %v1941, 2
        %v2053 = vrot.slane %v1942, 2
        %v2054 = vsel %vm2016, %v2052, %v2053
        %v2055 = vrot.slane %v1943, 2
        %v2056 = vsel %vm2016, %v2053, %v2055
        %v2057 = vrot.slane %v1944, 2
        %v2058 = vrot.slane %v1945, 2
        %v2059 = vsel %vm2016, %v2057, %v2058
        %v2060 = vrot.slane %v1946, 2
        %v2061 = vsel %vm2016, %v2058, %v2060
        %v2062 = vrot.slane %v1947, 2
        %v2063 = vrot.slane %v1948, 2
        %v2064 = vsel %vm2016, %v2062, %v2063
        %v2065 = vrot.slane %v1949, 2
        %v2066 = vsel %vm2016, %v2063, %v2065
        %v2067 = vrot.slane %v1950, 2
        %v2068 = vrot.slane %v1951, 2
        %v2069 = vsel %vm2016, %v2067, %v2068
        %v2070 = vrot.slane %v1952, 2
        %v2071 = vsel %vm2016, %v2068, %v2070
        %v2072 = vrot.slane %v1953, 2
        %v2073 = vrot.slane %v1954, 2
        %v2074 = vsel %vm2016, %v2072, %v2073
        %v2075 = vrot.slane %v1955, 2
        %v2076 = vsel %vm2016, %v2073, %v2075
        %v2077 = vrot.slane %v1956, 2
        %v2078 = vrot.slane %v1957, 2
        %v2079 = vsel %vm2016, %v2077, %v2078
        %v2080 = vrot.slane %v1958, 2
        %v2081 = vsel %vm2016, %v2078, %v2080
        %v2082 = vrot.slane %v1959, 2
        %v2083 = vrot.slane %v1960, 2
        %v2084 = vsel %vm2016, %v2082, %v2083
        %v2085 = vrot.slane %v1961, 2
        %v2086 = vsel %vm2016, %v2083, %v2085
        %v2087 = vrot.slane %v1962, 2
        %v2088 = vrot.slane %v1963, 2
        %v2089 = vsel %vm2016, %v2087, %v2088
        %v2090 = vrot.slane %v1964, 2
        %v2091 = vsel %vm2016, %v2088, %v2090
        %v2092 = vrot.slane %v1965, 2
        %v2093 = vrot.slane %v1966, 2
        %v2094 = vsel %vm2016, %v2092, %v2093
        %v2095 = vrot.slane %v1967, 2
        %v2096 = vsel %vm2016, %v2093, %v2095
        %v2145 = vadd.f32 %v1868, %v2017
        %v2146 = vadd.f32 %v1869, %v2019
        %v2147 = vadd.f32 %v1870, %v2021
        %v2148 = vadd.f32 %v1871, %v2022
        %v2149 = vadd.f32 %v1872, %v2024
        %v2150 = vadd.f32 %v1873, %v2026
        %v2151 = vadd.f32 %v1874, %v2027
        %v2152 = vadd.f32 %v1875, %v2029
        %v2153 = vadd.f32 %v1876, %v2031
        %v2154 = vadd.f32 %v1877, %v2032
        %v2155 = vadd.f32 %v1878, %v2034
        %v2156 = vadd.f32 %v1879, %v2036
        %v2157 = vadd.f32 %v1880, %v2037
        %v2158 = vadd.f32 %v1881, %v2039
        %v2159 = vadd.f32 %v1882, %v2041
        %v2160 = vadd.f32 %v1883, %v2042
        %v2161 = vadd.f32 %v1884, %v2044
        %v2162 = vadd.f32 %v1885, %v2046
        %v2163 = vadd.f32 %v1886, %v2047
        %v2164 = vadd.f32 %v1887, %v2049
        %v2165 = vadd.f32 %v1888, %v2051
        %v2166 = vadd.f32 %v1889, %v2052
        %v2167 = vadd.f32 %v1890, %v2054
        %v2168 = vadd.f32 %v1891, %v2056
        %v2169 = vadd.f32 %v1892, %v2057
        %v2170 = vadd.f32 %v1893, %v2059
        %v2171 = vadd.f32 %v1894, %v2061
        %v2172 = vadd.f32 %v1895, %v2062
        %v2173 = vadd.f32 %v1896, %v2064
        %v2174 = vadd.f32 %v1897, %v2066
        %v2175 = vadd.f32 %v1898, %v2067
        %v2176 = vadd.f32 %v1899, %v2069
        %v2177 = vadd.f32 %v1900, %v2071
        %v2178 = vadd.f32 %v1901, %v2072
        %v2179 = vadd.f32 %v1902, %v2074
        %v2180 = vadd.f32 %v1903, %v2076
        %v2181 = vadd.f32 %v1904, %v2077
        %v2182 = vadd.f32 %v1905, %v2079
        %v2183 = vadd.f32 %v1906, %v2081
        %v2184 = vadd.f32 %v1907, %v2082
        %v2185 = vadd.f32 %v1908, %v2084
        %v2186 = vadd.f32 %v1909, %v2086
        %v2187 = vadd.f32 %v1910, %v2087
        %v2188 = vadd.f32 %v1911, %v2089
        %v2189 = vadd.f32 %v1912, %v2091
        %v2190 = vadd.f32 %v1913, %v2092
        %v2191 = vadd.f32 %v1914, %v2094
        %v2192 = vadd.f32 %v1915, %v2096
        %v2193 = vlaneseq
        %v2194 = vshrl.u32 %v2193, 7
        %v2195 = vsub.s32 2, %v2194
        %v2196 = vrot.slane %v977, %v2195
        %v2197 = vmul.f32 %v909, %v2196
        %v2198 = vmul.f32 %v910, %v2196
        %v2199 = vmul.f32 %v911, %v2196
        %v2200 = vmul.f32 %v913, %v2196
        %v2201 = vmul.f32 %v914, %v2196
        %v2202 = vmul.f32 %v915, %v2196
        %v2203 = vmul.f32 %v917, %v2196
        %v2204 = vmul.f32 %v918, %v2196
        %v2205 = vmul.f32 %v919, %v2196
        %v2206 = vmul.f32 %v921, %v2196
        %v2207 = vmul.f32 %v922, %v2196
        %v2208 = vmul.f32 %v923, %v2196
        %v2209 = vmul.f32 %v925, %v2196
        %v2210 = vmul.f32 %v926, %v2196
        %v2211 = vmul.f32 %v927, %v2196
        %v2212 = vmul.f32 %v929, %v2196
        %v2213 = vmul.f32 %v930, %v2196
        %v2214 = vmul.f32 %v931, %v2196
        %v2215 = vmul.f32 %v933, %v2196
        %v2216 = vmul.f32 %v934, %v2196
        %v2217 = vmul.f32 %v935, %v2196
        %v2218 = vmul.f32 %v937, %v2196
        %v2219 = vmul.f32 %v938, %v2196
        %v2220 = vmul.f32 %v939, %v2196
        %v2221 = vmul.f32 %v941, %v2196
        %v2222 = vmul.f32 %v942, %v2196
        %v2223 = vmul.f32 %v943, %v2196
        %v2224 = vmul.f32 %v945, %v2196
        %v2225 = vmul.f32 %v946, %v2196
        %v2226 = vmul.f32 %v947, %v2196
        %v2227 = vmul.f32 %v949, %v2196
        %v2228 = vmul.f32 %v950, %v2196
        %v2229 = vmul.f32 %v951, %v2196
        %v2230 = vmul.f32 %v953, %v2196
        %v2231 = vmul.f32 %v954, %v2196
        %v2232 = vmul.f32 %v955, %v2196
        %v2233 = vmul.f32 %v957, %v2196
        %v2234 = vmul.f32 %v958, %v2196
        %v2235 = vmul.f32 %v959, %v2196
        %v2236 = vmul.f32 %v961, %v2196
        %v2237 = vmul.f32 %v962, %v2196
        %v2238 = vmul.f32 %v963, %v2196
        %v2239 = vmul.f32 %v965, %v2196
        %v2240 = vmul.f32 %v966, %v2196
        %v2241 = vmul.f32 %v967, %v2196
        %v2242 = vmul.f32 %v969, %v2196
        %v2243 = vmul.f32 %v970, %v2196
        %v2244 = vmul.f32 %v971, %v2196
        %v2293 = vrot.slane %v2197, 2
        %v2294 = vrot.slane %v2198, 2
        %v2295 = vsel %vm2016, %v2293, %v2294
        %v2296 = vrot.slane %v2199, 2
        %v2297 = vsel %vm2016, %v2294, %v2296
        %v2298 = vrot.slane %v2200, 2
        %v2299 = vrot.slane %v2201, 2
        %v2300 = vsel %vm2016, %v2298, %v2299
        %v2301 = vrot.slane %v2202, 2
        %v2302 = vsel %vm2016, %v2299, %v2301
        %v2303 = vrot.slane %v2203, 2
        %v2304 = vrot.slane %v2204, 2
        %v2305 = vsel %vm2016, %v2303, %v2304
        %v2306 = vrot.slane %v2205, 2
        %v2307 = vsel %vm2016, %v2304, %v2306
        %v2308 = vrot.slane %v2206, 2
        %v2309 = vrot.slane %v2207, 2
        %v2310 = vsel %vm2016, %v2308, %v2309
        %v2311 = vrot.slane %v2208, 2
        %v2312 = vsel %vm2016, %v2309, %v2311
        %v2313 = vrot.slane %v2209, 2
        %v2314 = vrot.slane %v2210, 2
        %v2315 = vsel %vm2016, %v2313, %v2314
        %v2316 = vrot.slane %v2211, 2
        %v2317 = vsel %vm2016, %v2314, %v2316
        %v2318 = vrot.slane %v2212, 2
        %v2319 = vrot.slane %v2213, 2
        %v2320 = vsel %vm2016, %v2318, %v2319
        %v2321 = vrot.slane %v2214, 2
        %v2322 = vsel %vm2016, %v2319, %v2321
        %v2323 = vrot.slane %v2215, 2
        %v2324 = vrot.slane %v2216, 2
        %v2325 = vsel %vm2016, %v2323, %v2324
        %v2326 = vrot.slane %v2217, 2
        %v2327 = vsel %vm2016, %v2324, %v2326
        %v2328 = vrot.slane %v2218, 2
        %v2329 = vrot.slane %v2219, 2
        %v2330 = vsel %vm2016, %v2328, %v2329
        %v2331 = vrot.slane %v2220, 2
        %v2332 = vsel %vm2016, %v2329, %v2331
        %v2333 = vrot.slane %v2221, 2
        %v2334 = vrot.slane %v2222, 2
        %v2335 = vsel %vm2016, %v2333, %v2334
        %v2336 = vrot.slane %v2223, 2
        %v2337 = vsel %vm2016, %v2334, %v2336
        %v2338 = vrot.slane %v2224, 2
        %v2339 = vrot.slane %v2225, 2
        %v2340 = vsel %vm2016, %v2338, %v2339
        %v2341 = vrot.slane %v2226, 2
        %v2342 = vsel %vm2016, %v2339, %v2341
        %v2343 = vrot.slane %v2227, 2
        %v2344 = vrot.slane %v2228, 2
        %v2345 = vsel %vm2016, %v2343, %v2344
        %v2346 = vrot.slane %v2229, 2
        %v2347 = vsel %vm2016, %v2344, %v2346
        %v2348 = vrot.slane %v2230, 2
        %v2349 = vrot.slane %v2231, 2
        %v2350 = vsel %vm2016, %v2348, %v2349
        %v2351 = vrot.slane %v2232, 2
        %v2352 = vsel %vm2016, %v2349, %v2351
        %v2353 = vrot.slane %v2233, 2
        %v2354 = vrot.slane %v2234, 2
        %v2355 = vsel %vm2016, %v2353, %v2354
        %v2356 = vrot.slane %v2235, 2
        %v2357 = vsel %vm2016, %v2354, %v2356
        %v2358 = vrot.slane %v2236, 2
        %v2359 = vrot.slane %v2237, 2
        %v2360 = vsel %vm2016, %v2358, %v2359
        %v2361 = vrot.slane %v2238, 2
        %v2362 = vsel %vm2016, %v2359, %v2361
        %v2363 = vrot.slane %v2239, 2
        %v2364 = vrot.slane %v2240, 2
        %v2365 = vsel %vm2016, %v2363, %v2364
        %v2366 = vrot.slane %v2241, 2
        %v2367 = vsel %vm2016, %v2364, %v2366
        %v2368 = vrot.slane %v2242, 2
        %v2369 = vrot.slane %v2243, 2
        %v2370 = vsel %vm2016, %v2368, %v2369
        %v2371 = vrot.slane %v2244, 2
        %v2372 = vsel %vm2016, %v2369, %v2371
        %v2421 = vadd.f32 %v2145, %v2293
        %v2422 = vadd.f32 %v2146, %v2295
        %v2423 = vadd.f32 %v2147, %v2297
        %v2424 = vadd.f32 %v2148, %v2298
        %v2425 = vadd.f32 %v2149, %v2300
        %v2426 = vadd.f32 %v2150, %v2302
        %v2427 = vadd.f32 %v2151, %v2303
        %v2428 = vadd.f32 %v2152, %v2305
        %v2429 = vadd.f32 %v2153, %v2307
        %v2430 = vadd.f32 %v2154, %v2308
        %v2431 = vadd.f32 %v2155, %v2310
        %v2432 = vadd.f32 %v2156, %v2312
        %v2433 = vadd.f32 %v2157, %v2313
        %v2434 = vadd.f32 %v2158, %v2315
        %v2435 = vadd.f32 %v2159, %v2317
        %v2436 = vadd.f32 %v2160, %v2318
        %v2437 = vadd.f32 %v2161, %v2320
        %v2438 = vadd.f32 %v2162, %v2322
        %v2439 = vadd.f32 %v2163, %v2323
        %v2440 = vadd.f32 %v2164, %v2325
        %v2441 = vadd.f32 %v2165, %v2327
        %v2442 = vadd.f32 %v2166, %v2328
        %v2443 = vadd.f32 %v2167, %v2330
        %v2444 = vadd.f32 %v2168, %v2332
        %v2445 = vadd.f32 %v2169, %v2333
        %v2446 = vadd.f32 %v2170, %v2335
        %v2447 = vadd.f32 %v2171, %v2337
        %v2448 = vadd.f32 %v2172, %v2338
        %v2449 = vadd.f32 %v2173, %v2340
        %v2450 = vadd.f32 %v2174, %v2342
        %v2451 = vadd.f32 %v2175, %v2343
        %v2452 = vadd.f32 %v2176, %v2345
        %v2453 = vadd.f32 %v2177, %v2347
        %v2454 = vadd.f32 %v2178, %v2348
        %v2455 = vadd.f32 %v2179, %v2350
        %v2456 = vadd.f32 %v2180, %v2352
        %v2457 = vadd.f32 %v2181, %v2353
        %v2458 = vadd.f32 %v2182, %v2355
        %v2459 = vadd.f32 %v2183, %v2357
        %v2460 = vadd.f32 %v2184, %v2358
        %v2461 = vadd.f32 %v2185, %v2360
        %v2462 = vadd.f32 %v2186, %v2362
        %v2463 = vadd.f32 %v2187, %v2363
        %v2464 = vadd.f32 %v2188, %v2365
        %v2465 = vadd.f32 %v2189, %v2367
        %v2466 = vadd.f32 %v2190, %v2368
        %v2467 = vadd.f32 %v2191, %v2370
        %v2468 = vadd.f32 %v2192, %v2372
        %v2469 = vlaneseq
        %v2470 = vshrl.u32 %v2469, 7
        %v2471 = vsub.s32 2, %v2470
        %v2472 = vrot.slane %v978, %v2471
        %v2473 = vmul.f32 %v913, %v2472
        %v2474 = vmul.f32 %v914, %v2472
        %v2475 = vmul.f32 %v915, %v2472
        %v2476 = vmul.f32 %v917, %v2472
        %v2477 = vmul.f32 %v918, %v2472
        %v2478 = vmul.f32 %v919, %v2472
        %v2479 = vmul.f32 %v921, %v2472
        %v2480 = vmul.f32 %v922, %v2472
        %v2481 = vmul.f32 %v923, %v2472
        %v2482 = vmul.f32 %v925, %v2472
        %v2483 = vmul.f32 %v926, %v2472
        %v2484 = vmul.f32 %v927, %v2472
        %v2485 = vmul.f32 %v929, %v2472
        %v2486 = vmul.f32 %v930, %v2472
        %v2487 = vmul.f32 %v931, %v2472
        %v2488 = vmul.f32 %v933, %v2472
        %v2489 = vmul.f32 %v934, %v2472
        %v2490 = vmul.f32 %v935, %v2472
        %v2491 = vmul.f32 %v937, %v2472
        %v2492 = vmul.f32 %v938, %v2472
        %v2493 = vmul.f32 %v939, %v2472
        %v2494 = vmul.f32 %v941, %v2472
        %v2495 = vmul.f32 %v942, %v2472
        %v2496 = vmul.f32 %v943, %v2472
        %v2497 = vmul.f32 %v945, %v2472
        %v2498 = vmul.f32 %v946, %v2472
        %v2499 = vmul.f32 %v947, %v2472
        %v2500 = vmul.f32 %v949, %v2472
        %v2501 = vmul.f32 %v950, %v2472
        %v2502 = vmul.f32 %v951, %v2472
        %v2503 = vmul.f32 %v953, %v2472
        %v2504 = vmul.f32 %v954, %v2472
        %v2505 = vmul.f32 %v955, %v2472
        %v2506 = vmul.f32 %v957, %v2472
        %v2507 = vmul.f32 %v958, %v2472
        %v2508 = vmul.f32 %v959, %v2472
        %v2509 = vmul.f32 %v961, %v2472
        %v2510 = vmul.f32 %v962, %v2472
        %v2511 = vmul.f32 %v963, %v2472
        %v2512 = vmul.f32 %v965, %v2472
        %v2513 = vmul.f32 %v966, %v2472
        %v2514 = vmul.f32 %v967, %v2472
        %v2515 = vmul.f32 %v969, %v2472
        %v2516 = vmul.f32 %v970, %v2472
        %v2517 = vmul.f32 %v971, %v2472
        %v2518 = vmul.f32 %v973, %v2472
        %v2519 = vmul.f32 %v974, %v2472
        %v2520 = vmul.f32 %v975, %v2472
        %v2569 = vrot.slane %v2473, 2
        %v2570 = vrot.slane %v2474, 2
        %v2571 = vsel %vm2016, %v2569, %v2570
        %v2572 = vrot.slane %v2475, 2
        %v2573 = vsel %vm2016, %v2570, %v2572
        %v2574 = vrot.slane %v2476, 2
        %v2575 = vrot.slane %v2477, 2
        %v2576 = vsel %vm2016, %v2574, %v2575
        %v2577 = vrot.slane %v2478, 2
        %v2578 = vsel %vm2016, %v2575, %v2577
        %v2579 = vrot.slane %v2479, 2
        %v2580 = vrot.slane %v2480, 2
        %v2581 = vsel %vm2016, %v2579, %v2580
        %v2582 = vrot.slane %v2481, 2
        %v2583 = vsel %vm2016, %v2580, %v2582
        %v2584 = vrot.slane %v2482, 2
        %v2585 = vrot.slane %v2483, 2
        %v2586 = vsel %vm2016, %v2584, %v2585
        %v2587 = vrot.slane %v2484, 2
        %v2588 = vsel %vm2016, %v2585, %v2587
        %v2589 = vrot.slane %v2485, 2
        %v2590 = vrot.slane %v2486, 2
        %v2591 = vsel %vm2016, %v2589, %v2590
        %v2592 = vrot.slane %v2487, 2
        %v2593 = vsel %vm2016, %v2590, %v2592
        %v2594 = vrot.slane %v2488, 2
        %v2595 = vrot.slane %v2489, 2
        %v2596 = vsel %vm2016, %v2594, %v2595
        %v2597 = vrot.slane %v2490, 2
        %v2598 = vsel %vm2016, %v2595, %v2597
        %v2599 = vrot.slane %v2491, 2
        %v2600 = vrot.slane %v2492, 2
        %v2601 = vsel %vm2016, %v2599, %v2600
        %v2602 = vrot.slane %v2493, 2
        %v2603 = vsel %vm2016, %v2600, %v2602
        %v2604 = vrot.slane %v2494, 2
        %v2605 = vrot.slane %v2495, 2
        %v2606 = vsel %vm2016, %v2604, %v2605
        %v2607 = vrot.slane %v2496, 2
        %v2608 = vsel %vm2016, %v2605, %v2607
        %v2609 = vrot.slane %v2497, 2
        %v2610 = vrot.slane %v2498, 2
        %v2611 = vsel %vm2016, %v2609, %v2610
        %v2612 = vrot.slane %v2499, 2
        %v2613 = vsel %vm2016, %v2610, %v2612
        %v2614 = vrot.slane %v2500, 2
        %v2615 = vrot.slane %v2501, 2
        %v2616 = vsel %vm2016, %v2614, %v2615
        %v2617 = vrot.slane %v2502, 2
        %v2618 = vsel %vm2016, %v2615, %v2617
        %v2619 = vrot.slane %v2503, 2
        %v2620 = vrot.slane %v2504, 2
        %v2621 = vsel %vm2016, %v2619, %v2620
        %v2622 = vrot.slane %v2505, 2
        %v2623 = vsel %vm2016, %v2620, %v2622
        %v2624 = vrot.slane %v2506, 2
        %v2625 = vrot.slane %v2507, 2
        %v2626 = vsel %vm2016, %v2624, %v2625
        %v2627 = vrot.slane %v2508, 2
        %v2628 = vsel %vm2016, %v2625, %v2627
        %v2629 = vrot.slane %v2509, 2
        %v2630 = vrot.slane %v2510, 2
        %v2631 = vsel %vm2016, %v2629, %v2630
        %v2632 = vrot.slane %v2511, 2
        %v2633 = vsel %vm2016, %v2630, %v2632
        %v2634 = vrot.slane %v2512, 2
        %v2635 = vrot.slane %v2513, 2
        %v2636 = vsel %vm2016, %v2634, %v2635
        %v2637 = vrot.slane %v2514, 2
        %v2638 = vsel %vm2016, %v2635, %v2637
        %v2639 = vrot.slane %v2515, 2
        %v2640 = vrot.slane %v2516, 2
        %v2641 = vsel %vm2016, %v2639, %v2640
        %v2642 = vrot.slane %v2517, 2
        %v2643 = vsel %vm2016, %v2640, %v2642
        %v2644 = vrot.slane %v2518, 2
        %v2645 = vrot.slane %v2519, 2
        %v2646 = vsel %vm2016, %v2644, %v2645
        %v2647 = vrot.slane %v2520, 2
        %v2648 = vsel %vm2016, %v2645, %v2647
        %v2697 = vadd.f32 %v2421, %v2569
        %v2698 = vadd.f32 %v2422, %v2571
        %v2699 = vadd.f32 %v2423, %v2573
        %v2700 = vadd.f32 %v2424, %v2574
        %v2701 = vadd.f32 %v2425, %v2576
        %v2702 = vadd.f32 %v2426, %v2578
        %v2703 = vadd.f32 %v2427, %v2579
        %v2704 = vadd.f32 %v2428, %v2581
        %v2705 = vadd.f32 %v2429, %v2583
        %v2706 = vadd.f32 %v2430, %v2584
        %v2707 = vadd.f32 %v2431, %v2586
        %v2708 = vadd.f32 %v2432, %v2588
        %v2709 = vadd.f32 %v2433, %v2589
        %v2710 = vadd.f32 %v2434, %v2591
        %v2711 = vadd.f32 %v2435, %v2593
        %v2712 = vadd.f32 %v2436, %v2594
        %v2713 = vadd.f32 %v2437, %v2596
        %v2714 = vadd.f32 %v2438, %v2598
        %v2715 = vadd.f32 %v2439, %v2599
        %v2716 = vadd.f32 %v2440, %v2601
        %v2717 = vadd.f32 %v2441, %v2603
        %v2718 = vadd.f32 %v2442, %v2604
        %v2719 = vadd.f32 %v2443, %v2606
        %v2720 = vadd.f32 %v2444, %v2608
        %v2721 = vadd.f32 %v2445, %v2609
        %v2722 = vadd.f32 %v2446, %v2611
        %v2723 = vadd.f32 %v2447, %v2613
        %v2724 = vadd.f32 %v2448, %v2614
        %v2725 = vadd.f32 %v2449, %v2616
        %v2726 = vadd.f32 %v2450, %v2618
        %v2727 = vadd.f32 %v2451, %v2619
        %v2728 = vadd.f32 %v2452, %v2621
        %v2729 = vadd.f32 %v2453, %v2623
        %v2730 = vadd.f32 %v2454, %v2624
        %v2731 = vadd.f32 %v2455, %v2626
        %v2732 = vadd.f32 %v2456, %v2628
        %v2733 = vadd.f32 %v2457, %v2629
        %v2734 = vadd.f32 %v2458, %v2631
        %v2735 = vadd.f32 %v2459, %v2633
        %v2736 = vadd.f32 %v2460, %v2634
        %v2737 = vadd.f32 %v2461, %v2636
        %v2738 = vadd.f32 %v2462, %v2638
        %v2739 = vadd.f32 %v2463, %v2639
        %v2740 = vadd.f32 %v2464, %v2641
        %v2741 = vadd.f32 %v2465, %v2643
        %v2742 = vadd.f32 %v2466, %v2644
        %v2743 = vadd.f32 %v2467, %v2646
        %v2744 = vadd.f32 %v2468, %v2648
        %v2745 = vld [vmem:[%s4] sm:$0x1]
        %v2747 = vlaneseq
        %v2748 = vshrl.u32 %v2747, 7
        %v2749 = vsub.s32 0, %v2748
        %v2750 = vrot.slane %v2745, %v2749
        %v2752 = vadd.f32 %v2697, %v2750
        %v2753 = vadd.f32 %v2698, %v2750
        %v2754 = vadd.f32 %v2699, %v2750
        %v2755 = vadd.f32 %v2700, %v2750
        %v2756 = vadd.f32 %v2701, %v2750
        %v2757 = vadd.f32 %v2702, %v2750
        %v2758 = vadd.f32 %v2703, %v2750
        %v2759 = vadd.f32 %v2704, %v2750
        %v2760 = vadd.f32 %v2705, %v2750
        %v2761 = vadd.f32 %v2706, %v2750
        %v2762 = vadd.f32 %v2707, %v2750
        %v2763 = vadd.f32 %v2708, %v2750
        %v2764 = vadd.f32 %v2709, %v2750
        %v2765 = vadd.f32 %v2710, %v2750
        %v2766 = vadd.f32 %v2711, %v2750
        %v2767 = vadd.f32 %v2712, %v2750
        %v2768 = vadd.f32 %v2713, %v2750
        %v2769 = vadd.f32 %v2714, %v2750
        %v2770 = vadd.f32 %v2715, %v2750
        %v2771 = vadd.f32 %v2716, %v2750
        %v2772 = vadd.f32 %v2717, %v2750
        %v2773 = vadd.f32 %v2718, %v2750
        %v2774 = vadd.f32 %v2719, %v2750
        %v2775 = vadd.f32 %v2720, %v2750
        %v2776 = vadd.f32 %v2721, %v2750
        %v2777 = vadd.f32 %v2722, %v2750
        %v2778 = vadd.f32 %v2723, %v2750
        %v2779 = vadd.f32 %v2724, %v2750
        %v2780 = vadd.f32 %v2725, %v2750
        %v2781 = vadd.f32 %v2726, %v2750
        %v2782 = vadd.f32 %v2727, %v2750
        %v2783 = vadd.f32 %v2728, %v2750
        %v2784 = vadd.f32 %v2729, %v2750
        %v2785 = vadd.f32 %v2730, %v2750
        %v2786 = vadd.f32 %v2731, %v2750
        %v2787 = vadd.f32 %v2732, %v2750
        %v2788 = vadd.f32 %v2733, %v2750
        %v2789 = vadd.f32 %v2734, %v2750
        %v2790 = vadd.f32 %v2735, %v2750
        %v2791 = vadd.f32 %v2736, %v2750
        %v2792 = vadd.f32 %v2737, %v2750
        %v2793 = vadd.f32 %v2738, %v2750
        %v2794 = vadd.f32 %v2739, %v2750
        %v2795 = vadd.f32 %v2740, %v2750
        %v2796 = vadd.f32 %v2741, %v2750
        %v2797 = vadd.f32 %v2742, %v2750
        %v2798 = vadd.f32 %v2743, %v2750
        %v2799 = vadd.f32 %v2744, %v2750
        %v2800 = vxor.u32 %v2752, 2147483648
        %v2801 = vxor.u32 %v2753, 2147483648
        %v2802 = vxor.u32 %v2754, 2147483648
        %v2803 = vxor.u32 %v2755, 2147483648
        %v2804 = vxor.u32 %v2756, 2147483648
        %v2805 = vxor.u32 %v2757, 2147483648
        %v2806 = vxor.u32 %v2758, 2147483648
        %v2807 = vxor.u32 %v2759, 2147483648
        %v2808 = vxor.u32 %v2760, 2147483648
        %v2809 = vxor.u32 %v2761, 2147483648
        %v2810 = vxor.u32 %v2762, 2147483648
        %v2811 = vxor.u32 %v2763, 2147483648
        %v2812 = vxor.u32 %v2764, 2147483648
        %v2813 = vxor.u32 %v2765, 2147483648
        %v2814 = vxor.u32 %v2766, 2147483648
        %v2815 = vxor.u32 %v2767, 2147483648
        %v2816 = vxor.u32 %v2768, 2147483648
        %v2817 = vxor.u32 %v2769, 2147483648
        %v2818 = vxor.u32 %v2770, 2147483648
        %v2819 = vxor.u32 %v2771, 2147483648
        %v2820 = vxor.u32 %v2772, 2147483648
        %v2821 = vxor.u32 %v2773, 2147483648
        %v2822 = vxor.u32 %v2774, 2147483648
        %v2823 = vxor.u32 %v2775, 2147483648
        %v2824 = vxor.u32 %v2776, 2147483648
        %v2825 = vxor.u32 %v2777, 2147483648
        %v2826 = vxor.u32 %v2778, 2147483648
        %v2827 = vxor.u32 %v2779, 2147483648
        %v2828 = vxor.u32 %v2780, 2147483648
        %v2829 = vxor.u32 %v2781, 2147483648
        %v2830 = vxor.u32 %v2782, 2147483648
        %v2831 = vxor.u32 %v2783, 2147483648
        %v2832 = vxor.u32 %v2784, 2147483648
        %v2833 = vxor.u32 %v2785, 2147483648
        %v2834 = vxor.u32 %v2786, 2147483648
        %v2835 = vxor.u32 %v2787, 2147483648
        %v2836 = vxor.u32 %v2788, 2147483648
        %v2837 = vxor.u32 %v2789, 2147483648
        %v2838 = vxor.u32 %v2790, 2147483648
        %v2839 = vxor.u32 %v2791, 2147483648
        %v2840 = vxor.u32 %v2792, 2147483648
        %v2841 = vxor.u32 %v2793, 2147483648
        %v2842 = vxor.u32 %v2794, 2147483648
        %v2843 = vxor.u32 %v2795, 2147483648
        %v2844 = vxor.u32 %v2796, 2147483648
        %v2845 = vxor.u32 %v2797, 2147483648
        %v2846 = vxor.u32 %v2798, 2147483648
        %v2847 = vxor.u32 %v2799, 2147483648
        %v2848 = vmul.f32 %v2800, 1.442695
        %v2849 = vpow.pop %v2848
        %v2850 = vmul.f32 %v2801, 1.442695
        %v2851 = vpow.pop %v2850
        %v2852 = vmul.f32 %v2802, 1.442695
        %v2853 = vpow.pop %v2852
        %v2854 = vmul.f32 %v2803, 1.442695
        %v2855 = vpow.pop %v2854
        %v2856 = vmul.f32 %v2804, 1.442695
        %v2857 = vpow.pop %v2856
        %v2858 = vmul.f32 %v2805, 1.442695
        %v2859 = vpow.pop %v2858
        %v2860 = vmul.f32 %v2806, 1.442695
        %v2861 = vpow.pop %v2860
        %v2862 = vmul.f32 %v2807, 1.442695
        %v2863 = vpow.pop %v2862
        %v2864 = vmul.f32 %v2808, 1.442695
        %v2865 = vpow.pop %v2864
        %v2866 = vmul.f32 %v2809, 1.442695
        %v2867 = vpow.pop %v2866
        %v2868 = vmul.f32 %v2810, 1.442695
        %v2869 = vpow.pop %v2868
        %v2870 = vmul.f32 %v2811, 1.442695
        %v2871 = vpow.pop %v2870
        %v2872 = vmul.f32 %v2812, 1.442695
        %v2873 = vpow.pop %v2872
        %v2874 = vmul.f32 %v2813, 1.442695
        %v2875 = vpow.pop %v2874
        %v2876 = vmul.f32 %v2814, 1.442695
        %v2877 = vpow.pop %v2876
        %v2878 = vmul.f32 %v2815, 1.442695
        %v2879 = vpow.pop %v2878
        %v2880 = vmul.f32 %v2816, 1.442695
        %v2881 = vpow.pop %v2880
        %v2882 = vmul.f32 %v2817, 1.442695
        %v2883 = vpow.pop %v2882
        %v2884 = vmul.f32 %v2818, 1.442695
        %v2885 = vpow.pop %v2884
        %v2886 = vmul.f32 %v2819, 1.442695
        %v2887 = vpow.pop %v2886
        %v2888 = vmul.f32 %v2820, 1.442695
        %v2889 = vpow.pop %v2888
        %v2890 = vmul.f32 %v2821, 1.442695
        %v2891 = vpow.pop %v2890
        %v2892 = vmul.f32 %v2822, 1.442695
        %v2893 = vpow.pop %v2892
        %v2894 = vmul.f32 %v2823, 1.442695
        %v2895 = vpow.pop %v2894
        %v2896 = vmul.f32 %v2824, 1.442695
        %v2897 = vpow.pop %v2896
        %v2898 = vmul.f32 %v2825, 1.442695
        %v2899 = vpow.pop %v2898
        %v2900 = vmul.f32 %v2826, 1.442695
        %v2901 = vpow.pop %v2900
        %v2902 = vmul.f32 %v2827, 1.442695
        %v2903 = vpow.pop %v2902
        %v2904 = vmul.f32 %v2828, 1.442695
        %v2905 = vpow.pop %v2904
        %v2906 = vmul.f32 %v2829, 1.442695
        %v2907 = vpow.pop %v2906
        %v2908 = vmul.f32 %v2830, 1.442695
        %v2909 = vpow.pop %v2908
        %v2910 = vmul.f32 %v2831, 1.442695
        %v2911 = vpow.pop %v2910
        %v2912 = vmul.f32 %v2832, 1.442695
        %v2913 = vpow.pop %v2912
        %v2914 = vmul.f32 %v2833, 1.442695
        %v2915 = vpow.pop %v2914
        %v2916 = vmul.f32 %v2834, 1.442695
        %v2917 = vpow.pop %v2916
        %v2918 = vmul.f32 %v2835, 1.442695
        %v2919 = vpow.pop %v2918
        %v2920 = vmul.f32 %v2836, 1.442695
        %v2921 = vpow.pop %v2920
        %v2922 = vmul.f32 %v2837, 1.442695
        %v2923 = vpow.pop %v2922
        %v2924 = vmul.f32 %v2838, 1.442695
        %v2925 = vpow.pop %v2924
        %v2926 = vmul.f32 %v2839, 1.442695
        %v2927 = vpow.pop %v2926
        %v2928 = vmul.f32 %v2840, 1.442695
        %v2929 = vpow.pop %v2928
        %v2930 = vmul.f32 %v2841, 1.442695
        %v2931 = vpow.pop %v2930
        %v2932 = vmul.f32 %v2842, 1.442695
        %v2933 = vpow.pop %v2932
        %v2934 = vmul.f32 %v2843, 1.442695
        %v2935 = vpow.pop %v2934
        %v2936 = vmul.f32 %v2844, 1.442695
        %v2937 = vpow.pop %v2936
        %v2938 = vmul.f32 %v2845, 1.442695
        %v2939 = vpow.pop %v2938
        %v2940 = vmul.f32 %v2846, 1.442695
        %v2941 = vpow.pop %v2940
        %v2942 = vmul.f32 %v2847, 1.442695
        %v2943 = vpow.pop %v2942
        %v2944 = vadd.f32 %v2849, 1.0
        %v2945 = vadd.f32 %v2851, 1.0
        %v2946 = vadd.f32 %v2853, 1.0
        %v2947 = vadd.f32 %v2855, 1.0
        %v2948 = vadd.f32 %v2857, 1.0
        %v2949 = vadd.f32 %v2859, 1.0
        %v2950 = vadd.f32 %v2861, 1.0
        %v2951 = vadd.f32 %v2863, 1.0
        %v2952 = vadd.f32 %v2865, 1.0
        %v2953 = vadd.f32 %v2867, 1.0
        %v2954 = vadd.f32 %v2869, 1.0
        %v2955 = vadd.f32 %v2871, 1.0
        %v2956 = vadd.f32 %v2873, 1.0
        %v2957 = vadd.f32 %v2875, 1.0
        %v2958 = vadd.f32 %v2877, 1.0
        %v2959 = vadd.f32 %v2879, 1.0
        %v2960 = vadd.f32 %v2881, 1.0
        %v2961 = vadd.f32 %v2883, 1.0
        %v2962 = vadd.f32 %v2885, 1.0
        %v2963 = vadd.f32 %v2887, 1.0
        %v2964 = vadd.f32 %v2889, 1.0
        %v2965 = vadd.f32 %v2891, 1.0
        %v2966 = vadd.f32 %v2893, 1.0
        %v2967 = vadd.f32 %v2895, 1.0
        %v2968 = vadd.f32 %v2897, 1.0
        %v2969 = vadd.f32 %v2899, 1.0
        %v2970 = vadd.f32 %v2901, 1.0
        %v2971 = vadd.f32 %v2903, 1.0
        %v2972 = vadd.f32 %v2905, 1.0
        %v2973 = vadd.f32 %v2907, 1.0
        %v2974 = vadd.f32 %v2909, 1.0
        %v2975 = vadd.f32 %v2911, 1.0
        %v2976 = vadd.f32 %v2913, 1.0
        %v2977 = vadd.f32 %v2915, 1.0
        %v2978 = vadd.f32 %v2917, 1.0
        %v2979 = vadd.f32 %v2919, 1.0
        %v2980 = vadd.f32 %v2921, 1.0
        %v2981 = vadd.f32 %v2923, 1.0
        %v2982 = vadd.f32 %v2925, 1.0
        %v2983 = vadd.f32 %v2927, 1.0
        %v2984 = vadd.f32 %v2929, 1.0
        %v2985 = vadd.f32 %v2931, 1.0
        %v2986 = vadd.f32 %v2933, 1.0
        %v2987 = vadd.f32 %v2935, 1.0
        %v2988 = vadd.f32 %v2937, 1.0
        %v2989 = vadd.f32 %v2939, 1.0
        %v2990 = vadd.f32 %v2941, 1.0
        %v2991 = vadd.f32 %v2943, 1.0
        %v2992 = vrcp.pop %v2944
        %v2993 = vmul.f32 1.0, %v2992
        %v2994 = vrcp.pop %v2945
        %v2995 = vmul.f32 1.0, %v2994
        %v2996 = vrcp.pop %v2946
        %v2997 = vmul.f32 1.0, %v2996
        %v2998 = vrcp.pop %v2947
        %v2999 = vmul.f32 1.0, %v2998
        %v3000 = vrcp.pop %v2948
        %v3001 = vmul.f32 1.0, %v3000
        %v3002 = vrcp.pop %v2949
        %v3003 = vmul.f32 1.0, %v3002
        %v3004 = vrcp.pop %v2950
        %v3005 = vmul.f32 1.0, %v3004
        %v3006 = vrcp.pop %v2951
        %v3007 = vmul.f32 1.0, %v3006
        %v3008 = vrcp.pop %v2952
        %v3009 = vmul.f32 1.0, %v3008
        %v3010 = vrcp.pop %v2953
        %v3011 = vmul.f32 1.0, %v3010
        %v3012 = vrcp.pop %v2954
        %v3013 = vmul.f32 1.0, %v3012
        %v3014 = vrcp.pop %v2955
        %v3015 = vmul.f32 1.0, %v3014
        %v3016 = vrcp.pop %v2956
        %v3017 = vmul.f32 1.0, %v3016
        %v3018 = vrcp.pop %v2957
        %v3019 = vmul.f32 1.0, %v3018
        %v3020 = vrcp.pop %v2958
        %v3021 = vmul.f32 1.0, %v3020
        %v3022 = vrcp.pop %v2959
        %v3023 = vmul.f32 1.0, %v3022
        %v3024 = vrcp.pop %v2960
        %v3025 = vmul.f32 1.0, %v3024
        %v3026 = vrcp.pop %v2961
        %v3027 = vmul.f32 1.0, %v3026
        %v3028 = vrcp.pop %v2962
        %v3029 = vmul.f32 1.0, %v3028
        %v3030 = vrcp.pop %v2963
        %v3031 = vmul.f32 1.0, %v3030
        %v3032 = vrcp.pop %v2964
        %v3033 = vmul.f32 1.0, %v3032
        %v3034 = vrcp.pop %v2965
        %v3035 = vmul.f32 1.0, %v3034
        %v3036 = vrcp.pop %v2966
        %v3037 = vmul.f32 1.0, %v3036
        %v3038 = vrcp.pop %v2967
        %v3039 = vmul.f32 1.0, %v3038
        %v3040 = vrcp.pop %v2968
        %v3041 = vmul.f32 1.0, %v3040
        %v3042 = vrcp.pop %v2969
        %v3043 = vmul.f32 1.0, %v3042
        %v3044 = vrcp.pop %v2970
        %v3045 = vmul.f32 1.0, %v3044
        %v3046 = vrcp.pop %v2971
        %v3047 = vmul.f32 1.0, %v3046
        %v3048 = vrcp.pop %v2972
        %v3049 = vmul.f32 1.0, %v3048
        %v3050 = vrcp.pop %v2973
        %v3051 = vmul.f32 1.0, %v3050
        %v3052 = vrcp.pop %v2974
        %v3053 = vmul.f32 1.0, %v3052
        %v3054 = vrcp.pop %v2975
        %v3055 = vmul.f32 1.0, %v3054
        %v3056 = vrcp.pop %v2976
        %v3057 = vmul.f32 1.0, %v3056
        %v3058 = vrcp.pop %v2977
        %v3059 = vmul.f32 1.0, %v3058
        %v3060 = vrcp.pop %v2978
        %v3061 = vmul.f32 1.0, %v3060
        %v3062 = vrcp.pop %v2979
        %v3063 = vmul.f32 1.0, %v3062
        %v3064 = vrcp.pop %v2980
        %v3065 = vmul.f32 1.0, %v3064
        %v3066 = vrcp.pop %v2981
        %v3067 = vmul.f32 1.0, %v3066
        %v3068 = vrcp.pop %v2982
        %v3069 = vmul.f32 1.0, %v3068
        %v3070 = vrcp.pop %v2983
        %v3071 = vmul.f32 1.0, %v3070
        %v3072 = vrcp.pop %v2984
        %v3073 = vmul.f32 1.0, %v3072
        %v3074 = vrcp.pop %v2985
        %v3075 = vmul.f32 1.0, %v3074
        %v3076 = vrcp.pop %v2986
        %v3077 = vmul.f32 1.0, %v3076
        %v3078 = vrcp.pop %v2987
        %v3079 = vmul.f32 1.0, %v3078
        %v3080 = vrcp.pop %v2988
        %v3081 = vmul.f32 1.0, %v3080
        %v3082 = vrcp.pop %v2989
        %v3083 = vmul.f32 1.0, %v3082
        %v3084 = vrcp.pop %v2990
        %v3085 = vmul.f32 1.0, %v3084
        %v3086 = vrcp.pop %v2991
        %v3087 = vmul.f32 1.0, %v3086
        %v3088 = vmul.f32 %v2752, %v2993
        %v3089 = vmul.f32 %v2753, %v2995
        %v3090 = vmul.f32 %v2754, %v2997
        %v3091 = vmul.f32 %v2755, %v2999
        %v3092 = vmul.f32 %v2756, %v3001
        %v3093 = vmul.f32 %v2757, %v3003
        %v3094 = vmul.f32 %v2758, %v3005
        %v3095 = vmul.f32 %v2759, %v3007
        %v3096 = vmul.f32 %v2760, %v3009
        %v3097 = vmul.f32 %v2761, %v3011
        %v3098 = vmul.f32 %v2762, %v3013
        %v3099 = vmul.f32 %v2763, %v3015
        %v3100 = vmul.f32 %v2764, %v3017
        %v3101 = vmul.f32 %v2765, %v3019
        %v3102 = vmul.f32 %v2766, %v3021
        %v3103 = vmul.f32 %v2767, %v3023
        %v3104 = vmul.f32 %v2768, %v3025
        %v3105 = vmul.f32 %v2769, %v3027
        %v3106 = vmul.f32 %v2770, %v3029
        %v3107 = vmul.f32 %v2771, %v3031
        %v3108 = vmul.f32 %v2772, %v3033
        %v3109 = vmul.f32 %v2773, %v3035
        %v3110 = vmul.f32 %v2774, %v3037
        %v3111 = vmul.f32 %v2775, %v3039
        %v3112 = vmul.f32 %v2776, %v3041
        %v3113 = vmul.f32 %v2777, %v3043
        %v3114 = vmul.f32 %v2778, %v3045
        %v3115 = vmul.f32 %v2779, %v3047
        %v3116 = vmul.f32 %v2780, %v3049
        %v3117 = vmul.f32 %v2781, %v3051
        %v3118 = vmul.f32 %v2782, %v3053
        %v3119 = vmul.f32 %v2783, %v3055
        %v3120 = vmul.f32 %v2784, %v3057
        %v3121 = vmul.f32 %v2785, %v3059
        %v3122 = vmul.f32 %v2786, %v3061
        %v3123 = vmul.f32 %v2787, %v3063
        %v3124 = vmul.f32 %v2788, %v3065
        %v3125 = vmul.f32 %v2789, %v3067
        %v3126 = vmul.f32 %v2790, %v3069
        %v3127 = vmul.f32 %v2791, %v3071
        %v3128 = vmul.f32 %v2792, %v3073
        %v3129 = vmul.f32 %v2793, %v3075
        %v3130 = vmul.f32 %v2794, %v3077
        %v3131 = vmul.f32 %v2795, %v3079
        %v3132 = vmul.f32 %v2796, %v3081
        %v3133 = vmul.f32 %v2797, %v3083
        %v3134 = vmul.f32 %v2798, %v3085
        %v3135 = vmul.f32 %v2799, %v3087
        %vm3184 = vcmask 1040384
        %v3185 = vrot.slane %v3088, 7
        %v3186 = vrot.slane %v3089, 7
        %v3187 = vsel %vm3184, %v3185, %v3186
        %v3188 = vrot.slane %v3090, 7
        %v3189 = vsel %vm3184, %v3186, %v3188
        %v3190 = vrot.slane %v3091, 7
        %v3191 = vrot.slane %v3092, 7
        %v3192 = vsel %vm3184, %v3190, %v3191
        %v3193 = vrot.slane %v3093, 7
        %v3194 = vsel %vm3184, %v3191, %v3193
        %v3195 = vrot.slane %v3094, 7
        %v3196 = vrot.slane %v3095, 7
        %v3197 = vsel %vm3184, %v3195, %v3196
        %v3198 = vrot.slane %v3096, 7
        %v3199 = vsel %vm3184, %v3196, %v3198
        %v3200 = vrot.slane %v3097, 7
        %v3201 = vrot.slane %v3098, 7
        %v3202 = vsel %vm3184, %v3200, %v3201
        %v3203 = vrot.slane %v3099, 7
        %v3204 = vsel %vm3184, %v3201, %v3203
        %v3205 = vrot.slane %v3100, 7
        %v3206 = vrot.slane %v3101, 7
        %v3207 = vsel %vm3184, %v3205, %v3206
        %v3208 = vrot.slane %v3102, 7
        %v3209 = vsel %vm3184, %v3206, %v3208
        %v3210 = vrot.slane %v3103, 7
        %v3211 = vrot.slane %v3104, 7
        %v3212 = vsel %vm3184, %v3210, %v3211
        %v3213 = vrot.slane %v3105, 7
        %v3214 = vsel %vm3184, %v3211, %v3213
        %v3215 = vrot.slane %v3106, 7
        %v3216 = vrot.slane %v3107, 7
        %v3217 = vsel %vm3184, %v3215, %v3216
        %v3218 = vrot.slane %v3108, 7
        %v3219 = vsel %vm3184, %v3216, %v3218
        %v3220 = vrot.slane %v3109, 7
        %v3221 = vrot.slane %v3110, 7
        %v3222 = vsel %vm3184, %v3220, %v3221
        %v3223 = vrot.slane %v3111, 7
        %v3224 = vsel %vm3184, %v3221, %v3223
        %v3225 = vrot.slane %v3112, 7
        %v3226 = vrot.slane %v3113, 7
        %v3227 = vsel %vm3184, %v3225, %v3226
        %v3228 = vrot.slane %v3114, 7
        %v3229 = vsel %vm3184, %v3226, %v3228
        %v3230 = vrot.slane %v3115, 7
        %v3231 = vrot.slane %v3116, 7
        %v3232 = vsel %vm3184, %v3230, %v3231
        %v3233 = vrot.slane %v3117, 7
        %v3234 = vsel %vm3184, %v3231, %v3233
        %v3235 = vrot.slane %v3118, 7
        %v3236 = vrot.slane %v3119, 7
        %v3237 = vsel %vm3184, %v3235, %v3236
        %v3238 = vrot.slane %v3120, 7
        %v3239 = vsel %vm3184, %v3236, %v3238
        %v3240 = vrot.slane %v3121, 7
        %v3241 = vrot.slane %v3122, 7
        %v3242 = vsel %vm3184, %v3240, %v3241
        %v3243 = vrot.slane %v3123, 7
        %v3244 = vsel %vm3184, %v3241, %v3243
        %v3245 = vrot.slane %v3124, 7
        %v3246 = vrot.slane %v3125, 7
        %v3247 = vsel %vm3184, %v3245, %v3246
        %v3248 = vrot.slane %v3126, 7
        %v3249 = vsel %vm3184, %v3246, %v3248
        %v3250 = vrot.slane %v3127, 7
        %v3251 = vrot.slane %v3128, 7
        %v3252 = vsel %vm3184, %v3250, %v3251
        %v3253 = vrot.slane %v3129, 7
        %v3254 = vsel %vm3184, %v3251, %v3253
        %v3255 = vrot.slane %v3130, 7
        %v3256 = vrot.slane %v3131, 7
        %v3257 = vsel %vm3184, %v3255, %v3256
        %v3258 = vrot.slane %v3132, 7
        %v3259 = vsel %vm3184, %v3256, %v3258
        %v3260 = vrot.slane %v3133, 7
        %v3261 = vrot.slane %v3134, 7
        %v3262 = vsel %vm3184, %v3260, %v3261
        %v3263 = vrot.slane %v3135, 7
        %v3264 = vsel %vm3184, %v3261, %v3263
        %v3297 = vpack.c.bf16 %v3189, %v3187
        %v3298 = vpack.c.bf16 %v3194, %v3192
        %v3299 = vpack.c.bf16 %v3199, %v3197
        %v3300 = vpack.c.bf16 %v3204, %v3202
        %v3301 = vpack.c.bf16 %v3209, %v3207
        %v3302 = vpack.c.bf16 %v3214, %v3212
        %v3303 = vpack.c.bf16 %v3219, %v3217
        %v3304 = vpack.c.bf16 %v3224, %v3222
        %v3305 = vpack.c.bf16 %v3229, %v3227
        %v3306 = vpack.c.bf16 %v3234, %v3232
        %v3307 = vpack.c.bf16 %v3239, %v3237
        %v3308 = vpack.c.bf16 %v3244, %v3242
        %v3309 = vpack.c.bf16 %v3249, %v3247
        %v3310 = vpack.c.bf16 %v3254, %v3252
        %v3311 = vpack.c.bf16 %v3259, %v3257
        %v3312 = vpack.c.bf16 %v3264, %v3262
        %v3313 = vld [vmem:[%s5] sm:$0xf]
        %v3314 = vld [vmem:[%s5 + $0x4] sm:$0xf]
        %v3315 = vld [vmem:[%s5 + $0x8] sm:$0xf]
        %v3316 = vld [vmem:[%s5 + $0xc] sm:$0xf]
        %v3317 = vld [vmem:[%s5 + $0x10] sm:$0xf]
        %v3318 = vld [vmem:[%s5 + $0x14] sm:$0xf]
        %v3319 = vld [vmem:[%s5 + $0x18] sm:$0xf]
        %v3320 = vld [vmem:[%s5 + $0x1c] sm:$0xf]
        %v3321 = vld [vmem:[%s5 + $0x20] sm:$0xf]
        %v3322 = vld [vmem:[%s5 + $0x24] sm:$0xf]
        %v3323 = vld [vmem:[%s5 + $0x28] sm:$0xf]
        %v3324 = vld [vmem:[%s5 + $0x2c] sm:$0xf]
        %v3325 = vld [vmem:[%s5 + $0x30] sm:$0xf]
        %v3326 = vld [vmem:[%s5 + $0x34] sm:$0xf]
        %v3327 = vld [vmem:[%s5 + $0x38] sm:$0xf]
        %v3328 = vld [vmem:[%s5 + $0x3c] sm:$0xf]
        %v3329 = vld [vmem:[%s6] sm:$0x1]
        %v3331 = vlaneseq
        %v3332 = vshrl.u32 %v3331, 7
        %v3333 = vsub.s32 0, %v3332
        %v3334 = vrot.slane %v3329, %v3333
        %v3352 = vunpack.c.l.b16 %v3313
        %v3353 = vunpack.c.l.b16 %v3314
        %v3354 = vunpack.c.l.b16 %v3315
        %v3355 = vunpack.c.l.b16 %v3316
        %v3356 = vunpack.c.l.b16 %v3317
        %v3357 = vunpack.c.l.b16 %v3318
        %v3358 = vunpack.c.l.b16 %v3319
        %v3359 = vunpack.c.l.b16 %v3320
        %v3360 = vunpack.c.l.b16 %v3321
        %v3361 = vunpack.c.l.b16 %v3322
        %v3362 = vunpack.c.l.b16 %v3323
        %v3363 = vunpack.c.l.b16 %v3324
        %v3364 = vunpack.c.l.b16 %v3325
        %v3365 = vunpack.c.l.b16 %v3326
        %v3366 = vunpack.c.l.b16 %v3327
        %v3367 = vunpack.c.l.b16 %v3328
        %v3368 = vpack.c.b16 %v3353, %v3352
        %v3369 = vpack.c.b16 %v3355, %v3354
        %v3370 = vpack.c.b16 %v3357, %v3356
        %v3371 = vpack.c.b16 %v3359, %v3358
        %v3372 = vpack.c.b16 %v3361, %v3360
        %v3373 = vpack.c.b16 %v3363, %v3362
        %v3374 = vpack.c.b16 %v3365, %v3364
        %v3375 = vpack.c.b16 %v3367, %v3366
        %3384 = vmatprep.subr.bf16.mxu0 0
        %3385 = vmatpush1.bf16.msra.mxu0 %v3368
        %3386 = vmatprep.subr.bf16.mxu0 0
        %3387 = vmatpush1.bf16.msra.mxu0 %v3369
        %3388 = vmatprep.subr.bf16.mxu0 0
        %3389 = vmatpush1.bf16.msra.mxu0 %v3370
        %3390 = vmatprep.subr.bf16.mxu0 0
        %3391 = vmatpush1.bf16.msra.mxu0 %v3371
        %3392 = vmatprep.subr.bf16.mxu0 0
        %3393 = vmatpush1.bf16.msra.mxu0 %v3372
        %3394 = vmatprep.subr.bf16.mxu0 0
        %3395 = vmatpush1.bf16.msra.mxu0 %v3373
        %3396 = vmatprep.subr.bf16.mxu0 0
        %3397 = vmatpush1.bf16.msra.mxu0 %v3374
        %3398 = vmatprep.subr.bf16.mxu0 0
        %3399 = vmatpush1.bf16.msra.mxu0 %v3375
        %3400 = vmatprep.subr.bf16.mxu0 0
        %3401 = vmatpush1.bf16.msra.mxu0 0
        %3402 = vmatprep.subr.bf16.mxu0 0
        %3403 = vmatpush1.bf16.msra.mxu0 0
        %3404 = vmatprep.subr.bf16.mxu0 0
        %3405 = vmatpush1.bf16.msra.mxu0 0
        %3406 = vmatprep.subr.bf16.mxu0 0
        %3407 = vmatpush1.bf16.msra.mxu0 0
        %3408 = vmatprep.subr.bf16.mxu0 0
        %3409 = vmatpush1.bf16.msra.mxu0 0
        %3410 = vmatprep.subr.bf16.mxu0 0
        %3411 = vmatpush1.bf16.msra.mxu0 0
        %3412 = vmatprep.subr.bf16.mxu0 0
        %3413 = vmatpush1.bf16.msra.mxu0 0
        %3414 = vmatprep.subr.bf16.mxu0 0
        %3415 = vmatpush1.bf16.msra.mxu0 0
        %3416 = vmatprep.mubr.bf16.mxu0 0
        %3417 = vmatmul.mubr.bf16.gmra.mrb[0].mxu0 %v3297
        %v3418 = vpop.f32.mrb[0].mxu0
        %v3419 = vadd.f32 %v3334, %v3418
        %v3420 = vpop.f32.mrb[0].mxu0
        %v3421 = vpop.f32.mrb[0].mxu0
        %v3422 = vadd.f32 %v3334, %v3421
        %v3423 = vpop.f32.mrb[0].mxu0
        %3424 = vmatprep.mubr.bf16.mxu0 0
        %3425 = vmatmul.mubr.bf16.gmra.mrb[0].mxu0 %v3298
        %v3426 = vpop.f32.mrb[0].mxu0
        %v3427 = vadd.f32 %v3334, %v3426
        %v3428 = vpop.f32.mrb[0].mxu0
        %v3429 = vpop.f32.mrb[0].mxu0
        %v3430 = vadd.f32 %v3334, %v3429
        %v3431 = vpop.f32.mrb[0].mxu0
        %3432 = vmatprep.mubr.bf16.mxu0 0
        %3433 = vmatmul.mubr.bf16.gmra.mrb[0].mxu0 %v3299
        %v3434 = vpop.f32.mrb[0].mxu0
        %v3435 = vadd.f32 %v3334, %v3434
        %v3436 = vpop.f32.mrb[0].mxu0
        %v3437 = vpop.f32.mrb[0].mxu0
        %v3438 = vadd.f32 %v3334, %v3437
        %v3439 = vpop.f32.mrb[0].mxu0
        %3440 = vmatprep.mubr.bf16.mxu0 0
        %3441 = vmatmul.mubr.bf16.gmra.mrb[0].mxu0 %v3300
        %v3442 = vpop.f32.mrb[0].mxu0
        %v3443 = vadd.f32 %v3334, %v3442
        %v3444 = vpop.f32.mrb[0].mxu0
        %v3445 = vpop.f32.mrb[0].mxu0
        %v3446 = vadd.f32 %v3334, %v3445
        %v3447 = vpop.f32.mrb[0].mxu0
        %3448 = vmatprep.mubr.bf16.mxu0 0
        %3449 = vmatmul.mubr.bf16.gmra.mrb[0].mxu0 %v3301
        %v3450 = vpop.f32.mrb[0].mxu0
        %v3451 = vadd.f32 %v3334, %v3450
        %v3452 = vpop.f32.mrb[0].mxu0
        %v3453 = vpop.f32.mrb[0].mxu0
        %v3454 = vadd.f32 %v3334, %v3453
        %v3455 = vpop.f32.mrb[0].mxu0
        %3456 = vmatprep.mubr.bf16.mxu0 0
        %3457 = vmatmul.mubr.bf16.gmra.mrb[0].mxu0 %v3302
        %v3458 = vpop.f32.mrb[0].mxu0
        %v3459 = vadd.f32 %v3334, %v3458
        %v3460 = vpop.f32.mrb[0].mxu0
        %v3461 = vpop.f32.mrb[0].mxu0
        %v3462 = vadd.f32 %v3334, %v3461
        %v3463 = vpop.f32.mrb[0].mxu0
        %3464 = vmatprep.mubr.bf16.mxu0 0
        %3465 = vmatmul.mubr.bf16.gmra.mrb[0].mxu0 %v3303
        %v3466 = vpop.f32.mrb[0].mxu0
        %v3467 = vadd.f32 %v3334, %v3466
        %v3468 = vpop.f32.mrb[0].mxu0
        %v3469 = vpop.f32.mrb[0].mxu0
        %v3470 = vadd.f32 %v3334, %v3469
        %v3471 = vpop.f32.mrb[0].mxu0
        %3472 = vmatprep.mubr.bf16.mxu0 0
        %3473 = vmatmul.mubr.bf16.gmra.mrb[0].mxu0 %v3304
        %v3474 = vpop.f32.mrb[0].mxu0
        %v3475 = vadd.f32 %v3334, %v3474
        %v3476 = vpop.f32.mrb[0].mxu0
        %v3477 = vpop.f32.mrb[0].mxu0
        %v3478 = vadd.f32 %v3334, %v3477
        %v3479 = vpop.f32.mrb[0].mxu0
        %3480 = vmatprep.mubr.bf16.mxu0 0
        %3481 = vmatmul.mubr.bf16.gmra.mrb[0].mxu0 %v3305
        %v3482 = vpop.f32.mrb[0].mxu0
        %v3483 = vadd.f32 %v3334, %v3482
        %v3484 = vpop.f32.mrb[0].mxu0
        %v3485 = vpop.f32.mrb[0].mxu0
        %v3486 = vadd.f32 %v3334, %v3485
        %v3487 = vpop.f32.mrb[0].mxu0
        %3488 = vmatprep.mubr.bf16.mxu0 0
        %3489 = vmatmul.mubr.bf16.gmra.mrb[0].mxu0 %v3306
        %v3490 = vpop.f32.mrb[0].mxu0
        %v3491 = vadd.f32 %v3334, %v3490
        %v3492 = vpop.f32.mrb[0].mxu0
        %v3493 = vpop.f32.mrb[0].mxu0
        %v3494 = vadd.f32 %v3334, %v3493
        %v3495 = vpop.f32.mrb[0].mxu0
        %3496 = vmatprep.mubr.bf16.mxu0 0
        %3497 = vmatmul.mubr.bf16.gmra.mrb[0].mxu0 %v3307
        %v3498 = vpop.f32.mrb[0].mxu0
        %v3499 = vadd.f32 %v3334, %v3498
        %v3500 = vpop.f32.mrb[0].mxu0
        %v3501 = vpop.f32.mrb[0].mxu0
        %v3502 = vadd.f32 %v3334, %v3501
        %v3503 = vpop.f32.mrb[0].mxu0
        %3504 = vmatprep.mubr.bf16.mxu0 0
        %3505 = vmatmul.mubr.bf16.gmra.mrb[0].mxu0 %v3308
        %v3506 = vpop.f32.mrb[0].mxu0
        %v3507 = vadd.f32 %v3334, %v3506
        %v3508 = vpop.f32.mrb[0].mxu0
        %v3509 = vpop.f32.mrb[0].mxu0
        %v3510 = vadd.f32 %v3334, %v3509
        %v3511 = vpop.f32.mrb[0].mxu0
        %3512 = vmatprep.mubr.bf16.mxu0 0
        %3513 = vmatmul.mubr.bf16.gmra.mrb[0].mxu0 %v3309
        %v3514 = vpop.f32.mrb[0].mxu0
        %v3515 = vadd.f32 %v3334, %v3514
        %v3516 = vpop.f32.mrb[0].mxu0
        %v3517 = vpop.f32.mrb[0].mxu0
        %v3518 = vadd.f32 %v3334, %v3517
        %v3519 = vpop.f32.mrb[0].mxu0
        %3520 = vmatprep.mubr.bf16.mxu0 0
        %3521 = vmatmul.mubr.bf16.gmra.mrb[0].mxu0 %v3310
        %v3522 = vpop.f32.mrb[0].mxu0
        %v3523 = vadd.f32 %v3334, %v3522
        %v3524 = vpop.f32.mrb[0].mxu0
        %v3525 = vpop.f32.mrb[0].mxu0
        %v3526 = vadd.f32 %v3334, %v3525
        %v3527 = vpop.f32.mrb[0].mxu0
        %3528 = vmatprep.mubr.bf16.mxu0 0
        %3529 = vmatmul.mubr.bf16.gmra.mrb[0].mxu0 %v3311
        %v3530 = vpop.f32.mrb[0].mxu0
        %v3531 = vadd.f32 %v3334, %v3530
        %v3532 = vpop.f32.mrb[0].mxu0
        %v3533 = vpop.f32.mrb[0].mxu0
        %v3534 = vadd.f32 %v3334, %v3533
        %v3535 = vpop.f32.mrb[0].mxu0
        %3536 = vmatprep.mubr.bf16.mxu0 0
        %3537 = vmatmul.mubr.bf16.gmra.mrb[0].mxu0 %v3312
        %v3538 = vpop.f32.mrb[0].mxu0
        %v3539 = vadd.f32 %v3334, %v3538
        %v3540 = vpop.f32.mrb[0].mxu0
        %v3541 = vpop.f32.mrb[0].mxu0
        %v3542 = vadd.f32 %v3334, %v3541
        %v3543 = vpop.f32.mrb[0].mxu0
        %3544 = vdwg.mxu0
        %v3545 = vld [vmem:[%s7] sm:$0xff]
        %v3547 = vsel %vm361, %v305, 0
        %v3550 = vsel %vm361, %v306, 0
        %v3553 = vsel %vm361, %v307, 0
        %v3556 = vsel %vm361, %v308, 0
        %v3559 = vsel %vm361, %v309, 0
        %v3562 = vsel %vm361, %v310, 0
        %v3565 = vsel %vm361, %v311, 0
        %v3568 = vsel %vm361, %v312, 0
        %v3571 = vsel %vm361, %v313, 0
        %v3574 = vsel %vm361, %v314, 0
        %v3577 = vsel %vm361, %v315, 0
        %v3580 = vsel %vm361, %v316, 0
        %v3583 = vsel %vm361, %v317, 0
        %v3586 = vsel %vm361, %v318, 0
        %v3589 = vsel %vm361, %v319, 0
        %v3592 = vsel %vm361, %v320, 0
        %v3595 = vsel %vm361, %v321, 0
        %v3598 = vsel %vm361, %v322, 0
        %v3601 = vsel %vm361, %v323, 0
        %v3604 = vsel %vm361, %v324, 0
        %v3607 = vsel %vm361, %v325, 0
        %v3610 = vsel %vm361, %v326, 0
        %v3613 = vsel %vm361, %v327, 0
        %v3616 = vsel %vm361, %v328, 0
        %v3619 = vsel %vm361, %v329, 0
        %v3622 = vsel %vm361, %v330, 0
        %v3625 = vsel %vm361, %v331, 0
        %v3628 = vsel %vm361, %v332, 0
        %v3631 = vsel %vm361, %v333, 0
        %v3634 = vsel %vm361, %v334, 0
        %v3637 = vsel %vm361, %v335, 0
        %v3640 = vsel %vm361, %v336, 0
        %3642 = vmatprep.subr.mxu0 0.0
        %3643 = vmatpush1.msra.mxu0 %v3545
        %3644 = vmatprep.subr.mxu0 0.0
        %3645 = vmatpush1.msra.mxu0 0.0
        %3646 = vmatprep.subr.mxu0 0.0
        %3647 = vmatpush1.msra.mxu0 0.0
        %3648 = vmatprep.subr.mxu0 0.0
        %3649 = vmatpush1.msra.mxu0 0.0
        %3650 = vmatprep.subr.mxu0 0.0
        %3651 = vmatpush1.msra.mxu0 0.0
        %3652 = vmatprep.subr.mxu0 0.0
        %3653 = vmatpush1.msra.mxu0 0.0
        %3654 = vmatprep.subr.mxu0 0.0
        %3655 = vmatpush1.msra.mxu0 0.0
        %3656 = vmatprep.subr.mxu0 0.0
        %3657 = vmatpush1.msra.mxu0 0.0
        %3658 = vmatprep.subr.mxu0 0.0
        %3659 = vmatpush1.msra.mxu0 0.0
        %3660 = vmatprep.subr.mxu0 0.0
        %3661 = vmatpush1.msra.mxu0 0.0
        %3662 = vmatprep.subr.mxu0 0.0
        %3663 = vmatpush1.msra.mxu0 0.0
        %3664 = vmatprep.subr.mxu0 0.0
        %3665 = vmatpush1.msra.mxu0 0.0
        %3666 = vmatprep.subr.mxu0 0.0
        %3667 = vmatpush1.msra.mxu0 0.0
        %3668 = vmatprep.subr.mxu0 0.0
        %3669 = vmatpush1.msra.mxu0 0.0
        %3670 = vmatprep.subr.mxu0 0.0
        %3671 = vmatpush1.msra.mxu0 0.0
        %3672 = vmatprep.subr.mxu0 0.0
        %3673 = vmatpush1.msra.mxu0 0.0
        %3674 = vmatprep.subr.mxu0 0.0
        %3675 = vmatpush1.msra.mxu0 0.0
        %3676 = vmatprep.subr.mxu0 0.0
        %3677 = vmatpush1.msra.mxu0 0.0
        %3678 = vmatprep.subr.mxu0 0.0
        %3679 = vmatpush1.msra.mxu0 0.0
        %3680 = vmatprep.subr.mxu0 0.0
        %3681 = vmatpush1.msra.mxu0 0.0
        %3682 = vmatprep.subr.mxu0 0.0
        %3683 = vmatpush1.msra.mxu0 0.0
        %3684 = vmatprep.subr.mxu0 0.0
        %3685 = vmatpush1.msra.mxu0 0.0
        %3686 = vmatprep.subr.mxu0 0.0
        %3687 = vmatpush1.msra.mxu0 0.0
        %3688 = vmatprep.subr.mxu0 0.0
        %3689 = vmatpush1.msra.mxu0 0.0
        %3690 = vmatprep.subr.mxu0 0.0
        %3691 = vmatpush1.msra.mxu0 0.0
        %3692 = vmatprep.subr.mxu0 0.0
        %3693 = vmatpush1.msra.mxu0 0.0
        %3694 = vmatprep.subr.mxu0 0.0
        %3695 = vmatpush1.msra.mxu0 0.0
        %3696 = vmatprep.subr.mxu0 0.0
        %3697 = vmatpush1.msra.mxu0 0.0
        %3698 = vmatprep.subr.mxu0 0.0
        %3699 = vmatpush1.msra.mxu0 0.0
        %3700 = vmatprep.subr.mxu0 0.0
        %3701 = vmatpush1.msra.mxu0 0.0
        %3702 = vmatprep.subr.mxu0 0.0
        %3703 = vmatpush1.msra.mxu0 0.0
        %3704 = vmatprep.subr.mxu0 0.0
        %3705 = vmatpush1.msra.mxu0 0.0
        %3706 = vmatprep.mubr.f32.mxu0 0.0
        %3707 = vmatmul.mubr.f32.gmra.mrb[0].mxu0 %v3547
        %v3708 = vpop.f32.mrb[0].mxu0
        %v3709 = vadd.f32 0.0, %v3708
        %v3710 = vpop.f32.mrb[0].mxu0
        %3711 = vmatprep.mubr.f32.mxu0 0.0
        %3712 = vmatmul.mubr.f32.gmra.mrb[0].mxu0 %v3550
        %v3713 = vpop.f32.mrb[0].mxu0
        %v3714 = vadd.f32 0.0, %v3713
        %v3715 = vpop.f32.mrb[0].mxu0
        %3716 = vmatprep.mubr.f32.mxu0 0.0
        %3717 = vmatmul.mubr.f32.gmra.mrb[0].mxu0 %v3553
        %v3718 = vpop.f32.mrb[0].mxu0
        %v3719 = vadd.f32 0.0, %v3718
        %v3720 = vpop.f32.mrb[0].mxu0
        %3721 = vmatprep.mubr.f32.mxu0 0.0
        %3722 = vmatmul.mubr.f32.gmra.mrb[0].mxu0 %v3556
        %v3723 = vpop.f32.mrb[0].mxu0
        %v3724 = vadd.f32 0.0, %v3723
        %v3725 = vpop.f32.mrb[0].mxu0
        %3726 = vmatprep.mubr.f32.mxu0 0.0
        %3727 = vmatmul.mubr.f32.gmra.mrb[0].mxu0 %v3559
        %v3728 = vpop.f32.mrb[0].mxu0
        %v3729 = vadd.f32 0.0, %v3728
        %v3730 = vpop.f32.mrb[0].mxu0
        %3731 = vmatprep.mubr.f32.mxu0 0.0
        %3732 = vmatmul.mubr.f32.gmra.mrb[0].mxu0 %v3562
        %v3733 = vpop.f32.mrb[0].mxu0
        %v3734 = vadd.f32 0.0, %v3733
        %v3735 = vpop.f32.mrb[0].mxu0
        %3736 = vmatprep.mubr.f32.mxu0 0.0
        %3737 = vmatmul.mubr.f32.gmra.mrb[0].mxu0 %v3565
        %v3738 = vpop.f32.mrb[0].mxu0
        %v3739 = vadd.f32 0.0, %v3738
        %v3740 = vpop.f32.mrb[0].mxu0
        %3741 = vmatprep.mubr.f32.mxu0 0.0
        %3742 = vmatmul.mubr.f32.gmra.mrb[0].mxu0 %v3568
        %v3743 = vpop.f32.mrb[0].mxu0
        %v3744 = vadd.f32 0.0, %v3743
        %v3745 = vpop.f32.mrb[0].mxu0
        %3746 = vmatprep.mubr.f32.mxu0 0.0
        %3747 = vmatmul.mubr.f32.gmra.mrb[0].mxu0 %v3571
        %v3748 = vpop.f32.mrb[0].mxu0
        %v3749 = vadd.f32 0.0, %v3748
        %v3750 = vpop.f32.mrb[0].mxu0
        %3751 = vmatprep.mubr.f32.mxu0 0.0
        %3752 = vmatmul.mubr.f32.gmra.mrb[0].mxu0 %v3574
        %v3753 = vpop.f32.mrb[0].mxu0
        %v3754 = vadd.f32 0.0, %v3753
        %v3755 = vpop.f32.mrb[0].mxu0
        %3756 = vmatprep.mubr.f32.mxu0 0.0
        %3757 = vmatmul.mubr.f32.gmra.mrb[0].mxu0 %v3577
        %v3758 = vpop.f32.mrb[0].mxu0
        %v3759 = vadd.f32 0.0, %v3758
        %v3760 = vpop.f32.mrb[0].mxu0
        %3761 = vmatprep.mubr.f32.mxu0 0.0
        %3762 = vmatmul.mubr.f32.gmra.mrb[0].mxu0 %v3580
        %v3763 = vpop.f32.mrb[0].mxu0
        %v3764 = vadd.f32 0.0, %v3763
        %v3765 = vpop.f32.mrb[0].mxu0
        %3766 = vmatprep.mubr.f32.mxu0 0.0
        %3767 = vmatmul.mubr.f32.gmra.mrb[0].mxu0 %v3583
        %v3768 = vpop.f32.mrb[0].mxu0
        %v3769 = vadd.f32 0.0, %v3768
        %v3770 = vpop.f32.mrb[0].mxu0
        %3771 = vmatprep.mubr.f32.mxu0 0.0
        %3772 = vmatmul.mubr.f32.gmra.mrb[0].mxu0 %v3586
        %v3773 = vpop.f32.mrb[0].mxu0
        %v3774 = vadd.f32 0.0, %v3773
        %v3775 = vpop.f32.mrb[0].mxu0
        %3776 = vmatprep.mubr.f32.mxu0 0.0
        %3777 = vmatmul.mubr.f32.gmra.mrb[0].mxu0 %v3589
        %v3778 = vpop.f32.mrb[0].mxu0
        %v3779 = vadd.f32 0.0, %v3778
        %v3780 = vpop.f32.mrb[0].mxu0
        %3781 = vmatprep.mubr.f32.mxu0 0.0
        %3782 = vmatmul.mubr.f32.gmra.mrb[0].mxu0 %v3592
        %v3783 = vpop.f32.mrb[0].mxu0
        %v3784 = vadd.f32 0.0, %v3783
        %v3785 = vpop.f32.mrb[0].mxu0
        %3786 = vmatprep.mubr.f32.mxu0 0.0
        %3787 = vmatmul.mubr.f32.gmra.mrb[0].mxu0 %v3595
        %v3788 = vpop.f32.mrb[0].mxu0
        %v3789 = vadd.f32 0.0, %v3788
        %v3790 = vpop.f32.mrb[0].mxu0
        %3791 = vmatprep.mubr.f32.mxu0 0.0
        %3792 = vmatmul.mubr.f32.gmra.mrb[0].mxu0 %v3598
        %v3793 = vpop.f32.mrb[0].mxu0
        %v3794 = vadd.f32 0.0, %v3793
        %v3795 = vpop.f32.mrb[0].mxu0
        %3796 = vmatprep.mubr.f32.mxu0 0.0
        %3797 = vmatmul.mubr.f32.gmra.mrb[0].mxu0 %v3601
        %v3798 = vpop.f32.mrb[0].mxu0
        %v3799 = vadd.f32 0.0, %v3798
        %v3800 = vpop.f32.mrb[0].mxu0
        %3801 = vmatprep.mubr.f32.mxu0 0.0
        %3802 = vmatmul.mubr.f32.gmra.mrb[0].mxu0 %v3604
        %v3803 = vpop.f32.mrb[0].mxu0
        %v3804 = vadd.f32 0.0, %v3803
        %v3805 = vpop.f32.mrb[0].mxu0
        %3806 = vmatprep.mubr.f32.mxu0 0.0
        %3807 = vmatmul.mubr.f32.gmra.mrb[0].mxu0 %v3607
        %v3808 = vpop.f32.mrb[0].mxu0
        %v3809 = vadd.f32 0.0, %v3808
        %v3810 = vpop.f32.mrb[0].mxu0
        %3811 = vmatprep.mubr.f32.mxu0 0.0
        %3812 = vmatmul.mubr.f32.gmra.mrb[0].mxu0 %v3610
        %v3813 = vpop.f32.mrb[0].mxu0
        %v3814 = vadd.f32 0.0, %v3813
        %v3815 = vpop.f32.mrb[0].mxu0
        %3816 = vmatprep.mubr.f32.mxu0 0.0
        %3817 = vmatmul.mubr.f32.gmra.mrb[0].mxu0 %v3613
        %v3818 = vpop.f32.mrb[0].mxu0
        %v3819 = vadd.f32 0.0, %v3818
        %v3820 = vpop.f32.mrb[0].mxu0
        %3821 = vmatprep.mubr.f32.mxu0 0.0
        %3822 = vmatmul.mubr.f32.gmra.mrb[0].mxu0 %v3616
        %v3823 = vpop.f32.mrb[0].mxu0
        %v3824 = vadd.f32 0.0, %v3823
        %v3825 = vpop.f32.mrb[0].mxu0
        %3826 = vmatprep.mubr.f32.mxu0 0.0
        %3827 = vmatmul.mubr.f32.gmra.mrb[0].mxu0 %v3619
        %v3828 = vpop.f32.mrb[0].mxu0
        %v3829 = vadd.f32 0.0, %v3828
        %v3830 = vpop.f32.mrb[0].mxu0
        %3831 = vmatprep.mubr.f32.mxu0 0.0
        %3832 = vmatmul.mubr.f32.gmra.mrb[0].mxu0 %v3622
        %v3833 = vpop.f32.mrb[0].mxu0
        %v3834 = vadd.f32 0.0, %v3833
        %v3835 = vpop.f32.mrb[0].mxu0
        %3836 = vmatprep.mubr.f32.mxu0 0.0
        %3837 = vmatmul.mubr.f32.gmra.mrb[0].mxu0 %v3625
        %v3838 = vpop.f32.mrb[0].mxu0
        %v3839 = vadd.f32 0.0, %v3838
        %v3840 = vpop.f32.mrb[0].mxu0
        %3841 = vmatprep.mubr.f32.mxu0 0.0
        %3842 = vmatmul.mubr.f32.gmra.mrb[0].mxu0 %v3628
        %v3843 = vpop.f32.mrb[0].mxu0
        %v3844 = vadd.f32 0.0, %v3843
        %v3845 = vpop.f32.mrb[0].mxu0
        %3846 = vmatprep.mubr.f32.mxu0 0.0
        %3847 = vmatmul.mubr.f32.gmra.mrb[0].mxu0 %v3631
        %v3848 = vpop.f32.mrb[0].mxu0
        %v3849 = vadd.f32 0.0, %v3848
        %v3850 = vpop.f32.mrb[0].mxu0
        %3851 = vmatprep.mubr.f32.mxu0 0.0
        %3852 = vmatmul.mubr.f32.gmra.mrb[0].mxu0 %v3634
        %v3853 = vpop.f32.mrb[0].mxu0
        %v3854 = vadd.f32 0.0, %v3853
        %v3855 = vpop.f32.mrb[0].mxu0
        %3856 = vmatprep.mubr.f32.mxu0 0.0
        %3857 = vmatmul.mubr.f32.gmra.mrb[0].mxu0 %v3637
        %v3858 = vpop.f32.mrb[0].mxu0
        %v3859 = vadd.f32 0.0, %v3858
        %v3860 = vpop.f32.mrb[0].mxu0
        %3861 = vmatprep.mubr.f32.mxu0 0.0
        %3862 = vmatmul.mubr.f32.gmra.mrb[0].mxu0 %v3640
        %v3863 = vpop.f32.mrb[0].mxu0
        %v3864 = vadd.f32 0.0, %v3863
        %v3865 = vpop.f32.mrb[0].mxu0
        %3866 = vdwg.mxu0
        %v3867 = vadd.f32 %v3419, %v3709
        %v3868 = vadd.f32 %v3422, %v3714
        %v3869 = vadd.f32 %v3427, %v3719
        %v3870 = vadd.f32 %v3430, %v3724
        %v3871 = vadd.f32 %v3435, %v3729
        %v3872 = vadd.f32 %v3438, %v3734
        %v3873 = vadd.f32 %v3443, %v3739
        %v3874 = vadd.f32 %v3446, %v3744
        %v3875 = vadd.f32 %v3451, %v3749
        %v3876 = vadd.f32 %v3454, %v3754
        %v3877 = vadd.f32 %v3459, %v3759
        %v3878 = vadd.f32 %v3462, %v3764
        %v3879 = vadd.f32 %v3467, %v3769
        %v3880 = vadd.f32 %v3470, %v3774
        %v3881 = vadd.f32 %v3475, %v3779
        %v3882 = vadd.f32 %v3478, %v3784
        %v3883 = vadd.f32 %v3483, %v3789
        %v3884 = vadd.f32 %v3486, %v3794
        %v3885 = vadd.f32 %v3491, %v3799
        %v3886 = vadd.f32 %v3494, %v3804
        %v3887 = vadd.f32 %v3499, %v3809
        %v3888 = vadd.f32 %v3502, %v3814
        %v3889 = vadd.f32 %v3507, %v3819
        %v3890 = vadd.f32 %v3510, %v3824
        %v3891 = vadd.f32 %v3515, %v3829
        %v3892 = vadd.f32 %v3518, %v3834
        %v3893 = vadd.f32 %v3523, %v3839
        %v3894 = vadd.f32 %v3526, %v3844
        %v3895 = vadd.f32 %v3531, %v3849
        %v3896 = vadd.f32 %v3534, %v3854
        %v3897 = vadd.f32 %v3539, %v3859
        %v3898 = vadd.f32 %v3542, %v3864
        %3899 = vst [vmem:[%s298] sm:$0xff] %v3867
        %3900 = vst [vmem:[%s298 + $0x8] sm:$0xff] %v3868
        %3901 = vst [vmem:[%s298 + $0x10] sm:$0xff] %v3869
        %3902 = vst [vmem:[%s298 + $0x18] sm:$0xff] %v3870
        %3903 = vst [vmem:[%s298 + $0x20] sm:$0xff] %v3871
        %3904 = vst [vmem:[%s298 + $0x28] sm:$0xff] %v3872
        %3905 = vst [vmem:[%s298 + $0x30] sm:$0xff] %v3873
        %3906 = vst [vmem:[%s298 + $0x38] sm:$0xff] %v3874
        %3907 = vst [vmem:[%s298 + $0x40] sm:$0xff] %v3875
        %3908 = vst [vmem:[%s298 + $0x48] sm:$0xff] %v3876
        %3909 = vst [vmem:[%s298 + $0x50] sm:$0xff] %v3877
        %3910 = vst [vmem:[%s298 + $0x58] sm:$0xff] %v3878
        %3911 = vst [vmem:[%s298 + $0x60] sm:$0xff] %v3879
        %3912 = vst [vmem:[%s298 + $0x68] sm:$0xff] %v3880
        %3913 = vst [vmem:[%s298 + $0x70] sm:$0xff] %v3881
        %3914 = vst [vmem:[%s298 + $0x78] sm:$0xff] %v3882
        %3915 = vst [vmem:[%s298 + $0x80] sm:$0xff] %v3883
        %3916 = vst [vmem:[%s298 + $0x88] sm:$0xff] %v3884
        %3917 = vst [vmem:[%s298 + $0x90] sm:$0xff] %v3885
        %3918 = vst [vmem:[%s298 + $0x98] sm:$0xff] %v3886
        %3919 = vst [vmem:[%s298 + $0xa0] sm:$0xff] %v3887
        %3920 = vst [vmem:[%s298 + $0xa8] sm:$0xff] %v3888
        %3921 = vst [vmem:[%s298 + $0xb0] sm:$0xff] %v3889
        %3922 = vst [vmem:[%s298 + $0xb8] sm:$0xff] %v3890
        %3923 = vst [vmem:[%s298 + $0xc0] sm:$0xff] %v3891
        %3924 = vst [vmem:[%s298 + $0xc8] sm:$0xff] %v3892
        %3925 = vst [vmem:[%s298 + $0xd0] sm:$0xff] %v3893
        %3926 = vst [vmem:[%s298 + $0xd8] sm:$0xff] %v3894
        %3927 = vst [vmem:[%s298 + $0xe0] sm:$0xff] %v3895
        %3928 = vst [vmem:[%s298 + $0xe8] sm:$0xff] %v3896
        %3929 = vst [vmem:[%s298 + $0xf0] sm:$0xff] %v3897
        %3930 = vst [vmem:[%s298 + $0xf8] sm:$0xff] %v3898
        %s3931 = sand.u32 %s203, 1
        %s3932 = scalar_lea.sflag [#allocation4], %s3931
        %s3933 = sand.u32 %s203, 1
        %s3934 = smul.addr %s3933, 256
        %s3935 = scalar_lea.vmem [#allocation3], %s3934
        // Predicated region
        $region53: #{tpu_custom_call.1} parent=51 // pred_check
          %p3936 = pneg %p213
        $region54: #{tpu_custom_call.1} parent=51 // pred_check_branch
          %3938 = sbr.rel (%p3936) target = $region56
        $region55: #{tpu_custom_call.1} parent=51 // pred_region
          %s3940 = ssub.s32 4096, 4096
          %3941 = vsyncadd %s3932, %s3940
          %s3942 = smul.addr %s22, 32
          %s3943 = smul.addr %s3942, 128
          %s3944 = scalar_lea.hbm %s8, %s3943
          %s3945 = sshll.u32 %s3935, 4
          %s3946 = int_to_ptr.vmem [resolvable:$true] %s3945
          %3951 = dma.vmem_to_hbm [thread:$0]  %s3946, 4096, %s3944, %s3932, 128, 128, 8
        $region56: #{tpu_custom_call.1} parent=51 // pred_fallthru
          _
      $region52: #{tpu_custom_call.1} parent=5 // pred_fallthru
        _
      %p3952 = scmp.le.s32.totalorder 2, %s17
      // Predicated region
      $region57: #{tpu_custom_call.1} parent=5 // pred_check
        %p3953 = pneg %p3952
      $region58: #{tpu_custom_call.1} parent=5 // pred_check_branch
        %3955 = sbr.rel (%p3953) target = $region60
      $region59: #{tpu_custom_call.1} parent=5 // pred_region
        %s3956 = ssub.s32 %s17, 2
        // Predicated region
        $region61: #{tpu_custom_call.1} parent=59 // pred_check
          %p3957 = pneg %p219
        $region62: #{tpu_custom_call.1} parent=59 // pred_check_branch
          %3959 = sbr.rel (%p3957) target = $region64
        $region63: #{tpu_custom_call.1} parent=59 // pred_region
          %s3960 = sand.u32 %s204, 1
          %s3961 = scalar_lea.sflag [#allocation4], %s3960
          %s3962 = sand.u32 %s204, 1
          %s3963 = smul.addr %s3962, 256
          %s3964 = scalar_lea.vmem [#allocation3], %s3963
          %3965 = dma.done %s3961, 4096
        $region64: #{tpu_custom_call.1} parent=59 // pred_fallthru
          _
      $region60: #{tpu_custom_call.1} parent=5 // pred_fallthru
        _
    $region6: #{tpu_custom_call.1} parent=1 // loop_footer
      %s21 = sadd.s32 1, %s17
    $region7: #{tpu_custom_call.1} parent=1 // loop_footer_branch
      %16 = sbr.rel target = $region3
    $region8: #{tpu_custom_call.1} parent=1 // loop_exit
      _
    %3966 = vsyncpa [#allocation4], 1
    %s3967 = scalar_lea.sflag [#allocation4], 1
    %3968 = vsyncpa %s3967, 1

</llo_original>
